<compile_context>
chip_gen: v6e
topology: v6e:2x2x1
jax: 0.10.0
libtpu: 0.0.40
codegen_flags: <defaults>
</compile_context>

<pallas_src>
import functools

import jax
import jax.numpy as jnp
from jax.experimental import pallas as pl
from jax.experimental.pallas import tpu as pltpu

BN_EPS = 1e-5
LANE = 128


def _round_up(x, m):
    return (x + m - 1) // m * m


def _vmem_limit(tile_bytes, scratch_bytes=0):
    """2x per streamed tile (double buffering) + headroom for in-kernel temporaries,
    clamped so the same budget fits v7x's 64 MiB/TC (v5e/v6e have 128 MiB)."""
    need = 4 * int(tile_bytes) + 2 * int(scratch_bytes) + (4 << 20)
    return int(min(max(need, 16 << 20), 30 << 20))


# --------------------------------------------------------------------------- kernels

def _conv1_kernel(S, Ho, Wo, Cip, Cop, ph_ref, w1_ref, acc1_ref, st1_ref):
    """3x3 stride-S conv via 9 accumulated per-tap MXU dots + per-tile BN1 partials."""
    MT = Ho * Wo
    acc = jnp.zeros((MT, Cop), jnp.float32)
    for dy in range(3):
        for dx in range(3):
            p = (dy % S) * S + (dx % S)            # phase (space-to-depth) index
            oy, ox = dy // S, dx // S              # offset inside that phase
            tap = ph_ref[p:p + 1, oy:oy + Ho, ox:ox + Wo, :].reshape(MT, Cip)
            acc = acc + jnp.dot(tap, w1_ref[dy * 3 + dx],
                                preferred_element_type=jnp.float32)

    # Per-tile BatchNorm partials: sum and *centered* sum of squares (two-pass
    # within the resident tile; combined across tiles with the parallel-variance
    # formula in JAX) — avoids E[x^2]-E[x]^2 cancellation at production M.
    s = jnp.sum(acc, axis=0, keepdims=True)
    m2 = jnp.sum((acc - s * (1.0 / MT)) ** 2, axis=0, keepdims=True)
    st1_ref[:, 0:1, :] = s.reshape(1, 1, Cop)
    st1_ref[:, 1:2, :] = m2.reshape(1, 1, Cop)

    acc1_ref[...] = acc.reshape(1, MT, Cop).astype(jnp.bfloat16)


def _bnrelu_conv2_kernel(Ho, Wo, Cop, acc1_ref, sc1_ref, sh1_ref, w2_ref,
                         acc2_ref, st2_ref, ypad_ref):
    """BN1 + ReLU -> 3x3 stride-1 conv (bf16 padded scratch) + per-tile BN2 partials."""
    MT = Ho * Wo

    # BN1 (precomputed scale/shift) + ReLU; single cast of y1 to bf16.
    y1 = acc1_ref[0].astype(jnp.float32) * sc1_ref[...] + sh1_ref[...]
    y1 = jnp.maximum(y1, 0.0).astype(jnp.bfloat16)                  # (MT, Cop)

    # Zero only the halo border (bf16 scratch). Done every step: the scratch is
    # uninitialized and per-core under megacore sharding, so a program_id==0-only
    # zero would be unsafe; the four narrow stores are negligible.
    zr = jnp.zeros((1, 1, Wo + 2, Cop), jnp.bfloat16)
    zc = jnp.zeros((1, Ho, 1, Cop), jnp.bfloat16)
    ypad_ref[:, 0:1, :, :] = zr
    ypad_ref[:, Ho + 1:Ho + 2, :, :] = zr
    ypad_ref[:, 1:Ho + 1, 0:1, :] = zc
    ypad_ref[:, 1:Ho + 1, Wo + 1:Wo + 2, :] = zc
    ypad_ref[:, 1:Ho + 1, 1:Wo + 1, :] = y1.reshape(1, Ho, Wo, Cop)

    # conv2: 9 accumulated per-tap dots straight from the bf16 scratch (no im2col).
    acc = jnp.zeros((MT, Cop), jnp.float32)
    for dy in range(3):
        for dx in range(3):
            tap = ypad_ref[:, dy:dy + Ho, dx:dx + Wo, :].reshape(MT, Cop)
            acc = acc + jnp.dot(tap, w2_ref[dy * 3 + dx],
                                preferred_element_type=jnp.float32)

    s = jnp.sum(acc, axis=0, keepdims=True)
    m2 = jnp.sum((acc - s * (1.0 / MT)) ** 2, axis=0, keepdims=True)
    st2_ref[:, 0:1, :] = s.reshape(1, 1, Cop)
    st2_ref[:, 1:2, :] = m2.reshape(1, 1, Cop)

    acc2_ref[...] = acc.reshape(1, MT, Cop).astype(jnp.bfloat16)


def _epilogue_kernel(S, Ho, Wo, Cip, Cop, has_proj, *refs):
    """BN2 -> residual add (identity slice or 1x1 projection matmul) -> ReLU -> bf16."""
    if has_proj:
        acc2_ref, sc2_ref, sh2_ref, ph_ref, wp_ref, out_ref = refs
    else:
        acc2_ref, sc2_ref, sh2_ref, ph_ref, out_ref = refs
    MT = Ho * Wo

    y2 = acc2_ref[0].astype(jnp.float32) * sc2_ref[...] + sh2_ref[...]   # (MT, Cop)

    if has_proj:
        # Stride-2 residual source pixels are exactly phase (1,1) of the padded input.
        rsrc = ph_ref[S * S - 1:S * S, 0:Ho, 0:Wo, :].reshape(MT, Cip)
        res = jnp.dot(rsrc, wp_ref[...], preferred_element_type=jnp.float32)
    else:
        # Identity residual sliced from the (only) padded phase already in VMEM (bf16);
        # no separate f32 residual copy is shipped from HBM.  Cip == Cop here.
        res = ph_ref[0:1, 1:Ho + 1, 1:Wo + 1, :].reshape(MT, Cip).astype(jnp.float32)

    out = jnp.maximum(y2 + res, 0.0)
    out_ref[...] = out.reshape(1, MT, Cop).astype(jnp.bfloat16)


# --------------------------------------------------------------------------- wrapper

def _bn_scale_shift(st, gamma, beta, M, MT):
    """Combine per-tile (sum, centered M2) partials -> BN scale/shift, (1, Cop) f32."""
    sums = st[:, 0, :]                                   # (T, Cop)
    m2s = st[:, 1, :]
    mean = jnp.sum(sums, axis=0) / M
    mean_t = sums / MT
    m2 = jnp.sum(m2s, axis=0) + MT * jnp.sum((mean_t - mean[None, :]) ** 2, axis=0)
    var = m2 / M                                         # biased, matches BatchNorm
    scale = gamma * jax.lax.rsqrt(var + BN_EPS)
    shift = beta - mean * scale
    return scale.reshape(1, -1), shift.reshape(1, -1)


def residual_block_b(x_nchw, params, downsample):
    """Forward pass of Residual_blockB.  x_nchw: (N, Cin, H, W) float32.  Returns bf16."""
    w1, g1, b1 = params["w1"], params["g1"], params["b1"]
    w2, g2, b2 = params["w2"], params["g2"], params["b2"]
    wp = params["wp"]

    N, Cin, H, W = x_nchw.shape
    Cout = w1.shape[0]
    S = 2 if downsample else 1
    Ho = (H + 2 - 3) // S + 1
    Wo = (W + 2 - 3) // S + 1
    MT = Ho * Wo                      # rows per batch tile (NB = 1 sample per grid step)
    M = N * MT
    T = N                             # grid size

    Cip = _round_up(Cin, LANE)        # lane-dense channels (TODO(synk): fold-K packing)
    Cop = _round_up(Cout, LANE)

    # ---- preprocessing: single transpose, bf16 early, one fused channel+halo pad ----
    x = jnp.transpose(x_nchw, (0, 2, 3, 1)).astype(jnp.bfloat16)          # NHWC bf16
    xp = jnp.pad(x, ((0, 0), (1, 1), (1, 1), (0, Cip - Cin)))             # halo + chan pad

    # Phase-split (space-to-depth) so stride-S conv taps are contiguous in-kernel slices.
    Hp = Ho + (2 // S)
    Wp = Wo + (2 // S)
    if S == 1:
        phases = xp[:, None]                                              # (N,1,Hp,Wp,Cip)
    else:
        plist = []
        for py in range(S):
            for px in range(S):
                ph = xp[:, py::S, px::S, :][:, :Hp, :Wp, :]
                ph = jnp.pad(ph, ((0, 0), (0, Hp - ph.shape[1]),
                                  (0, Wp - ph.shape[2]), (0, 0)))
                plist.append(ph)
        phases = jnp.stack(plist, axis=1)                                 # (N,S*S,Hp,Wp,Cip)
    SS = S * S
    phases = phases.reshape(N * SS, Hp, Wp, Cip)

    def pack_w3x3(w, ci, cip, co, cop):
        wt = jnp.transpose(w, (2, 3, 1, 0))                               # (3,3,ci,co)
        wt = jnp.pad(wt, ((0, 0), (0, 0), (0, cip - ci), (0, cop - co)))
        return wt.reshape(9, cip, cop).astype(jnp.bfloat16)               # tap t = dy*3+dx

    w1_p = pack_w3x3(w1, Cin, Cip, Cout, Cop)
    w2_p = pack_w3x3(w2, Cout, Cop, Cout, Cop)

    def pack_vec(v):
        return jnp.pad(v.astype(jnp.float32), (0, Cop - Cout))            # (Cop,)

    g1_p, b1_p = pack_vec(g1), pack_vec(b1)
    g2_p, b2_p = pack_vec(g2), pack_vec(b2)

    if downsample:
        wp_t = jnp.transpose(wp, (2, 3, 1, 0)).reshape(Cin, Cout)
        wp_p = jnp.pad(wp_t, ((0, Cip - Cin), (0, Cop - Cout))).astype(jnp.bfloat16)

    par = lambda vmem: pltpu.CompilerParams(dimension_semantics=("parallel",),
                                            vmem_limit_bytes=vmem)

    # ---------------- K1: conv1 + per-tile BN1 partials ----------------
    tile1 = SS * Hp * Wp * Cip * 2 + 9 * Cip * Cop * 2 + MT * Cop * 2 + 2 * Cop * 4
    acc1, st1 = pl.pallas_call(
        functools.partial(_conv1_kernel, S, Ho, Wo, Cip, Cop),
        grid=(T,),
        in_specs=[
            pl.BlockSpec((SS, Hp, Wp, Cip), lambda n: (n, 0, 0, 0)),
            pl.BlockSpec((9, Cip, Cop), lambda n: (0, 0, 0)),
        ],
        out_specs=(
            pl.BlockSpec((1, MT, Cop), lambda n: (n, 0, 0)),
            pl.BlockSpec((1, 2, Cop), lambda n: (n, 0, 0)),
        ),
        out_shape=(
            jax.ShapeDtypeStruct((N, MT, Cop), jnp.bfloat16),
            jax.ShapeDtypeStruct((T, 2, Cop), jnp.float32),
        ),
        compiler_params=par(_vmem_limit(tile1, scratch_bytes=MT * Cop * 4 + MT * Cip * 2)),
    )(phases, w1_p)

    sc1, sh1 = _bn_scale_shift(st1, g1_p, b1_p, M, MT)

    # ---------------- K2: BN1+ReLU -> conv2 + per-tile BN2 partials ----------------
    tile2 = MT * Cop * 2 + 9 * Cop * Cop * 2 + MT * Cop * 2 + 2 * Cop * 4
    ypad_bytes = (Ho + 2) * (Wo + 2) * Cop * 2
    acc2, st2 = pl.pallas_call(
        functools.partial(_bnrelu_conv2_kernel, Ho, Wo, Cop),
        grid=(T,),
        in_specs=[
            pl.BlockSpec((1, MT, Cop), lambda n: (n, 0, 0)),
            pl.BlockSpec((1, Cop), lambda n: (0, 0)),
            pl.BlockSpec((1, Cop), lambda n: (0, 0)),
            pl.BlockSpec((9, Cop, Cop), lambda n: (0, 0, 0)),
        ],
        out_specs=(
            pl.BlockSpec((1, MT, Cop), lambda n: (n, 0, 0)),
            pl.BlockSpec((1, 2, Cop), lambda n: (n, 0, 0)),
        ),
        out_shape=(
            jax.ShapeDtypeStruct((N, MT, Cop), jnp.bfloat16),
            jax.ShapeDtypeStruct((T, 2, Cop), jnp.float32),
        ),
        scratch_shapes=[pltpu.VMEM((1, Ho + 2, Wo + 2, Cop), jnp.bfloat16)],
        compiler_params=par(_vmem_limit(tile2, scratch_bytes=ypad_bytes + MT * Cop * 4)),
    )(acc1, sc1, sh1, w2_p)

    sc2, sh2 = _bn_scale_shift(st2, g2_p, b2_p, M, MT)

    # ---------------- K3: BN2 -> residual -> ReLU -> bf16 output ----------------
    in_arrays = [acc2, sc2, sh2, phases]
    in_specs = [
        pl.BlockSpec((1, MT, Cop), lambda n: (n, 0, 0)),
        pl.BlockSpec((1, Cop), lambda n: (0, 0)),
        pl.BlockSpec((1, Cop), lambda n: (0, 0)),
        pl.BlockSpec((SS, Hp, Wp, Cip), lambda n: (n, 0, 0, 0)),
    ]
    tile3 = MT * Cop * 2 + 2 * Cop * 4 + SS * Hp * Wp * Cip * 2 + MT * Cop * 2
    if downsample:
        in_arrays.append(wp_p)
        in_specs.append(pl.BlockSpec((Cip, Cop), lambda n: (0, 0)))
        tile3 += Cip * Cop * 2

    out = pl.pallas_call(
        functools.partial(_epilogue_kernel, S, Ho, Wo, Cip, Cop, downsample),
        grid=(T,),
        in_specs=in_specs,
        out_specs=pl.BlockSpec((1, MT, Cop), lambda n: (n, 0, 0)),
        out_shape=jax.ShapeDtypeStruct((N, MT, Cop), jnp.bfloat16),
        compiler_params=par(_vmem_limit(tile3, scratch_bytes=MT * Cop * 4)),
    )(*in_arrays)

    out = out[:, :, :Cout].reshape(N, Ho, Wo, Cout)
    return jnp.transpose(out, (0, 3, 1, 2))                               # NCHW, bf16


# ---------------------------------------------------------------- params / reference

def init_params(key, in_c, out_c, downsample):
    """Deterministic synthetic parameters matching the PyTorch module's shapes."""
    k1, k2, k3 = jax.random.split(key, 3)
    w1 = jax.random.normal(k1, (out_c, in_c, 3, 3), jnp.float32) / (3.0 * in_c ** 0.5)
    w2 = jax.random.normal(k2, (out_c, out_c, 3, 3), jnp.float32) / (3.0 * out_c ** 0.5)
    if downsample:
        wp = jax.random.normal(k3, (out_c, in_c, 1, 1), jnp.float32) / (in_c ** 0.5)
    else:
        wp = jnp.zeros((out_c, in_c, 1, 1), jnp.float32)  # unused
    ones = jnp.ones((out_c,), jnp.float32)
    zeros = jnp.zeros((out_c,), jnp.float32)
    return {"w1": w1, "g1": ones, "b1": zeros,
            "w2": w2, "g2": ones, "b2": zeros, "wp": wp}


def reference(x, p, downsample):
    """Pure-JAX f32 reference mirroring the PyTorch forward (training-mode BatchNorm)."""
    stride = 2 if downsample else 1

    def conv(x, w, s, pad):
        return jax.lax.conv_general_dilated(
            x, w, (s, s), ((pad, pad), (pad, pad)),
            dimension_numbers=("NCHW", "OIHW", "NCHW"))

    def bn(x, g, b):
        mu = x.mean(axis=(0, 2, 3), keepdims=True)
        var = ((x - mu) ** 2).mean(axis=(0, 2, 3), keepdims=True)
        return ((x - mu) / jnp.sqrt(var + BN_EPS)
                * g[None, :, None, None] + b[None, :, None, None])

    out = jnp.maximum(bn(conv(x, p["w1"], stride, 1), p["g1"], p["b1"]), 0.0)
    out = bn(conv(out, p["w2"], 1, 1), p["g2"], p["b2"])
    res = conv(x, p["wp"], stride, 0) if downsample else x
    return jnp.maximum(out + res, 0.0)


if __name__ == "__main__":
    key = jax.random.PRNGKey(0)
    kx, kp1, kp2 = jax.random.split(key, 3)
    x = jax.random.normal(kx, (2, 4, 16, 16), jnp.float32)

    # Tolerance: bf16 MXU operands, bf16 HBM intermediates and bf16 outputs end-to-end
    # (f32 accumulation / BN statistics) vs. a pure-f32 reference.
    ATOL = RTOL = 6e-2

    # Case 1: identity shortcut (in_channels == out_channels, no downsample)
    p1 = init_params(kp1, 4, 4, downsample=False)
    y1 = residual_block_b(x, p1, downsample=False)
    jax.block_until_ready(y1)
    assert y1.shape == (2, 4, 16, 16)
    r1 = reference(x, p1, False)
    assert bool(jnp.allclose(y1.astype(jnp.float32), r1, atol=ATOL, rtol=RTOL)), \
        float(jnp.max(jnp.abs(y1.astype(jnp.float32) - r1)))

    # Case 2: stride-2 downsample with 1x1 projection shortcut
    p2 = init_params(kp2, 4, 8, downsample=True)
    y2 = residual_block_b(x, p2, downsample=True)
    jax.block_until_ready(y2)
    assert y2.shape == (2, 8, 8, 8)
    r2 = reference(x, p2, True)
    assert bool(jnp.allclose(y2.astype(jnp.float32), r2, atol=ATOL, rtol=RTOL)), \
        float(jnp.max(jnp.abs(y2.astype(jnp.float32) - r2)))

    print("KERNEL_OK")
</pallas_src>

<mosaic_0001>
module attributes {stable_mosaic.version = 11 : i64} {
  func.func @_conv1_kernel(%arg0: i32, %arg1: memref<1x18x18x128xbf16, #tpu.memory_space<vmem>>, %arg2: memref<9x128x128xbf16, #tpu.memory_space<vmem>>, %arg3: memref<1x256x128xbf16, #tpu.memory_space<vmem>>, %arg4: memref<1x2x128xf32, #tpu.memory_space<vmem>>) attributes {dimension_semantics = [#tpu.dimension_semantics<parallel>], iteration_bounds = array<i64: 2>, scalar_prefetch = 0 : i64, scratch_operands = 0 : i64, tpu.core_type = #tpu.core_type<tc>, window_params = [{transform_indices = @transform_0, window_bounds = array<i64: 1, 18, 18, 128>}, {pipeline_mode = #tpu.pipeline_mode<synchronous>, transform_indices = @transform_1, window_bounds = array<i64: 9, 128, 128>}, {transform_indices = @transform_2, window_bounds = array<i64: 1, 256, 128>}, {transform_indices = @transform_3, window_bounds = array<i64: 1, 2, 128>}]} {
    %cst = arith.constant 0.000000e+00 : f32
    %0 = vector.broadcast %cst : f32 to vector<256x128xf32>
    %c0 = arith.constant 0 : index
    %c0_0 = arith.constant 0 : index
    %c0_1 = arith.constant 0 : index
    %c0_2 = arith.constant 0 : index
    %1 = vector.load %arg1[%c0, %c0_0, %c0_1, %c0_2] : memref<1x18x18x128xbf16, #tpu.memory_space<vmem>>, vector<1x16x16x128xbf16>
    %2 = vector.shape_cast %1 : vector<1x16x16x128xbf16> to vector<256x128xbf16>
    %c0_3 = arith.constant 0 : index
    %c0_4 = arith.constant 0 : index
    %c0_5 = arith.constant 0 : index
    %3 = vector.load %arg2[%c0_3, %c0_4, %c0_5] : memref<9x128x128xbf16, #tpu.memory_space<vmem>>, vector<1x128x128xbf16>
    %4 = vector.shape_cast %3 : vector<1x128x128xbf16> to vector<128x128xbf16>
    %cst_6 = arith.constant dense<0.000000e+00> : vector<256x128xf32>
    %5 = tpu.matmul %2, %4, %cst_6 {dimension_numbers = #tpu.dot_dimension_numbers<[1], [0], [0], [1], [0, 0, 1, 1], [], []>} : vector<256x128xbf16>, vector<128x128xbf16>, vector<256x128xf32> -> vector<256x128xf32>
    %6 = arith.addf %0, %5 : vector<256x128xf32>
    %c0_7 = arith.constant 0 : index
    %c0_8 = arith.constant 0 : index
    %c1 = arith.constant 1 : index
    %c0_9 = arith.constant 0 : index
    %7 = vector.load %arg1[%c0_7, %c0_8, %c1, %c0_9] : memref<1x18x18x128xbf16, #tpu.memory_space<vmem>>, vector<1x16x16x128xbf16>
    %8 = vector.shape_cast %7 : vector<1x16x16x128xbf16> to vector<256x128xbf16>
    %c1_10 = arith.constant 1 : index
    %c0_11 = arith.constant 0 : index
    %c0_12 = arith.constant 0 : index
    %9 = vector.load %arg2[%c1_10, %c0_11, %c0_12] : memref<9x128x128xbf16, #tpu.memory_space<vmem>>, vector<1x128x128xbf16>
    %10 = vector.shape_cast %9 : vector<1x128x128xbf16> to vector<128x128xbf16>
    %cst_13 = arith.constant dense<0.000000e+00> : vector<256x128xf32>
    %11 = tpu.matmul %8, %10, %cst_13 {dimension_numbers = #tpu.dot_dimension_numbers<[1], [0], [0], [1], [0, 0, 1, 1], [], []>} : vector<256x128xbf16>, vector<128x128xbf16>, vector<256x128xf32> -> vector<256x128xf32>
    %12 = arith.addf %6, %11 : vector<256x128xf32>
    %c0_14 = arith.constant 0 : index
    %c0_15 = arith.constant 0 : index
    %c2 = arith.constant 2 : index
    %c0_16 = arith.constant 0 : index
    %13 = vector.load %arg1[%c0_14, %c0_15, %c2, %c0_16] : memref<1x18x18x128xbf16, #tpu.memory_space<vmem>>, vector<1x16x16x128xbf16>
    %14 = vector.shape_cast %13 : vector<1x16x16x128xbf16> to vector<256x128xbf16>
    %c2_17 = arith.constant 2 : index
    %c0_18 = arith.constant 0 : index
    %c0_19 = arith.constant 0 : index
    %15 = vector.load %arg2[%c2_17, %c0_18, %c0_19] : memref<9x128x128xbf16, #tpu.memory_space<vmem>>, vector<1x128x128xbf16>
    %16 = vector.shape_cast %15 : vector<1x128x128xbf16> to vector<128x128xbf16>
    %cst_20 = arith.constant dense<0.000000e+00> : vector<256x128xf32>
    %17 = tpu.matmul %14, %16, %cst_20 {dimension_numbers = #tpu.dot_dimension_numbers<[1], [0], [0], [1], [0, 0, 1, 1], [], []>} : vector<256x128xbf16>, vector<128x128xbf16>, vector<256x128xf32> -> vector<256x128xf32>
    %18 = arith.addf %12, %17 : vector<256x128xf32>
    %c0_21 = arith.constant 0 : index
    %c1_22 = arith.constant 1 : index
    %c0_23 = arith.constant 0 : index
    %c0_24 = arith.constant 0 : index
    %19 = vector.load %arg1[%c0_21, %c1_22, %c0_23, %c0_24] : memref<1x18x18x128xbf16, #tpu.memory_space<vmem>>, vector<1x16x16x128xbf16>
    %20 = vector.shape_cast %19 : vector<1x16x16x128xbf16> to vector<256x128xbf16>
    %c3 = arith.constant 3 : index
    %c0_25 = arith.constant 0 : index
    %c0_26 = arith.constant 0 : index
    %21 = vector.load %arg2[%c3, %c0_25, %c0_26] : memref<9x128x128xbf16, #tpu.memory_space<vmem>>, vector<1x128x128xbf16>
    %22 = vector.shape_cast %21 : vector<1x128x128xbf16> to vector<128x128xbf16>
    %cst_27 = arith.constant dense<0.000000e+00> : vector<256x128xf32>
    %23 = tpu.matmul %20, %22, %cst_27 {dimension_numbers = #tpu.dot_dimension_numbers<[1], [0], [0], [1], [0, 0, 1, 1], [], []>} : vector<256x128xbf16>, vector<128x128xbf16>, vector<256x128xf32> -> vector<256x128xf32>
    %24 = arith.addf %18, %23 : vector<256x128xf32>
    %c0_28 = arith.constant 0 : index
    %c1_29 = arith.constant 1 : index
    %c1_30 = arith.constant 1 : index
    %c0_31 = arith.constant 0 : index
    %25 = vector.load %arg1[%c0_28, %c1_29, %c1_30, %c0_31] : memref<1x18x18x128xbf16, #tpu.memory_space<vmem>>, vector<1x16x16x128xbf16>
    %26 = vector.shape_cast %25 : vector<1x16x16x128xbf16> to vector<256x128xbf16>
    %c4 = arith.constant 4 : index
    %c0_32 = arith.constant 0 : index
    %c0_33 = arith.constant 0 : index
    %27 = vector.load %arg2[%c4, %c0_32, %c0_33] : memref<9x128x128xbf16, #tpu.memory_space<vmem>>, vector<1x128x128xbf16>
    %28 = vector.shape_cast %27 : vector<1x128x128xbf16> to vector<128x128xbf16>
    %cst_34 = arith.constant dense<0.000000e+00> : vector<256x128xf32>
    %29 = tpu.matmul %26, %28, %cst_34 {dimension_numbers = #tpu.dot_dimension_numbers<[1], [0], [0], [1], [0, 0, 1, 1], [], []>} : vector<256x128xbf16>, vector<128x128xbf16>, vector<256x128xf32> -> vector<256x128xf32>
    %30 = arith.addf %24, %29 : vector<256x128xf32>
    %c0_35 = arith.constant 0 : index
    %c1_36 = arith.constant 1 : index
    %c2_37 = arith.constant 2 : index
    %c0_38 = arith.constant 0 : index
    %31 = vector.load %arg1[%c0_35, %c1_36, %c2_37, %c0_38] : memref<1x18x18x128xbf16, #tpu.memory_space<vmem>>, vector<1x16x16x128xbf16>
    %32 = vector.shape_cast %31 : vector<1x16x16x128xbf16> to vector<256x128xbf16>
    %c5 = arith.constant 5 : index
    %c0_39 = arith.constant 0 : index
    %c0_40 = arith.constant 0 : index
    %33 = vector.load %arg2[%c5, %c0_39, %c0_40] : memref<9x128x128xbf16, #tpu.memory_space<vmem>>, vector<1x128x128xbf16>
    %34 = vector.shape_cast %33 : vector<1x128x128xbf16> to vector<128x128xbf16>
    %cst_41 = arith.constant dense<0.000000e+00> : vector<256x128xf32>
    %35 = tpu.matmul %32, %34, %cst_41 {dimension_numbers = #tpu.dot_dimension_numbers<[1], [0], [0], [1], [0, 0, 1, 1], [], []>} : vector<256x128xbf16>, vector<128x128xbf16>, vector<256x128xf32> -> vector<256x128xf32>
    %36 = arith.addf %30, %35 : vector<256x128xf32>
    %c0_42 = arith.constant 0 : index
    %c2_43 = arith.constant 2 : index
    %c0_44 = arith.constant 0 : index
    %c0_45 = arith.constant 0 : index
    %37 = vector.load %arg1[%c0_42, %c2_43, %c0_44, %c0_45] : memref<1x18x18x128xbf16, #tpu.memory_space<vmem>>, vector<1x16x16x128xbf16>
    %38 = vector.shape_cast %37 : vector<1x16x16x128xbf16> to vector<256x128xbf16>
    %c6 = arith.constant 6 : index
    %c0_46 = arith.constant 0 : index
    %c0_47 = arith.constant 0 : index
    %39 = vector.load %arg2[%c6, %c0_46, %c0_47] : memref<9x128x128xbf16, #tpu.memory_space<vmem>>, vector<1x128x128xbf16>
    %40 = vector.shape_cast %39 : vector<1x128x128xbf16> to vector<128x128xbf16>
    %cst_48 = arith.constant dense<0.000000e+00> : vector<256x128xf32>
    %41 = tpu.matmul %38, %40, %cst_48 {dimension_numbers = #tpu.dot_dimension_numbers<[1], [0], [0], [1], [0, 0, 1, 1], [], []>} : vector<256x128xbf16>, vector<128x128xbf16>, vector<256x128xf32> -> vector<256x128xf32>
    %42 = arith.addf %36, %41 : vector<256x128xf32>
    %c0_49 = arith.constant 0 : index
    %c2_50 = arith.constant 2 : index
    %c1_51 = arith.constant 1 : index
    %c0_52 = arith.constant 0 : index
    %43 = vector.load %arg1[%c0_49, %c2_50, %c1_51, %c0_52] : memref<1x18x18x128xbf16, #tpu.memory_space<vmem>>, vector<1x16x16x128xbf16>
    %44 = vector.shape_cast %43 : vector<1x16x16x128xbf16> to vector<256x128xbf16>
    %c7 = arith.constant 7 : index
    %c0_53 = arith.constant 0 : index
    %c0_54 = arith.constant 0 : index
    %45 = vector.load %arg2[%c7, %c0_53, %c0_54] : memref<9x128x128xbf16, #tpu.memory_space<vmem>>, vector<1x128x128xbf16>
    %46 = vector.shape_cast %45 : vector<1x128x128xbf16> to vector<128x128xbf16>
    %cst_55 = arith.constant dense<0.000000e+00> : vector<256x128xf32>
    %47 = tpu.matmul %44, %46, %cst_55 {dimension_numbers = #tpu.dot_dimension_numbers<[1], [0], [0], [1], [0, 0, 1, 1], [], []>} : vector<256x128xbf16>, vector<128x128xbf16>, vector<256x128xf32> -> vector<256x128xf32>
    %48 = arith.addf %42, %47 : vector<256x128xf32>
    %c0_56 = arith.constant 0 : index
    %c2_57 = arith.constant 2 : index
    %c2_58 = arith.constant 2 : index
    %c0_59 = arith.constant 0 : index
    %49 = vector.load %arg1[%c0_56, %c2_57, %c2_58, %c0_59] : memref<1x18x18x128xbf16, #tpu.memory_space<vmem>>, vector<1x16x16x128xbf16>
    %50 = vector.shape_cast %49 : vector<1x16x16x128xbf16> to vector<256x128xbf16>
    %c8 = arith.constant 8 : index
    %c0_60 = arith.constant 0 : index
    %c0_61 = arith.constant 0 : index
    %51 = vector.load %arg2[%c8, %c0_60, %c0_61] : memref<9x128x128xbf16, #tpu.memory_space<vmem>>, vector<1x128x128xbf16>
    %52 = vector.shape_cast %51 : vector<1x128x128xbf16> to vector<128x128xbf16>
    %cst_62 = arith.constant dense<0.000000e+00> : vector<256x128xf32>
    %53 = tpu.matmul %50, %52, %cst_62 {dimension_numbers = #tpu.dot_dimension_numbers<[1], [0], [0], [1], [0, 0, 1, 1], [], []>} : vector<256x128xbf16>, vector<128x128xbf16>, vector<256x128xf32> -> vector<256x128xf32>
    %54 = arith.addf %48, %53 : vector<256x128xf32>
    %cst_63 = arith.constant dense<0.000000e+00> : vector<128xf32>
    %55 = vector.multi_reduction <add>, %54, %cst_63 [0] : vector<256x128xf32> to vector<128xf32>
    %56 = vector.shape_cast %55 : vector<128xf32> to vector<1x128xf32>
    %cst_64 = arith.constant 3.906250e-03 : f32
    %57 = vector.broadcast %cst_64 : f32 to vector<1x128xf32>
    %58 = arith.mulf %56, %57 : vector<1x128xf32>
    %59 = vector.broadcast %58 : vector<1x128xf32> to vector<256x128xf32>
    %60 = arith.subf %54, %59 : vector<256x128xf32>
    %61 = arith.mulf %60, %60 : vector<256x128xf32>
    %cst_65 = arith.constant dense<0.000000e+00> : vector<128xf32>
    %62 = vector.multi_reduction <add>, %61, %cst_65 [0] : vector<256x128xf32> to vector<128xf32>
    %63 = vector.shape_cast %62 : vector<128xf32> to vector<1x128xf32>
    %64 = vector.shape_cast %56 : vector<1x128xf32> to vector<1x1x128xf32>
    %c0_66 = arith.constant 0 : index
    %c0_67 = arith.constant 0 : index
    %c0_68 = arith.constant 0 : index
    %65 = vector.load %arg4[%c0_66, %c0_67, %c0_68] : memref<1x2x128xf32, #tpu.memory_space<vmem>>, vector<1x1x128xf32>
    tpu.vector_store %arg4[%c0_66, %c0_67, %c0_68], %64 {strides = array<i32>} : memref<1x2x128xf32, #tpu.memory_space<vmem>>, vector<1x1x128xf32>,
    %66 = vector.shape_cast %63 : vector<1x128xf32> to vector<1x1x128xf32>
    %c0_69 = arith.constant 0 : index
    %c1_70 = arith.constant 1 : index
    %c0_71 = arith.constant 0 : index
    %67 = vector.load %arg4[%c0_69, %c1_70, %c0_71] : memref<1x2x128xf32, #tpu.memory_space<vmem>>, vector<1x1x128xf32>
    tpu.vector_store %arg4[%c0_69, %c1_70, %c0_71], %66 {strides = array<i32>} : memref<1x2x128xf32, #tpu.memory_space<vmem>>, vector<1x1x128xf32>,
    %68 = vector.shape_cast %54 : vector<256x128xf32> to vector<1x256x128xf32>
    %69 = arith.truncf %68 : vector<1x256x128xf32> to vector<1x256x128xbf16>
    %c0_72 = arith.constant 0 : index
    %c0_73 = arith.constant 0 : index
    %c0_74 = arith.constant 0 : index
    %70 = vector.load %arg3[%c0_72, %c0_73, %c0_74] : memref<1x256x128xbf16, #tpu.memory_space<vmem>>, vector<1x256x128xbf16>
    tpu.vector_store %arg3[%c0_72, %c0_73, %c0_74], %69 {strides = array<i32>} : memref<1x256x128xbf16, #tpu.memory_space<vmem>>, vector<1x256x128xbf16>,
    return
  }
  func.func @transform_0(%arg0: i32) -> (i32, i32, i32, i32) {
    %c0_i32 = arith.constant 0 : i32
    %c0_i32_0 = arith.constant 0 : i32
    %c0_i32_1 = arith.constant 0 : i32
    %c0_i32_2 = arith.constant 0 : i32
    return %arg0, %c0_i32, %c0_i32_0, %c0_i32_1 : i32, i32, i32, i32
  }
  func.func @transform_1(%arg0: i32) -> (i32, i32, i32) {
    %c0_i32 = arith.constant 0 : i32
    %c0_i32_0 = arith.constant 0 : i32
    %c0_i32_1 = arith.constant 0 : i32
    %c0_i32_2 = arith.constant 0 : i32
    return %c0_i32, %c0_i32_0, %c0_i32_1 : i32, i32, i32
  }
  func.func @transform_2(%arg0: i32) -> (i32, i32, i32) {
    %c0_i32 = arith.constant 0 : i32
    %c0_i32_0 = arith.constant 0 : i32
    %c0_i32_1 = arith.constant 0 : i32
    return %arg0, %c0_i32, %c0_i32_0 : i32, i32, i32
  }
  func.func @transform_3(%arg0: i32) -> (i32, i32, i32) {
    %c0_i32 = arith.constant 0 : i32
    %c0_i32_0 = arith.constant 0 : i32
    %c0_i32_1 = arith.constant 0 : i32
    return %arg0, %c0_i32, %c0_i32_0 : i32, i32, i32
  }
}

</mosaic_0001>

<llo_original>
// kernel: tpu_custom_call.1
$region0: #{tpu_custom_call.1}
  #allocation0 [shape = 'u32[]', space=smem, size = 0x4, offset = 0x4, fixed_abs, tag = 'smem constant byte address 0x4 - core index']
  #allocation1 [shape = 'u32[144,128]{1,0:T(1,128)}', space=vmem, size = 0x12000, scoped, tag = 'internal scratch']
  %s0 = inlined_call_operand.vmem [shape: bf16[2,18,18,128], index: 0, kind: input, shape index: {}]
  %s1 = inlined_call_operand.vmem [shape: bf16[9,128,128], index: 1, kind: input, shape index: {}]
  %s2 = inlined_call_operand.hbm [shape: bf16[2,256,128], index: 2, kind: output, shape index: {0}]
  %s3 = inlined_call_operand.hbm [shape: f32[2,2,128], index: 3, kind: output, shape index: {1}]
  %4 = xla_tuple %s2, %s3
  %s5 = sld [smem:[#allocation0]]
  $region49: #{tpu_custom_call.1} parent=0
    _
  %s7 = ssub.s32 1, %s5
  %s8 = scalar_select 0, %s7, %s5
  $region1: #{tpu_custom_call.1} parent=0
    #allocation2 [shape = 'u8[131072]{0}', space=vmem, size = 0x20000, scoped, tag = 'output window, operand 0']
    #allocation3 [shape = 's32[2]{0}', space=sflag, size = 0x8, scoped, tag = 'scoped memory for tpu_custom_call.1']
    #allocation4 [shape = 'u8[2048]{0}', space=vmem, size = 0x800, scoped, tag = 'output window, operand 1']
    #allocation5 [shape = 's32[2]{0}', space=sflag, size = 0x8, scoped, tag = 'scoped memory for tpu_custom_call.1']
    %9 = vsyncpa [#allocation3], 0
    %s10 = scalar_lea.sflag [#allocation3], 1
    %11 = vsyncpa %s10, 0
    %12 = vsyncpa [#allocation5], 0
    %s13 = scalar_lea.sflag [#allocation5], 1
    %14 = vsyncpa %s13, 0
    loop: start=0, step=1, limit=4
    $region2: #{tpu_custom_call.1} parent=1 // loop_pre_header
      _
    $region3: #{tpu_custom_call.1} parent=1 // loop_header
      %s16 = sphi 0, %s20
      %p17 = scmp.ge.s32.totalorder %s16, 4
      %s26 = sphi 0, %s28
      %s29 = sphi 0, %s26
      %s30 = sphi 0, %s29
      %s46 = sphi 0, %s30
      %s50 = sphi 0, %s50
      %s52 = sphi 0, %s50
      %s53 = sphi 0, %s52
      %s67 = sphi 0, %s53
      %s73 = sphi 0, %s75
      %s76 = sphi 0, %s73
      %s77 = sphi 0, %s76
      %s93 = sphi 0, %s77
      %s99 = sphi 0, %s101
      %s102 = sphi 0, %s99
      %s103 = sphi 0, %s102
      %s119 = sphi 0, %s103
    $region4: #{tpu_custom_call.1} parent=1 // loop_header_branch
      %19 = sbr.rel (%p17) target = $region8
    $region5: #{tpu_custom_call.1} parent=1 // loop_body
      %s21 = ssub.s32 %s16, 1
      %s22 = ssub.s32 %s16, 2
      %s23 = sadd.s32 %s16, 1
      %s24 = ssub.s32 %s16, %s23
      %p25 = scmp.eq.s32.totalorder %s24, 0
      %s27 = sadd.s32 %s26, 1
      %s28 = scalar_select %p25, %s26, %s27
      %p31 = pneg %p25
      %p32 = scmp.eq.s32.totalorder %s16, 1
      %p33 = por %p31, %p32
      %p34 = scmp.ne.s32.totalorder %s26, %s29
      %p35 = scmp.eq.s32.totalorder %s16, 0
      %p36 = por %p34, %p35
      %p37 = scmp.ne.s32.totalorder %s26, %s29
      %p38 = scmp.eq.s32.totalorder %s21, 1
      %p39 = por %p37, %p38
      %p40 = scmp.ne.s32.totalorder %s29, %s30
      %p41 = scmp.eq.s32.totalorder %s21, 0
      %p42 = por %p40, %p41
      %p43 = scmp.ne.s32.totalorder %s29, %s30
      %p44 = scmp.eq.s32.totalorder %s22, 1
      %p45 = por %p43, %p44
      %p47 = scmp.ne.s32.totalorder %s30, %s46
      %p48 = scmp.eq.s32.totalorder %s22, 0
      %p49 = por %p47, %p48
      %s51 = sadd.s32 %s50, 1
      %p54 = scmp.eq.s32.totalorder %s16, 1
      %p55 = scmp.ne.s32.totalorder %s50, %s52
      %p56 = scmp.eq.s32.totalorder %s16, 0
      %p57 = por %p55, %p56
      %p58 = scmp.ne.s32.totalorder %s50, %s52
      %p59 = scmp.eq.s32.totalorder %s21, 1
      %p60 = por %p58, %p59
      %p61 = scmp.ne.s32.totalorder %s52, %s53
      %p62 = scmp.eq.s32.totalorder %s21, 0
      %p63 = por %p61, %p62
      %p64 = scmp.ne.s32.totalorder %s52, %s53
      %p65 = scmp.eq.s32.totalorder %s22, 1
      %p66 = por %p64, %p65
      %p68 = scmp.ne.s32.totalorder %s53, %s67
      %p69 = scmp.eq.s32.totalorder %s22, 0
      %p70 = por %p68, %p69
      %s71 = ssub.s32 %s16, %s23
      %p72 = scmp.eq.s32.totalorder %s71, 0
      %s74 = sadd.s32 %s73, 1
      %s75 = scalar_select %p72, %s73, %s74
      %p78 = pneg %p72
      %p79 = scmp.eq.s32.totalorder %s16, 1
      %p80 = por %p78, %p79
      %p81 = scmp.ne.s32.totalorder %s73, %s76
      %p82 = scmp.eq.s32.totalorder %s16, 0
      %p83 = por %p81, %p82
      %p84 = scmp.ne.s32.totalorder %s73, %s76
      %p85 = scmp.eq.s32.totalorder %s21, 1
      %p86 = por %p84, %p85
      %p87 = scmp.ne.s32.totalorder %s76, %s77
      %p88 = scmp.eq.s32.totalorder %s21, 0
      %p89 = por %p87, %p88
      %p90 = scmp.ne.s32.totalorder %s76, %s77
      %p91 = scmp.eq.s32.totalorder %s22, 1
      %p92 = por %p90, %p91
      %p94 = scmp.ne.s32.totalorder %s77, %s93
      %p95 = scmp.eq.s32.totalorder %s22, 0
      %p96 = por %p94, %p95
      %s97 = ssub.s32 %s16, %s23
      %p98 = scmp.eq.s32.totalorder %s97, 0
      %s100 = sadd.s32 %s99, 1
      %s101 = scalar_select %p98, %s99, %s100
      %p104 = pneg %p98
      %p105 = scmp.eq.s32.totalorder %s16, 1
      %p106 = por %p104, %p105
      %p107 = scmp.ne.s32.totalorder %s99, %s102
      %p108 = scmp.eq.s32.totalorder %s16, 0
      %p109 = por %p107, %p108
      %p110 = scmp.ne.s32.totalorder %s99, %s102
      %p111 = scmp.eq.s32.totalorder %s21, 1
      %p112 = por %p110, %p111
      %p113 = scmp.ne.s32.totalorder %s102, %s103
      %p114 = scmp.eq.s32.totalorder %s21, 0
      %p115 = por %p113, %p114
      %p116 = scmp.ne.s32.totalorder %s102, %s103
      %p117 = scmp.eq.s32.totalorder %s22, 1
      %p118 = por %p116, %p117
      %p120 = scmp.ne.s32.totalorder %s103, %s119
      %p121 = scmp.eq.s32.totalorder %s22, 0
      %p122 = por %p120, %p121
      %p123 = scmp.le.s32.totalorder 1, %s16
      %p124 = scmp.lt.s32.totalorder %s16, 3
      %p125 = pnand %p123, %p124
      %p126 = pneg %p125
      // Predicated region
      $region9: #{tpu_custom_call.1} parent=5 // pred_check
        _
      $region10: #{tpu_custom_call.1} parent=5 // pred_check_branch
        %128 = sbr.rel (%p125) target = $region12
      $region11: #{tpu_custom_call.1} parent=5 // pred_region
        %s129 = ssub.s32 %s16, 1
        // Predicated region
        $region13: #{tpu_custom_call.1} parent=11 // pred_check
          %p130 = pneg %p63
        $region14: #{tpu_custom_call.1} parent=11 // pred_check_branch
          %132 = sbr.rel (%p130) target = $region16
        $region15: #{tpu_custom_call.1} parent=11 // pred_region
          _
        $region16: #{tpu_custom_call.1} parent=11 // pred_fallthru
          _
      $region12: #{tpu_custom_call.1} parent=5 // pred_fallthru
        _
      %p133 = scmp.lt.s32.totalorder %s16, 2
      // Predicated region
      $region17: #{tpu_custom_call.1} parent=5 // pred_check
        %p134 = pneg %p133
      $region18: #{tpu_custom_call.1} parent=5 // pred_check_branch
        %136 = sbr.rel (%p134) target = $region20
      $region19: #{tpu_custom_call.1} parent=5 // pred_region
        // Predicated region
        $region21: #{tpu_custom_call.1} parent=19 // pred_check
          %p137 = pneg %p36
        $region22: #{tpu_custom_call.1} parent=19 // pred_check_branch
          %139 = sbr.rel (%p137) target = $region24
        $region23: #{tpu_custom_call.1} parent=19 // pred_region
          %p140 = scmp.lt.s32.totalorder %s16, 1
          %s141 = scalar_select %p140, %s16, 1
          %s142 = smul.addr %s141, 54
          %s143 = smul.addr %s142, 4
          %s144 = scalar_lea.vmem %s0, %s143
        $region24: #{tpu_custom_call.1} parent=19 // pred_fallthru
          _
      $region20: #{tpu_custom_call.1} parent=5 // pred_fallthru
        _
      %p145 = scmp.le.s32.totalorder 1, %s16
      %p146 = scmp.lt.s32.totalorder %s16, 3
      %p147 = pnand %p145, %p146
      %p148 = pneg %p147
      // Predicated region
      $region25: #{tpu_custom_call.1} parent=5 // pred_check
        _
      $region26: #{tpu_custom_call.1} parent=5 // pred_check_branch
        %150 = sbr.rel (%p147) target = $region28
      $region27: #{tpu_custom_call.1} parent=5 // pred_region
        %s151 = ssub.s32 %s16, 1
        %p152 = scmp.lt.s32.totalorder %s21, 1
        %s153 = scalar_select %p152, %s21, 1
        %s154 = smul.addr %s153, 54
        %s155 = smul.addr %s154, 4
        %s156 = scalar_lea.vmem %s0, %s155
        %p157 = pneg %p42
        %p158 = pneg %p39
        %p159 = pneg %p63
        %p160 = pneg %p60
        %p161 = pneg %p89
        %p162 = pneg %p86
        %s163 = sand.u32 %s76, 1
        %s164 = scalar_lea.sflag [#allocation3], %s163
        %s165 = sand.u32 %s76, 1
        %s166 = smul.addr %s165, 128
        %s167 = scalar_lea.vmem [#allocation2], %s166
        %p168 = pneg %p115
        %p169 = pneg %p112
        %s170 = sand.u32 %s102, 1
        %s171 = scalar_lea.sflag [#allocation5], %s170
        %s172 = sand.u32 %s102, 1
        %s173 = smul.addr %s172, 2
        %s174 = scalar_lea.vmem [#allocation4], %s173
        %p175 = scmp.lt.s32.totalorder %s21, 1
        %s176 = scalar_select %p175, %s21, 1
        %s177 = smul.addr %s176, 54
        %s178 = smul.addr %s177, 4
        %s179 = scalar_lea.vmem %s0, %s178
        %v181 = vld [vmem:[%s179] sm:$0xf]
        %v182 = vld [vmem:[%s179 + $0x4] sm:$0xf]
        %v183 = vld [vmem:[%s179 + $0xc] sm:$0xf]
        %v184 = vld [vmem:[%s179 + $0x10] sm:$0xf]
        %v185 = vld [vmem:[%s179 + $0x18] sm:$0xf]
        %v186 = vld [vmem:[%s179 + $0x1c] sm:$0xf]
        %v187 = vld [vmem:[%s179 + $0x24] sm:$0xf]
        %v188 = vld [vmem:[%s179 + $0x28] sm:$0xf]
        %v189 = vld [vmem:[%s179 + $0x30] sm:$0xf]
        %v190 = vld [vmem:[%s179 + $0x34] sm:$0xf]
        %v191 = vld [vmem:[%s179 + $0x3c] sm:$0xf]
        %v192 = vld [vmem:[%s179 + $0x40] sm:$0xf]
        %v193 = vld [vmem:[%s179 + $0x48] sm:$0xf]
        %v194 = vld [vmem:[%s179 + $0x4c] sm:$0xf]
        %v195 = vld [vmem:[%s179 + $0x54] sm:$0xf]
        %v196 = vld [vmem:[%s179 + $0x58] sm:$0xf]
        %v197 = vld [vmem:[%s179 + $0x60] sm:$0xf]
        %v198 = vld [vmem:[%s179 + $0x64] sm:$0xf]
        %v199 = vld [vmem:[%s179 + $0x6c] sm:$0xf]
        %v200 = vld [vmem:[%s179 + $0x70] sm:$0xf]
        %v201 = vld [vmem:[%s179 + $0x78] sm:$0xf]
        %v202 = vld [vmem:[%s179 + $0x7c] sm:$0xf]
        %v203 = vld [vmem:[%s179 + $0x84] sm:$0xf]
        %v204 = vld [vmem:[%s179 + $0x88] sm:$0xf]
        %v205 = vld [vmem:[%s179 + $0x90] sm:$0xf]
        %v206 = vld [vmem:[%s179 + $0x94] sm:$0xf]
        %v207 = vld [vmem:[%s179 + $0x9c] sm:$0xf]
        %v208 = vld [vmem:[%s179 + $0xa0] sm:$0xf]
        %v209 = vld [vmem:[%s179 + $0xa8] sm:$0xf]
        %v210 = vld [vmem:[%s179 + $0xac] sm:$0xf]
        %v211 = vld [vmem:[%s179 + $0xb4] sm:$0xf]
        %v212 = vld [vmem:[%s179 + $0xb8] sm:$0xf]
        %v213 = vld [vmem:[%s1] sm:$0xf]
        %v214 = vld [vmem:[%s1 + $0x4] sm:$0xf]
        %v215 = vld [vmem:[%s1 + $0x8] sm:$0xf]
        %v216 = vld [vmem:[%s1 + $0xc] sm:$0xf]
        %v217 = vld [vmem:[%s1 + $0x10] sm:$0xf]
        %v218 = vld [vmem:[%s1 + $0x14] sm:$0xf]
        %v219 = vld [vmem:[%s1 + $0x18] sm:$0xf]
        %v220 = vld [vmem:[%s1 + $0x1c] sm:$0xf]
        %v221 = vld [vmem:[%s1 + $0x20] sm:$0xf]
        %v222 = vld [vmem:[%s1 + $0x24] sm:$0xf]
        %v223 = vld [vmem:[%s1 + $0x28] sm:$0xf]
        %v224 = vld [vmem:[%s1 + $0x2c] sm:$0xf]
        %v225 = vld [vmem:[%s1 + $0x30] sm:$0xf]
        %v226 = vld [vmem:[%s1 + $0x34] sm:$0xf]
        %v227 = vld [vmem:[%s1 + $0x38] sm:$0xf]
        %v228 = vld [vmem:[%s1 + $0x3c] sm:$0xf]
        %v229 = vld [vmem:[%s179 + $0x8] sm:$0x1]
        %v230 = vld [vmem:[%s179 + $0x14] sm:$0x1]
        %v231 = vld [vmem:[%s179 + $0x20] sm:$0x1]
        %v232 = vld [vmem:[%s179 + $0x2c] sm:$0x1]
        %v233 = vld [vmem:[%s179 + $0x38] sm:$0x1]
        %v234 = vld [vmem:[%s179 + $0x44] sm:$0x1]
        %v235 = vld [vmem:[%s179 + $0x50] sm:$0x1]
        %v236 = vld [vmem:[%s179 + $0x5c] sm:$0x1]
        %v237 = vld [vmem:[%s179 + $0x68] sm:$0x1]
        %v238 = vld [vmem:[%s179 + $0x74] sm:$0x1]
        %v239 = vld [vmem:[%s179 + $0x80] sm:$0x1]
        %v240 = vld [vmem:[%s179 + $0x8c] sm:$0x1]
        %v241 = vld [vmem:[%s179 + $0x98] sm:$0x1]
        %v242 = vld [vmem:[%s179 + $0xa4] sm:$0x1]
        %v243 = vld [vmem:[%s179 + $0xb0] sm:$0x1]
        %v244 = vld [vmem:[%s179 + $0xbc] sm:$0x1]
        %vm245 = vsmask.f32 3328
        %vm246 = vsmask.f32 7440
        %vm247 = vmor %vm245, %vm246
        %v249 = vshrl.u32 %v181, 16
        %v251 = vrot.slane %v249, 4
        %v252 = vshll.u32 %v181, 16
        %v254 = vrot.slane %v252, 5
        %v255 = vor.u32 %v251, %v254
        %v256 = vrot.slane %v255, 4
        %v258 = vshll.u32 %v182, 16
        %v260 = vrot.slane %v258, 5
        %v261 = vsel %vm247, %v256, %v260
        %v262 = vshrl.u32 %v182, 16
        %v264 = vrot.slane %v262, 4
        %v265 = vor.u32 %v264, %v260
        %v266 = vrot.slane %v265, 4
        %v268 = vshll.u32 %v229, 16
        %v270 = vrot.slane %v268, 5
        %v271 = vsel %vm247, %v266, %v270
        %v273 = vshrl.u32 %v183, 16
        %v275 = vrot.slane %v273, 4
        %v276 = vshll.u32 %v183, 16
        %v278 = vrot.slane %v276, 5
        %v279 = vor.u32 %v275, %v278
        %v280 = vrot.slane %v279, 4
        %v282 = vshll.u32 %v184, 16
        %v284 = vrot.slane %v282, 5
        %v285 = vsel %vm247, %v280, %v284
        %v286 = vshrl.u32 %v184, 16
        %v288 = vrot.slane %v286, 4
        %v289 = vor.u32 %v288, %v284
        %v290 = vrot.slane %v289, 4
        %v292 = vshll.u32 %v230, 16
        %v294 = vrot.slane %v292, 5
        %v295 = vsel %vm247, %v290, %v294
        %v297 = vshrl.u32 %v185, 16
        %v299 = vrot.slane %v297, 4
        %v300 = vshll.u32 %v185, 16
        %v302 = vrot.slane %v300, 5
        %v303 = vor.u32 %v299, %v302
        %v304 = vrot.slane %v303, 4
        %v306 = vshll.u32 %v186, 16
        %v308 = vrot.slane %v306, 5
        %v309 = vsel %vm247, %v304, %v308
        %v310 = vshrl.u32 %v186, 16
        %v312 = vrot.slane %v310, 4
        %v313 = vor.u32 %v312, %v308
        %v314 = vrot.slane %v313, 4
        %v316 = vshll.u32 %v231, 16
        %v318 = vrot.slane %v316, 5
        %v319 = vsel %vm247, %v314, %v318
        %v321 = vshrl.u32 %v187, 16
        %v323 = vrot.slane %v321, 4
        %v324 = vshll.u32 %v187, 16
        %v326 = vrot.slane %v324, 5
        %v327 = vor.u32 %v323, %v326
        %v328 = vrot.slane %v327, 4
        %v330 = vshll.u32 %v188, 16
        %v332 = vrot.slane %v330, 5
        %v333 = vsel %vm247, %v328, %v332
        %v334 = vshrl.u32 %v188, 16
        %v336 = vrot.slane %v334, 4
        %v337 = vor.u32 %v336, %v332
        %v338 = vrot.slane %v337, 4
        %v340 = vshll.u32 %v232, 16
        %v342 = vrot.slane %v340, 5
        %v343 = vsel %vm247, %v338, %v342
        %v345 = vshrl.u32 %v189, 16
        %v347 = vrot.slane %v345, 4
        %v348 = vshll.u32 %v189, 16
        %v350 = vrot.slane %v348, 5
        %v351 = vor.u32 %v347, %v350
        %v352 = vrot.slane %v351, 4
        %v354 = vshll.u32 %v190, 16
        %v356 = vrot.slane %v354, 5
        %v357 = vsel %vm247, %v352, %v356
        %v358 = vshrl.u32 %v190, 16
        %v360 = vrot.slane %v358, 4
        %v361 = vor.u32 %v360, %v356
        %v362 = vrot.slane %v361, 4
        %v364 = vshll.u32 %v233, 16
        %v366 = vrot.slane %v364, 5
        %v367 = vsel %vm247, %v362, %v366
        %v369 = vshrl.u32 %v191, 16
        %v371 = vrot.slane %v369, 4
        %v372 = vshll.u32 %v191, 16
        %v374 = vrot.slane %v372, 5
        %v375 = vor.u32 %v371, %v374
        %v376 = vrot.slane %v375, 4
        %v378 = vshll.u32 %v192, 16
        %v380 = vrot.slane %v378, 5
        %v381 = vsel %vm247, %v376, %v380
        %v382 = vshrl.u32 %v192, 16
        %v384 = vrot.slane %v382, 4
        %v385 = vor.u32 %v384, %v380
        %v386 = vrot.slane %v385, 4
        %v388 = vshll.u32 %v234, 16
        %v390 = vrot.slane %v388, 5
        %v391 = vsel %vm247, %v386, %v390
        %v393 = vshrl.u32 %v193, 16
        %v395 = vrot.slane %v393, 4
        %v396 = vshll.u32 %v193, 16
        %v398 = vrot.slane %v396, 5
        %v399 = vor.u32 %v395, %v398
        %v400 = vrot.slane %v399, 4
        %v402 = vshll.u32 %v194, 16
        %v404 = vrot.slane %v402, 5
        %v405 = vsel %vm247, %v400, %v404
        %v406 = vshrl.u32 %v194, 16
        %v408 = vrot.slane %v406, 4
        %v409 = vor.u32 %v408, %v404
        %v410 = vrot.slane %v409, 4
        %v412 = vshll.u32 %v235, 16
        %v414 = vrot.slane %v412, 5
        %v415 = vsel %vm247, %v410, %v414
        %v417 = vshrl.u32 %v195, 16
        %v419 = vrot.slane %v417, 4
        %v420 = vshll.u32 %v195, 16
        %v422 = vrot.slane %v420, 5
        %v423 = vor.u32 %v419, %v422
        %v424 = vrot.slane %v423, 4
        %v426 = vshll.u32 %v196, 16
        %v428 = vrot.slane %v426, 5
        %v429 = vsel %vm247, %v424, %v428
        %v430 = vshrl.u32 %v196, 16
        %v432 = vrot.slane %v430, 4
        %v433 = vor.u32 %v432, %v428
        %v434 = vrot.slane %v433, 4
        %v436 = vshll.u32 %v236, 16
        %v438 = vrot.slane %v436, 5
        %v439 = vsel %vm247, %v434, %v438
        %v441 = vshrl.u32 %v197, 16
        %v443 = vrot.slane %v441, 4
        %v444 = vshll.u32 %v197, 16
        %v446 = vrot.slane %v444, 5
        %v447 = vor.u32 %v443, %v446
        %v448 = vrot.slane %v447, 4
        %v450 = vshll.u32 %v198, 16
        %v452 = vrot.slane %v450, 5
        %v453 = vsel %vm247, %v448, %v452
        %v454 = vshrl.u32 %v198, 16
        %v456 = vrot.slane %v454, 4
        %v457 = vor.u32 %v456, %v452
        %v458 = vrot.slane %v457, 4
        %v460 = vshll.u32 %v237, 16
        %v462 = vrot.slane %v460, 5
        %v463 = vsel %vm247, %v458, %v462
        %v465 = vshrl.u32 %v199, 16
        %v467 = vrot.slane %v465, 4
        %v468 = vshll.u32 %v199, 16
        %v470 = vrot.slane %v468, 5
        %v471 = vor.u32 %v467, %v470
        %v472 = vrot.slane %v471, 4
        %v474 = vshll.u32 %v200, 16
        %v476 = vrot.slane %v474, 5
        %v477 = vsel %vm247, %v472, %v476
        %v478 = vshrl.u32 %v200, 16
        %v480 = vrot.slane %v478, 4
        %v481 = vor.u32 %v480, %v476
        %v482 = vrot.slane %v481, 4
        %v484 = vshll.u32 %v238, 16
        %v486 = vrot.slane %v484, 5
        %v487 = vsel %vm247, %v482, %v486
        %v489 = vshrl.u32 %v201, 16
        %v491 = vrot.slane %v489, 4
        %v492 = vshll.u32 %v201, 16
        %v494 = vrot.slane %v492, 5
        %v495 = vor.u32 %v491, %v494
        %v496 = vrot.slane %v495, 4
        %v498 = vshll.u32 %v202, 16
        %v500 = vrot.slane %v498, 5
        %v501 = vsel %vm247, %v496, %v500
        %v502 = vshrl.u32 %v202, 16
        %v504 = vrot.slane %v502, 4
        %v505 = vor.u32 %v504, %v500
        %v506 = vrot.slane %v505, 4
        %v508 = vshll.u32 %v239, 16
        %v510 = vrot.slane %v508, 5
        %v511 = vsel %vm247, %v506, %v510
        %v513 = vshrl.u32 %v203, 16
        %v515 = vrot.slane %v513, 4
        %v516 = vshll.u32 %v203, 16
        %v518 = vrot.slane %v516, 5
        %v519 = vor.u32 %v515, %v518
        %v520 = vrot.slane %v519, 4
        %v522 = vshll.u32 %v204, 16
        %v524 = vrot.slane %v522, 5
        %v525 = vsel %vm247, %v520, %v524
        %v526 = vshrl.u32 %v204, 16
        %v528 = vrot.slane %v526, 4
        %v529 = vor.u32 %v528, %v524
        %v530 = vrot.slane %v529, 4
        %v532 = vshll.u32 %v240, 16
        %v534 = vrot.slane %v532, 5
        %v535 = vsel %vm247, %v530, %v534
        %v537 = vshrl.u32 %v205, 16
        %v539 = vrot.slane %v537, 4
        %v540 = vshll.u32 %v205, 16
        %v542 = vrot.slane %v540, 5
        %v543 = vor.u32 %v539, %v542
        %v544 = vrot.slane %v543, 4
        %v546 = vshll.u32 %v206, 16
        %v548 = vrot.slane %v546, 5
        %v549 = vsel %vm247, %v544, %v548
        %v550 = vshrl.u32 %v206, 16
        %v552 = vrot.slane %v550, 4
        %v553 = vor.u32 %v552, %v548
        %v554 = vrot.slane %v553, 4
        %v556 = vshll.u32 %v241, 16
        %v558 = vrot.slane %v556, 5
        %v559 = vsel %vm247, %v554, %v558
        %v561 = vshrl.u32 %v207, 16
        %v563 = vrot.slane %v561, 4
        %v564 = vshll.u32 %v207, 16
        %v566 = vrot.slane %v564, 5
        %v567 = vor.u32 %v563, %v566
        %v568 = vrot.slane %v567, 4
        %v570 = vshll.u32 %v208, 16
        %v572 = vrot.slane %v570, 5
        %v573 = vsel %vm247, %v568, %v572
        %v574 = vshrl.u32 %v208, 16
        %v576 = vrot.slane %v574, 4
        %v577 = vor.u32 %v576, %v572
        %v578 = vrot.slane %v577, 4
        %v580 = vshll.u32 %v242, 16
        %v582 = vrot.slane %v580, 5
        %v583 = vsel %vm247, %v578, %v582
        %v585 = vshrl.u32 %v209, 16
        %v587 = vrot.slane %v585, 4
        %v588 = vshll.u32 %v209, 16
        %v590 = vrot.slane %v588, 5
        %v591 = vor.u32 %v587, %v590
        %v592 = vrot.slane %v591, 4
        %v594 = vshll.u32 %v210, 16
        %v596 = vrot.slane %v594, 5
        %v597 = vsel %vm247, %v592, %v596
        %v598 = vshrl.u32 %v210, 16
        %v600 = vrot.slane %v598, 4
        %v601 = vor.u32 %v600, %v596
        %v602 = vrot.slane %v601, 4
        %v604 = vshll.u32 %v243, 16
        %v606 = vrot.slane %v604, 5
        %v607 = vsel %vm247, %v602, %v606
        %v609 = vshrl.u32 %v211, 16
        %v611 = vrot.slane %v609, 4
        %v612 = vshll.u32 %v211, 16
        %v614 = vrot.slane %v612, 5
        %v615 = vor.u32 %v611, %v614
        %v616 = vrot.slane %v615, 4
        %v618 = vshll.u32 %v212, 16
        %v620 = vrot.slane %v618, 5
        %v621 = vsel %vm247, %v616, %v620
        %v622 = vshrl.u32 %v212, 16
        %v624 = vrot.slane %v622, 4
        %v625 = vor.u32 %v624, %v620
        %v626 = vrot.slane %v625, 4
        %v628 = vshll.u32 %v244, 16
        %v630 = vrot.slane %v628, 5
        %v631 = vsel %vm247, %v626, %v630
        %s632 = scalar_lea.vmem %s1, 64
        %v633 = vld [vmem:[%s632] sm:$0xf]
        %v634 = vld [vmem:[%s632 + $0x4] sm:$0xf]
        %v635 = vld [vmem:[%s632 + $0x8] sm:$0xf]
        %v636 = vld [vmem:[%s632 + $0xc] sm:$0xf]
        %v637 = vld [vmem:[%s632 + $0x10] sm:$0xf]
        %v638 = vld [vmem:[%s632 + $0x14] sm:$0xf]
        %v639 = vld [vmem:[%s632 + $0x18] sm:$0xf]
        %v640 = vld [vmem:[%s632 + $0x1c] sm:$0xf]
        %v641 = vld [vmem:[%s632 + $0x20] sm:$0xf]
        %v642 = vld [vmem:[%s632 + $0x24] sm:$0xf]
        %v643 = vld [vmem:[%s632 + $0x28] sm:$0xf]
        %v644 = vld [vmem:[%s632 + $0x2c] sm:$0xf]
        %v645 = vld [vmem:[%s632 + $0x30] sm:$0xf]
        %v646 = vld [vmem:[%s632 + $0x34] sm:$0xf]
        %v647 = vld [vmem:[%s632 + $0x38] sm:$0xf]
        %v648 = vld [vmem:[%s632 + $0x3c] sm:$0xf]
        %v649 = vunpack.c.l.b16 %v261
        %v650 = vunpack.c.l.b16 %v271
        %v651 = vunpack.c.l.b16 %v285
        %v652 = vunpack.c.l.b16 %v295
        %v653 = vunpack.c.l.b16 %v309
        %v654 = vunpack.c.l.b16 %v319
        %v655 = vunpack.c.l.b16 %v333
        %v656 = vunpack.c.l.b16 %v343
        %v657 = vunpack.c.l.b16 %v357
        %v658 = vunpack.c.l.b16 %v367
        %v659 = vunpack.c.l.b16 %v381
        %v660 = vunpack.c.l.b16 %v391
        %v661 = vunpack.c.l.b16 %v405
        %v662 = vunpack.c.l.b16 %v415
        %v663 = vunpack.c.l.b16 %v429
        %v664 = vunpack.c.l.b16 %v439
        %v665 = vunpack.c.l.b16 %v453
        %v666 = vunpack.c.l.b16 %v463
        %v667 = vunpack.c.l.b16 %v477
        %v668 = vunpack.c.l.b16 %v487
        %v669 = vunpack.c.l.b16 %v501
        %v670 = vunpack.c.l.b16 %v511
        %v671 = vunpack.c.l.b16 %v525
        %v672 = vunpack.c.l.b16 %v535
        %v673 = vunpack.c.l.b16 %v549
        %v674 = vunpack.c.l.b16 %v559
        %v675 = vunpack.c.l.b16 %v573
        %v676 = vunpack.c.l.b16 %v583
        %v677 = vunpack.c.l.b16 %v597
        %v678 = vunpack.c.l.b16 %v607
        %v679 = vunpack.c.l.b16 %v621
        %v680 = vunpack.c.l.b16 %v631
        %v681 = vpack.c.b16 %v650, %v649
        %v682 = vpack.c.b16 %v652, %v651
        %v683 = vpack.c.b16 %v654, %v653
        %v684 = vpack.c.b16 %v656, %v655
        %v685 = vpack.c.b16 %v658, %v657
        %v686 = vpack.c.b16 %v660, %v659
        %v687 = vpack.c.b16 %v662, %v661
        %v688 = vpack.c.b16 %v664, %v663
        %v689 = vpack.c.b16 %v666, %v665
        %v690 = vpack.c.b16 %v668, %v667
        %v691 = vpack.c.b16 %v670, %v669
        %v692 = vpack.c.b16 %v672, %v671
        %v693 = vpack.c.b16 %v674, %v673
        %v694 = vpack.c.b16 %v676, %v675
        %v695 = vpack.c.b16 %v678, %v677
        %v696 = vpack.c.b16 %v680, %v679
        %v729 = vunpack.c.l.b16 %v633
        %v730 = vunpack.c.l.b16 %v634
        %v731 = vunpack.c.l.b16 %v635
        %v732 = vunpack.c.l.b16 %v636
        %v733 = vunpack.c.l.b16 %v637
        %v734 = vunpack.c.l.b16 %v638
        %v735 = vunpack.c.l.b16 %v639
        %v736 = vunpack.c.l.b16 %v640
        %v737 = vunpack.c.l.b16 %v641
        %v738 = vunpack.c.l.b16 %v642
        %v739 = vunpack.c.l.b16 %v643
        %v740 = vunpack.c.l.b16 %v644
        %v741 = vunpack.c.l.b16 %v645
        %v742 = vunpack.c.l.b16 %v646
        %v743 = vunpack.c.l.b16 %v647
        %v744 = vunpack.c.l.b16 %v648
        %v745 = vpack.c.b16 %v730, %v729
        %v746 = vpack.c.b16 %v732, %v731
        %v747 = vpack.c.b16 %v734, %v733
        %v748 = vpack.c.b16 %v736, %v735
        %v749 = vpack.c.b16 %v738, %v737
        %v750 = vpack.c.b16 %v740, %v739
        %v751 = vpack.c.b16 %v742, %v741
        %v752 = vpack.c.b16 %v744, %v743
        %761 = vmatprep.subr.bf16.mxu0 0
        %762 = vmatpush1.bf16.msra.mxu0 %v752
        %763 = vmatprep.subr.bf16.mxu0 0
        %764 = vmatpush1.bf16.msra.mxu0 %v751
        %765 = vmatprep.subr.bf16.mxu0 0
        %766 = vmatpush1.bf16.msra.mxu0 %v750
        %767 = vmatprep.subr.bf16.mxu0 0
        %768 = vmatpush1.bf16.msra.mxu0 %v749
        %769 = vmatprep.subr.bf16.mxu0 0
        %770 = vmatpush1.bf16.msra.mxu0 %v748
        %771 = vmatprep.subr.bf16.mxu0 0
        %772 = vmatpush1.bf16.msra.mxu0 %v747
        %773 = vmatprep.subr.bf16.mxu0 0
        %774 = vmatpush1.bf16.msra.mxu0 %v746
        %775 = vmatprep.subr.bf16.mxu0 0
        %776 = vmatpush1.bf16.msra.mxu0 %v745
        %777 = vmatprep.subr.bf16.mxu0 0
        %778 = vmatpush2.bf16.msra.mxu0 0
        %779 = vmatprep.subr.bf16.mxu0 0
        %780 = vmatpush2.bf16.msra.mxu0 0
        %781 = vmatprep.subr.bf16.mxu0 0
        %782 = vmatpush2.bf16.msra.mxu0 0
        %783 = vmatprep.subr.bf16.mxu0 0
        %784 = vmatpush2.bf16.msra.mxu0 0
        %785 = vmatprep.subr.bf16.mxu0 0
        %786 = vmatpush2.bf16.msra.mxu0 0
        %787 = vmatprep.subr.bf16.mxu0 0
        %788 = vmatpush2.bf16.msra.mxu0 0
        %789 = vmatprep.subr.bf16.mxu0 0
        %790 = vmatpush2.bf16.msra.mxu0 0
        %791 = vmatprep.subr.bf16.mxu0 0
        %792 = vmatpush2.bf16.msra.mxu0 0
        %793 = vmatprep.mubr.bf16.mxu0 0
        %794 = vmatmul.mubr.bf16.gmra.mxu0 %v681
        %v795 = vpop.f32.mrf.mxu0
        %v796 = vadd.f32 0.0, %v795
        %v797 = vpop.f32.mrf.mxu0
        %v798 = vpop.f32.mrf.mxu0
        %v799 = vadd.f32 0.0, %v798
        %v800 = vpop.f32.mrf.mxu0
        %801 = vmatprep.mubr.bf16.mxu0 0
        %802 = vmatmul.mubr.bf16.gmra.mxu0 %v682
        %v803 = vpop.f32.mrf.mxu0
        %v804 = vadd.f32 0.0, %v803
        %v805 = vpop.f32.mrf.mxu0
        %v806 = vpop.f32.mrf.mxu0
        %v807 = vadd.f32 0.0, %v806
        %v808 = vpop.f32.mrf.mxu0
        %809 = vmatprep.mubr.bf16.mxu0 0
        %810 = vmatmul.mubr.bf16.gmra.mxu0 %v683
        %v811 = vpop.f32.mrf.mxu0
        %v812 = vadd.f32 0.0, %v811
        %v813 = vpop.f32.mrf.mxu0
        %v814 = vpop.f32.mrf.mxu0
        %v815 = vadd.f32 0.0, %v814
        %v816 = vpop.f32.mrf.mxu0
        %817 = vmatprep.mubr.bf16.mxu0 0
        %818 = vmatmul.mubr.bf16.gmra.mxu0 %v684
        %v819 = vpop.f32.mrf.mxu0
        %v820 = vadd.f32 0.0, %v819
        %v821 = vpop.f32.mrf.mxu0
        %v822 = vpop.f32.mrf.mxu0
        %v823 = vadd.f32 0.0, %v822
        %v824 = vpop.f32.mrf.mxu0
        %825 = vmatprep.mubr.bf16.mxu0 0
        %826 = vmatmul.mubr.bf16.gmra.mxu0 %v685
        %v827 = vpop.f32.mrf.mxu0
        %v828 = vadd.f32 0.0, %v827
        %v829 = vpop.f32.mrf.mxu0
        %v830 = vpop.f32.mrf.mxu0
        %v831 = vadd.f32 0.0, %v830
        %v832 = vpop.f32.mrf.mxu0
        %833 = vmatprep.mubr.bf16.mxu0 0
        %834 = vmatmul.mubr.bf16.gmra.mxu0 %v686
        %v835 = vpop.f32.mrf.mxu0
        %v836 = vadd.f32 0.0, %v835
        %v837 = vpop.f32.mrf.mxu0
        %v838 = vpop.f32.mrf.mxu0
        %v839 = vadd.f32 0.0, %v838
        %v840 = vpop.f32.mrf.mxu0
        %841 = vmatprep.mubr.bf16.mxu0 0
        %842 = vmatmul.mubr.bf16.gmra.mxu0 %v687
        %v843 = vpop.f32.mrf.mxu0
        %v844 = vadd.f32 0.0, %v843
        %v845 = vpop.f32.mrf.mxu0
        %v846 = vpop.f32.mrf.mxu0
        %v847 = vadd.f32 0.0, %v846
        %v848 = vpop.f32.mrf.mxu0
        %849 = vmatprep.mubr.bf16.mxu0 0
        %850 = vmatmul.mubr.bf16.gmra.mxu0 %v688
        %v851 = vpop.f32.mrf.mxu0
        %v852 = vadd.f32 0.0, %v851
        %v853 = vpop.f32.mrf.mxu0
        %v854 = vpop.f32.mrf.mxu0
        %v855 = vadd.f32 0.0, %v854
        %v856 = vpop.f32.mrf.mxu0
        %857 = vmatprep.mubr.bf16.mxu0 0
        %858 = vmatmul.mubr.bf16.gmra.mxu0 %v689
        %v859 = vpop.f32.mrf.mxu0
        %v860 = vadd.f32 0.0, %v859
        %v861 = vpop.f32.mrf.mxu0
        %v862 = vpop.f32.mrf.mxu0
        %v863 = vadd.f32 0.0, %v862
        %v864 = vpop.f32.mrf.mxu0
        %865 = vmatprep.mubr.bf16.mxu0 0
        %866 = vmatmul.mubr.bf16.gmra.mxu0 %v690
        %v867 = vpop.f32.mrf.mxu0
        %v868 = vadd.f32 0.0, %v867
        %v869 = vpop.f32.mrf.mxu0
        %v870 = vpop.f32.mrf.mxu0
        %v871 = vadd.f32 0.0, %v870
        %v872 = vpop.f32.mrf.mxu0
        %873 = vmatprep.mubr.bf16.mxu0 0
        %874 = vmatmul.mubr.bf16.gmra.mxu0 %v691
        %v875 = vpop.f32.mrf.mxu0
        %v876 = vadd.f32 0.0, %v875
        %v877 = vpop.f32.mrf.mxu0
        %v878 = vpop.f32.mrf.mxu0
        %v879 = vadd.f32 0.0, %v878
        %v880 = vpop.f32.mrf.mxu0
        %881 = vmatprep.mubr.bf16.mxu0 0
        %882 = vmatmul.mubr.bf16.gmra.mxu0 %v692
        %v883 = vpop.f32.mrf.mxu0
        %v884 = vadd.f32 0.0, %v883
        %v885 = vpop.f32.mrf.mxu0
        %v886 = vpop.f32.mrf.mxu0
        %v887 = vadd.f32 0.0, %v886
        %v888 = vpop.f32.mrf.mxu0
        %889 = vmatprep.mubr.bf16.mxu0 0
        %890 = vmatmul.mubr.bf16.gmra.mxu0 %v693
        %v891 = vpop.f32.mrf.mxu0
        %v892 = vadd.f32 0.0, %v891
        %v893 = vpop.f32.mrf.mxu0
        %v894 = vpop.f32.mrf.mxu0
        %v895 = vadd.f32 0.0, %v894
        %v896 = vpop.f32.mrf.mxu0
        %897 = vmatprep.mubr.bf16.mxu0 0
        %898 = vmatmul.mubr.bf16.gmra.mxu0 %v694
        %v899 = vpop.f32.mrf.mxu0
        %v900 = vadd.f32 0.0, %v899
        %v901 = vpop.f32.mrf.mxu0
        %v902 = vpop.f32.mrf.mxu0
        %v903 = vadd.f32 0.0, %v902
        %v904 = vpop.f32.mrf.mxu0
        %905 = vmatprep.mubr.bf16.mxu0 0
        %906 = vmatmul.mubr.bf16.gmra.mxu0 %v695
        %v907 = vpop.f32.mrf.mxu0
        %v908 = vadd.f32 0.0, %v907
        %v909 = vpop.f32.mrf.mxu0
        %v910 = vpop.f32.mrf.mxu0
        %v911 = vadd.f32 0.0, %v910
        %v912 = vpop.f32.mrf.mxu0
        %913 = vmatprep.mubr.bf16.mxu0 0
        %914 = vmatmul.mubr.bf16.gmra.mxu0 %v696
        %v915 = vpop.f32.mrf.mxu0
        %v916 = vadd.f32 0.0, %v915
        %v917 = vpop.f32.mrf.mxu0
        %v918 = vpop.f32.mrf.mxu0
        %v919 = vadd.f32 0.0, %v918
        %v920 = vpop.f32.mrf.mxu0
        %921 = vdwg.mxu0
        %v954 = vunpack.c.l.b16 %v181
        %v955 = vunpack.c.l.b16 %v182
        %v956 = vunpack.c.l.b16 %v183
        %v957 = vunpack.c.l.b16 %v184
        %v958 = vunpack.c.l.b16 %v185
        %v959 = vunpack.c.l.b16 %v186
        %v960 = vunpack.c.l.b16 %v187
        %v961 = vunpack.c.l.b16 %v188
        %v962 = vunpack.c.l.b16 %v189
        %v963 = vunpack.c.l.b16 %v190
        %v964 = vunpack.c.l.b16 %v191
        %v965 = vunpack.c.l.b16 %v192
        %v966 = vunpack.c.l.b16 %v193
        %v967 = vunpack.c.l.b16 %v194
        %v968 = vunpack.c.l.b16 %v195
        %v969 = vunpack.c.l.b16 %v196
        %v970 = vunpack.c.l.b16 %v197
        %v971 = vunpack.c.l.b16 %v198
        %v972 = vunpack.c.l.b16 %v199
        %v973 = vunpack.c.l.b16 %v200
        %v974 = vunpack.c.l.b16 %v201
        %v975 = vunpack.c.l.b16 %v202
        %v976 = vunpack.c.l.b16 %v203
        %v977 = vunpack.c.l.b16 %v204
        %v978 = vunpack.c.l.b16 %v205
        %v979 = vunpack.c.l.b16 %v206
        %v980 = vunpack.c.l.b16 %v207
        %v981 = vunpack.c.l.b16 %v208
        %v982 = vunpack.c.l.b16 %v209
        %v983 = vunpack.c.l.b16 %v210
        %v984 = vunpack.c.l.b16 %v211
        %v985 = vunpack.c.l.b16 %v212
        %v986 = vpack.c.b16 %v955, %v954
        %v987 = vpack.c.b16 %v957, %v956
        %v988 = vpack.c.b16 %v959, %v958
        %v989 = vpack.c.b16 %v961, %v960
        %v990 = vpack.c.b16 %v963, %v962
        %v991 = vpack.c.b16 %v965, %v964
        %v992 = vpack.c.b16 %v967, %v966
        %v993 = vpack.c.b16 %v969, %v968
        %v994 = vpack.c.b16 %v971, %v970
        %v995 = vpack.c.b16 %v973, %v972
        %v996 = vpack.c.b16 %v975, %v974
        %v997 = vpack.c.b16 %v977, %v976
        %v998 = vpack.c.b16 %v979, %v978
        %v999 = vpack.c.b16 %v981, %v980
        %v1000 = vpack.c.b16 %v983, %v982
        %v1001 = vpack.c.b16 %v985, %v984
        %v1034 = vunpack.c.l.b16 %v213
        %v1035 = vunpack.c.l.b16 %v214
        %v1036 = vunpack.c.l.b16 %v215
        %v1037 = vunpack.c.l.b16 %v216
        %v1038 = vunpack.c.l.b16 %v217
        %v1039 = vunpack.c.l.b16 %v218
        %v1040 = vunpack.c.l.b16 %v219
        %v1041 = vunpack.c.l.b16 %v220
        %v1042 = vunpack.c.l.b16 %v221
        %v1043 = vunpack.c.l.b16 %v222
        %v1044 = vunpack.c.l.b16 %v223
        %v1045 = vunpack.c.l.b16 %v224
        %v1046 = vunpack.c.l.b16 %v225
        %v1047 = vunpack.c.l.b16 %v226
        %v1048 = vunpack.c.l.b16 %v227
        %v1049 = vunpack.c.l.b16 %v228
        %v1050 = vpack.c.b16 %v1035, %v1034
        %v1051 = vpack.c.b16 %v1037, %v1036
        %v1052 = vpack.c.b16 %v1039, %v1038
        %v1053 = vpack.c.b16 %v1041, %v1040
        %v1054 = vpack.c.b16 %v1043, %v1042
        %v1055 = vpack.c.b16 %v1045, %v1044
        %v1056 = vpack.c.b16 %v1047, %v1046
        %v1057 = vpack.c.b16 %v1049, %v1048
        %1066 = vmatprep.subr.bf16.mxu0 0
        %1067 = vmatpush1.bf16.msra.mxu0 %v1057
        %1068 = vmatprep.subr.bf16.mxu0 0
        %1069 = vmatpush1.bf16.msra.mxu0 %v1056
        %1070 = vmatprep.subr.bf16.mxu0 0
        %1071 = vmatpush1.bf16.msra.mxu0 %v1055
        %1072 = vmatprep.subr.bf16.mxu0 0
        %1073 = vmatpush1.bf16.msra.mxu0 %v1054
        %1074 = vmatprep.subr.bf16.mxu0 0
        %1075 = vmatpush1.bf16.msra.mxu0 %v1053
        %1076 = vmatprep.subr.bf16.mxu0 0
        %1077 = vmatpush1.bf16.msra.mxu0 %v1052
        %1078 = vmatprep.subr.bf16.mxu0 0
        %1079 = vmatpush1.bf16.msra.mxu0 %v1051
        %1080 = vmatprep.subr.bf16.mxu0 0
        %1081 = vmatpush1.bf16.msra.mxu0 %v1050
        %1082 = vmatprep.subr.bf16.mxu0 0
        %1083 = vmatpush2.bf16.msra.mxu0 0
        %1084 = vmatprep.subr.bf16.mxu0 0
        %1085 = vmatpush2.bf16.msra.mxu0 0
        %1086 = vmatprep.subr.bf16.mxu0 0
        %1087 = vmatpush2.bf16.msra.mxu0 0
        %1088 = vmatprep.subr.bf16.mxu0 0
        %1089 = vmatpush2.bf16.msra.mxu0 0
        %1090 = vmatprep.subr.bf16.mxu0 0
        %1091 = vmatpush2.bf16.msra.mxu0 0
        %1092 = vmatprep.subr.bf16.mxu0 0
        %1093 = vmatpush2.bf16.msra.mxu0 0
        %1094 = vmatprep.subr.bf16.mxu0 0
        %1095 = vmatpush2.bf16.msra.mxu0 0
        %1096 = vmatprep.subr.bf16.mxu0 0
        %1097 = vmatpush2.bf16.msra.mxu0 0
        %1098 = vmatprep.mubr.bf16.mxu0 0
        %1099 = vmatmul.mubr.bf16.gmra.mxu0 %v986
        %v1100 = vpop.f32.mrf.mxu0
        %v1101 = vadd.f32 %v796, %v1100
        %v1102 = vpop.f32.mrf.mxu0
        %v1103 = vpop.f32.mrf.mxu0
        %v1104 = vadd.f32 %v799, %v1103
        %v1105 = vpop.f32.mrf.mxu0
        %1106 = vmatprep.mubr.bf16.mxu0 0
        %1107 = vmatmul.mubr.bf16.gmra.mxu0 %v987
        %v1108 = vpop.f32.mrf.mxu0
        %v1109 = vadd.f32 %v804, %v1108
        %v1110 = vpop.f32.mrf.mxu0
        %v1111 = vpop.f32.mrf.mxu0
        %v1112 = vadd.f32 %v807, %v1111
        %v1113 = vpop.f32.mrf.mxu0
        %1114 = vmatprep.mubr.bf16.mxu0 0
        %1115 = vmatmul.mubr.bf16.gmra.mxu0 %v988
        %v1116 = vpop.f32.mrf.mxu0
        %v1117 = vadd.f32 %v812, %v1116
        %v1118 = vpop.f32.mrf.mxu0
        %v1119 = vpop.f32.mrf.mxu0
        %v1120 = vadd.f32 %v815, %v1119
        %v1121 = vpop.f32.mrf.mxu0
        %1122 = vmatprep.mubr.bf16.mxu0 0
        %1123 = vmatmul.mubr.bf16.gmra.mxu0 %v989
        %v1124 = vpop.f32.mrf.mxu0
        %v1125 = vadd.f32 %v820, %v1124
        %v1126 = vpop.f32.mrf.mxu0
        %v1127 = vpop.f32.mrf.mxu0
        %v1128 = vadd.f32 %v823, %v1127
        %v1129 = vpop.f32.mrf.mxu0
        %1130 = vmatprep.mubr.bf16.mxu0 0
        %1131 = vmatmul.mubr.bf16.gmra.mxu0 %v990
        %v1132 = vpop.f32.mrf.mxu0
        %v1133 = vadd.f32 %v828, %v1132
        %v1134 = vpop.f32.mrf.mxu0
        %v1135 = vpop.f32.mrf.mxu0
        %v1136 = vadd.f32 %v831, %v1135
        %v1137 = vpop.f32.mrf.mxu0
        %1138 = vmatprep.mubr.bf16.mxu0 0
        %1139 = vmatmul.mubr.bf16.gmra.mxu0 %v991
        %v1140 = vpop.f32.mrf.mxu0
        %v1141 = vadd.f32 %v836, %v1140
        %v1142 = vpop.f32.mrf.mxu0
        %v1143 = vpop.f32.mrf.mxu0
        %v1144 = vadd.f32 %v839, %v1143
        %v1145 = vpop.f32.mrf.mxu0
        %1146 = vmatprep.mubr.bf16.mxu0 0
        %1147 = vmatmul.mubr.bf16.gmra.mxu0 %v992
        %v1148 = vpop.f32.mrf.mxu0
        %v1149 = vadd.f32 %v844, %v1148
        %v1150 = vpop.f32.mrf.mxu0
        %v1151 = vpop.f32.mrf.mxu0
        %v1152 = vadd.f32 %v847, %v1151
        %v1153 = vpop.f32.mrf.mxu0
        %1154 = vmatprep.mubr.bf16.mxu0 0
        %1155 = vmatmul.mubr.bf16.gmra.mxu0 %v993
        %v1156 = vpop.f32.mrf.mxu0
        %v1157 = vadd.f32 %v852, %v1156
        %v1158 = vpop.f32.mrf.mxu0
        %v1159 = vpop.f32.mrf.mxu0
        %v1160 = vadd.f32 %v855, %v1159
        %v1161 = vpop.f32.mrf.mxu0
        %1162 = vmatprep.mubr.bf16.mxu0 0
        %1163 = vmatmul.mubr.bf16.gmra.mxu0 %v994
        %v1164 = vpop.f32.mrf.mxu0
        %v1165 = vadd.f32 %v860, %v1164
        %v1166 = vpop.f32.mrf.mxu0
        %v1167 = vpop.f32.mrf.mxu0
        %v1168 = vadd.f32 %v863, %v1167
        %v1169 = vpop.f32.mrf.mxu0
        %1170 = vmatprep.mubr.bf16.mxu0 0
        %1171 = vmatmul.mubr.bf16.gmra.mxu0 %v995
        %v1172 = vpop.f32.mrf.mxu0
        %v1173 = vadd.f32 %v868, %v1172
        %v1174 = vpop.f32.mrf.mxu0
        %v1175 = vpop.f32.mrf.mxu0
        %v1176 = vadd.f32 %v871, %v1175
        %v1177 = vpop.f32.mrf.mxu0
        %1178 = vmatprep.mubr.bf16.mxu0 0
        %1179 = vmatmul.mubr.bf16.gmra.mxu0 %v996
        %v1180 = vpop.f32.mrf.mxu0
        %v1181 = vadd.f32 %v876, %v1180
        %v1182 = vpop.f32.mrf.mxu0
        %v1183 = vpop.f32.mrf.mxu0
        %v1184 = vadd.f32 %v879, %v1183
        %v1185 = vpop.f32.mrf.mxu0
        %1186 = vmatprep.mubr.bf16.mxu0 0
        %1187 = vmatmul.mubr.bf16.gmra.mxu0 %v997
        %v1188 = vpop.f32.mrf.mxu0
        %v1189 = vadd.f32 %v884, %v1188
        %v1190 = vpop.f32.mrf.mxu0
        %v1191 = vpop.f32.mrf.mxu0
        %v1192 = vadd.f32 %v887, %v1191
        %v1193 = vpop.f32.mrf.mxu0
        %1194 = vmatprep.mubr.bf16.mxu0 0
        %1195 = vmatmul.mubr.bf16.gmra.mxu0 %v998
        %v1196 = vpop.f32.mrf.mxu0
        %v1197 = vadd.f32 %v892, %v1196
        %v1198 = vpop.f32.mrf.mxu0
        %v1199 = vpop.f32.mrf.mxu0
        %v1200 = vadd.f32 %v895, %v1199
        %v1201 = vpop.f32.mrf.mxu0
        %1202 = vmatprep.mubr.bf16.mxu0 0
        %1203 = vmatmul.mubr.bf16.gmra.mxu0 %v999
        %v1204 = vpop.f32.mrf.mxu0
        %v1205 = vadd.f32 %v900, %v1204
        %v1206 = vpop.f32.mrf.mxu0
        %v1207 = vpop.f32.mrf.mxu0
        %v1208 = vadd.f32 %v903, %v1207
        %v1209 = vpop.f32.mrf.mxu0
        %1210 = vmatprep.mubr.bf16.mxu0 0
        %1211 = vmatmul.mubr.bf16.gmra.mxu0 %v1000
        %v1212 = vpop.f32.mrf.mxu0
        %v1213 = vadd.f32 %v908, %v1212
        %v1214 = vpop.f32.mrf.mxu0
        %v1215 = vpop.f32.mrf.mxu0
        %v1216 = vadd.f32 %v911, %v1215
        %v1217 = vpop.f32.mrf.mxu0
        %1218 = vmatprep.mubr.bf16.mxu0 0
        %1219 = vmatmul.mubr.bf16.gmra.mxu0 %v1001
        %v1220 = vpop.f32.mrf.mxu0
        %v1221 = vadd.f32 %v916, %v1220
        %v1222 = vpop.f32.mrf.mxu0
        %v1223 = vpop.f32.mrf.mxu0
        %v1224 = vadd.f32 %v919, %v1223
        %v1225 = vpop.f32.mrf.mxu0
        %1226 = vdwg.mxu0
        %v1227 = vld [vmem:[%s179] sm:$0xe]
        %v1228 = vld [vmem:[%s179 + $0xc] sm:$0xe]
        %v1229 = vld [vmem:[%s179 + $0x18] sm:$0xe]
        %v1230 = vld [vmem:[%s179 + $0x24] sm:$0xe]
        %v1231 = vld [vmem:[%s179 + $0x30] sm:$0xe]
        %v1232 = vld [vmem:[%s179 + $0x3c] sm:$0xe]
        %v1233 = vld [vmem:[%s179 + $0x48] sm:$0xe]
        %v1234 = vld [vmem:[%s179 + $0x54] sm:$0xe]
        %v1235 = vld [vmem:[%s179 + $0x60] sm:$0xe]
        %v1236 = vld [vmem:[%s179 + $0x6c] sm:$0xe]
        %v1237 = vld [vmem:[%s179 + $0x78] sm:$0xe]
        %v1238 = vld [vmem:[%s179 + $0x84] sm:$0xe]
        %v1239 = vld [vmem:[%s179 + $0x90] sm:$0xe]
        %v1240 = vld [vmem:[%s179 + $0x9c] sm:$0xe]
        %v1241 = vld [vmem:[%s179 + $0xa8] sm:$0xe]
        %v1242 = vld [vmem:[%s179 + $0xb4] sm:$0xe]
        %vm1275 = vcmask 1042432
        %vm1276 = vcmask 1046532
        %vm1277 = vmor %vm1275, %vm1276
        %v1278 = vrot.slane %v1227, 5
        %v1279 = vrot.slane %v1278, 4
        %v1280 = vrot.slane %v182, 5
        %v1281 = vsel %vm1277, %v1279, %v1280
        %v1282 = vrot.slane %v1280, 4
        %v1283 = vrot.slane %v229, 5
        %v1284 = vsel %vm1277, %v1282, %v1283
        %v1285 = vrot.slane %v1228, 5
        %v1286 = vrot.slane %v1285, 4
        %v1287 = vrot.slane %v184, 5
        %v1288 = vsel %vm1277, %v1286, %v1287
        %v1289 = vrot.slane %v1287, 4
        %v1290 = vrot.slane %v230, 5
        %v1291 = vsel %vm1277, %v1289, %v1290
        %v1292 = vrot.slane %v1229, 5
        %v1293 = vrot.slane %v1292, 4
        %v1294 = vrot.slane %v186, 5
        %v1295 = vsel %vm1277, %v1293, %v1294
        %v1296 = vrot.slane %v1294, 4
        %v1297 = vrot.slane %v231, 5
        %v1298 = vsel %vm1277, %v1296, %v1297
        %v1299 = vrot.slane %v1230, 5
        %v1300 = vrot.slane %v1299, 4
        %v1301 = vrot.slane %v188, 5
        %v1302 = vsel %vm1277, %v1300, %v1301
        %v1303 = vrot.slane %v1301, 4
        %v1304 = vrot.slane %v232, 5
        %v1305 = vsel %vm1277, %v1303, %v1304
        %v1306 = vrot.slane %v1231, 5
        %v1307 = vrot.slane %v1306, 4
        %v1308 = vrot.slane %v190, 5
        %v1309 = vsel %vm1277, %v1307, %v1308
        %v1310 = vrot.slane %v1308, 4
        %v1311 = vrot.slane %v233, 5
        %v1312 = vsel %vm1277, %v1310, %v1311
        %v1313 = vrot.slane %v1232, 5
        %v1314 = vrot.slane %v1313, 4
        %v1315 = vrot.slane %v192, 5
        %v1316 = vsel %vm1277, %v1314, %v1315
        %v1317 = vrot.slane %v1315, 4
        %v1318 = vrot.slane %v234, 5
        %v1319 = vsel %vm1277, %v1317, %v1318
        %v1320 = vrot.slane %v1233, 5
        %v1321 = vrot.slane %v1320, 4
        %v1322 = vrot.slane %v194, 5
        %v1323 = vsel %vm1277, %v1321, %v1322
        %v1324 = vrot.slane %v1322, 4
        %v1325 = vrot.slane %v235, 5
        %v1326 = vsel %vm1277, %v1324, %v1325
        %v1327 = vrot.slane %v1234, 5
        %v1328 = vrot.slane %v1327, 4
        %v1329 = vrot.slane %v196, 5
        %v1330 = vsel %vm1277, %v1328, %v1329
        %v1331 = vrot.slane %v1329, 4
        %v1332 = vrot.slane %v236, 5
        %v1333 = vsel %vm1277, %v1331, %v1332
        %v1334 = vrot.slane %v1235, 5
        %v1335 = vrot.slane %v1334, 4
        %v1336 = vrot.slane %v198, 5
        %v1337 = vsel %vm1277, %v1335, %v1336
        %v1338 = vrot.slane %v1336, 4
        %v1339 = vrot.slane %v237, 5
        %v1340 = vsel %vm1277, %v1338, %v1339
        %v1341 = vrot.slane %v1236, 5
        %v1342 = vrot.slane %v1341, 4
        %v1343 = vrot.slane %v200, 5
        %v1344 = vsel %vm1277, %v1342, %v1343
        %v1345 = vrot.slane %v1343, 4
        %v1346 = vrot.slane %v238, 5
        %v1347 = vsel %vm1277, %v1345, %v1346
        %v1348 = vrot.slane %v1237, 5
        %v1349 = vrot.slane %v1348, 4
        %v1350 = vrot.slane %v202, 5
        %v1351 = vsel %vm1277, %v1349, %v1350
        %v1352 = vrot.slane %v1350, 4
        %v1353 = vrot.slane %v239, 5
        %v1354 = vsel %vm1277, %v1352, %v1353
        %v1355 = vrot.slane %v1238, 5
        %v1356 = vrot.slane %v1355, 4
        %v1357 = vrot.slane %v204, 5
        %v1358 = vsel %vm1277, %v1356, %v1357
        %v1359 = vrot.slane %v1357, 4
        %v1360 = vrot.slane %v240, 5
        %v1361 = vsel %vm1277, %v1359, %v1360
        %v1362 = vrot.slane %v1239, 5
        %v1363 = vrot.slane %v1362, 4
        %v1364 = vrot.slane %v206, 5
        %v1365 = vsel %vm1277, %v1363, %v1364
        %v1366 = vrot.slane %v1364, 4
        %v1367 = vrot.slane %v241, 5
        %v1368 = vsel %vm1277, %v1366, %v1367
        %v1369 = vrot.slane %v1240, 5
        %v1370 = vrot.slane %v1369, 4
        %v1371 = vrot.slane %v208, 5
        %v1372 = vsel %vm1277, %v1370, %v1371
        %v1373 = vrot.slane %v1371, 4
        %v1374 = vrot.slane %v242, 5
        %v1375 = vsel %vm1277, %v1373, %v1374
        %v1376 = vrot.slane %v1241, 5
        %v1377 = vrot.slane %v1376, 4
        %v1378 = vrot.slane %v210, 5
        %v1379 = vsel %vm1277, %v1377, %v1378
        %v1380 = vrot.slane %v1378, 4
        %v1381 = vrot.slane %v243, 5
        %v1382 = vsel %vm1277, %v1380, %v1381
        %v1383 = vrot.slane %v1242, 5
        %v1384 = vrot.slane %v1383, 4
        %v1385 = vrot.slane %v212, 5
        %v1386 = vsel %vm1277, %v1384, %v1385
        %v1387 = vrot.slane %v1385, 4
        %v1388 = vrot.slane %v244, 5
        %v1389 = vsel %vm1277, %v1387, %v1388
        %s1390 = scalar_lea.vmem %s1, 128
        %v1391 = vld [vmem:[%s1390] sm:$0xf]
        %v1392 = vld [vmem:[%s1390 + $0x4] sm:$0xf]
        %v1393 = vld [vmem:[%s1390 + $0x8] sm:$0xf]
        %v1394 = vld [vmem:[%s1390 + $0xc] sm:$0xf]
        %v1395 = vld [vmem:[%s1390 + $0x10] sm:$0xf]
        %v1396 = vld [vmem:[%s1390 + $0x14] sm:$0xf]
        %v1397 = vld [vmem:[%s1390 + $0x18] sm:$0xf]
        %v1398 = vld [vmem:[%s1390 + $0x1c] sm:$0xf]
        %v1399 = vld [vmem:[%s1390 + $0x20] sm:$0xf]
        %v1400 = vld [vmem:[%s1390 + $0x24] sm:$0xf]
        %v1401 = vld [vmem:[%s1390 + $0x28] sm:$0xf]
        %v1402 = vld [vmem:[%s1390 + $0x2c] sm:$0xf]
        %v1403 = vld [vmem:[%s1390 + $0x30] sm:$0xf]
        %v1404 = vld [vmem:[%s1390 + $0x34] sm:$0xf]
        %v1405 = vld [vmem:[%s1390 + $0x38] sm:$0xf]
        %v1406 = vld [vmem:[%s1390 + $0x3c] sm:$0xf]
        %v1407 = vunpack.c.l.b16 %v1281
        %v1408 = vunpack.c.l.b16 %v1284
        %v1409 = vunpack.c.l.b16 %v1288
        %v1410 = vunpack.c.l.b16 %v1291
        %v1411 = vunpack.c.l.b16 %v1295
        %v1412 = vunpack.c.l.b16 %v1298
        %v1413 = vunpack.c.l.b16 %v1302
        %v1414 = vunpack.c.l.b16 %v1305
        %v1415 = vunpack.c.l.b16 %v1309
        %v1416 = vunpack.c.l.b16 %v1312
        %v1417 = vunpack.c.l.b16 %v1316
        %v1418 = vunpack.c.l.b16 %v1319
        %v1419 = vunpack.c.l.b16 %v1323
        %v1420 = vunpack.c.l.b16 %v1326
        %v1421 = vunpack.c.l.b16 %v1330
        %v1422 = vunpack.c.l.b16 %v1333
        %v1423 = vunpack.c.l.b16 %v1337
        %v1424 = vunpack.c.l.b16 %v1340
        %v1425 = vunpack.c.l.b16 %v1344
        %v1426 = vunpack.c.l.b16 %v1347
        %v1427 = vunpack.c.l.b16 %v1351
        %v1428 = vunpack.c.l.b16 %v1354
        %v1429 = vunpack.c.l.b16 %v1358
        %v1430 = vunpack.c.l.b16 %v1361
        %v1431 = vunpack.c.l.b16 %v1365
        %v1432 = vunpack.c.l.b16 %v1368
        %v1433 = vunpack.c.l.b16 %v1372
        %v1434 = vunpack.c.l.b16 %v1375
        %v1435 = vunpack.c.l.b16 %v1379
        %v1436 = vunpack.c.l.b16 %v1382
        %v1437 = vunpack.c.l.b16 %v1386
        %v1438 = vunpack.c.l.b16 %v1389
        %v1439 = vpack.c.b16 %v1408, %v1407
        %v1440 = vpack.c.b16 %v1410, %v1409
        %v1441 = vpack.c.b16 %v1412, %v1411
        %v1442 = vpack.c.b16 %v1414, %v1413
        %v1443 = vpack.c.b16 %v1416, %v1415
        %v1444 = vpack.c.b16 %v1418, %v1417
        %v1445 = vpack.c.b16 %v1420, %v1419
        %v1446 = vpack.c.b16 %v1422, %v1421
        %v1447 = vpack.c.b16 %v1424, %v1423
        %v1448 = vpack.c.b16 %v1426, %v1425
        %v1449 = vpack.c.b16 %v1428, %v1427
        %v1450 = vpack.c.b16 %v1430, %v1429
        %v1451 = vpack.c.b16 %v1432, %v1431
        %v1452 = vpack.c.b16 %v1434, %v1433
        %v1453 = vpack.c.b16 %v1436, %v1435
        %v1454 = vpack.c.b16 %v1438, %v1437
        %v1487 = vunpack.c.l.b16 %v1391
        %v1488 = vunpack.c.l.b16 %v1392
        %v1489 = vunpack.c.l.b16 %v1393
        %v1490 = vunpack.c.l.b16 %v1394
        %v1491 = vunpack.c.l.b16 %v1395
        %v1492 = vunpack.c.l.b16 %v1396
        %v1493 = vunpack.c.l.b16 %v1397
        %v1494 = vunpack.c.l.b16 %v1398
        %v1495 = vunpack.c.l.b16 %v1399
        %v1496 = vunpack.c.l.b16 %v1400
        %v1497 = vunpack.c.l.b16 %v1401
        %v1498 = vunpack.c.l.b16 %v1402
        %v1499 = vunpack.c.l.b16 %v1403
        %v1500 = vunpack.c.l.b16 %v1404
        %v1501 = vunpack.c.l.b16 %v1405
        %v1502 = vunpack.c.l.b16 %v1406
        %v1503 = vpack.c.b16 %v1488, %v1487
        %v1504 = vpack.c.b16 %v1490, %v1489
        %v1505 = vpack.c.b16 %v1492, %v1491
        %v1506 = vpack.c.b16 %v1494, %v1493
        %v1507 = vpack.c.b16 %v1496, %v1495
        %v1508 = vpack.c.b16 %v1498, %v1497
        %v1509 = vpack.c.b16 %v1500, %v1499
        %v1510 = vpack.c.b16 %v1502, %v1501
        %1519 = vmatprep.subr.bf16.mxu0 0
        %1520 = vmatpush1.bf16.msra.mxu0 %v1510
        %1521 = vmatprep.subr.bf16.mxu0 0
        %1522 = vmatpush1.bf16.msra.mxu0 %v1509
        %1523 = vmatprep.subr.bf16.mxu0 0
        %1524 = vmatpush1.bf16.msra.mxu0 %v1508
        %1525 = vmatprep.subr.bf16.mxu0 0
        %1526 = vmatpush1.bf16.msra.mxu0 %v1507
        %1527 = vmatprep.subr.bf16.mxu0 0
        %1528 = vmatpush1.bf16.msra.mxu0 %v1506
        %1529 = vmatprep.subr.bf16.mxu0 0
        %1530 = vmatpush1.bf16.msra.mxu0 %v1505
        %1531 = vmatprep.subr.bf16.mxu0 0
        %1532 = vmatpush1.bf16.msra.mxu0 %v1504
        %1533 = vmatprep.subr.bf16.mxu0 0
        %1534 = vmatpush1.bf16.msra.mxu0 %v1503
        %1535 = vmatprep.subr.bf16.mxu0 0
        %1536 = vmatpush2.bf16.msra.mxu0 0
        %1537 = vmatprep.subr.bf16.mxu0 0
        %1538 = vmatpush2.bf16.msra.mxu0 0
        %1539 = vmatprep.subr.bf16.mxu0 0
        %1540 = vmatpush2.bf16.msra.mxu0 0
        %1541 = vmatprep.subr.bf16.mxu0 0
        %1542 = vmatpush2.bf16.msra.mxu0 0
        %1543 = vmatprep.subr.bf16.mxu0 0
        %1544 = vmatpush2.bf16.msra.mxu0 0
        %1545 = vmatprep.subr.bf16.mxu0 0
        %1546 = vmatpush2.bf16.msra.mxu0 0
        %1547 = vmatprep.subr.bf16.mxu0 0
        %1548 = vmatpush2.bf16.msra.mxu0 0
        %1549 = vmatprep.subr.bf16.mxu0 0
        %1550 = vmatpush2.bf16.msra.mxu0 0
        %1551 = vmatprep.mubr.bf16.mxu0 0
        %1552 = vmatmul.mubr.bf16.gmra.mxu0 %v1439
        %v1553 = vpop.f32.mrf.mxu0
        %v1554 = vadd.f32 0.0, %v1553
        %v1555 = vpop.f32.mrf.mxu0
        %v1556 = vpop.f32.mrf.mxu0
        %v1557 = vadd.f32 0.0, %v1556
        %v1558 = vpop.f32.mrf.mxu0
        %1559 = vmatprep.mubr.bf16.mxu0 0
        %1560 = vmatmul.mubr.bf16.gmra.mxu0 %v1440
        %v1561 = vpop.f32.mrf.mxu0
        %v1562 = vadd.f32 0.0, %v1561
        %v1563 = vpop.f32.mrf.mxu0
        %v1564 = vpop.f32.mrf.mxu0
        %v1565 = vadd.f32 0.0, %v1564
        %v1566 = vpop.f32.mrf.mxu0
        %1567 = vmatprep.mubr.bf16.mxu0 0
        %1568 = vmatmul.mubr.bf16.gmra.mxu0 %v1441
        %v1569 = vpop.f32.mrf.mxu0
        %v1570 = vadd.f32 0.0, %v1569
        %v1571 = vpop.f32.mrf.mxu0
        %v1572 = vpop.f32.mrf.mxu0
        %v1573 = vadd.f32 0.0, %v1572
        %v1574 = vpop.f32.mrf.mxu0
        %1575 = vmatprep.mubr.bf16.mxu0 0
        %1576 = vmatmul.mubr.bf16.gmra.mxu0 %v1442
        %v1577 = vpop.f32.mrf.mxu0
        %v1578 = vadd.f32 0.0, %v1577
        %v1579 = vpop.f32.mrf.mxu0
        %v1580 = vpop.f32.mrf.mxu0
        %v1581 = vadd.f32 0.0, %v1580
        %v1582 = vpop.f32.mrf.mxu0
        %1583 = vmatprep.mubr.bf16.mxu0 0
        %1584 = vmatmul.mubr.bf16.gmra.mxu0 %v1443
        %v1585 = vpop.f32.mrf.mxu0
        %v1586 = vadd.f32 0.0, %v1585
        %v1587 = vpop.f32.mrf.mxu0
        %v1588 = vpop.f32.mrf.mxu0
        %v1589 = vadd.f32 0.0, %v1588
        %v1590 = vpop.f32.mrf.mxu0
        %1591 = vmatprep.mubr.bf16.mxu0 0
        %1592 = vmatmul.mubr.bf16.gmra.mxu0 %v1444
        %v1593 = vpop.f32.mrf.mxu0
        %v1594 = vadd.f32 0.0, %v1593
        %v1595 = vpop.f32.mrf.mxu0
        %v1596 = vpop.f32.mrf.mxu0
        %v1597 = vadd.f32 0.0, %v1596
        %v1598 = vpop.f32.mrf.mxu0
        %1599 = vmatprep.mubr.bf16.mxu0 0
        %1600 = vmatmul.mubr.bf16.gmra.mxu0 %v1445
        %v1601 = vpop.f32.mrf.mxu0
        %v1602 = vadd.f32 0.0, %v1601
        %v1603 = vpop.f32.mrf.mxu0
        %v1604 = vpop.f32.mrf.mxu0
        %v1605 = vadd.f32 0.0, %v1604
        %v1606 = vpop.f32.mrf.mxu0
        %1607 = vmatprep.mubr.bf16.mxu0 0
        %1608 = vmatmul.mubr.bf16.gmra.mxu0 %v1446
        %v1609 = vpop.f32.mrf.mxu0
        %v1610 = vadd.f32 0.0, %v1609
        %v1611 = vpop.f32.mrf.mxu0
        %v1612 = vpop.f32.mrf.mxu0
        %v1613 = vadd.f32 0.0, %v1612
        %v1614 = vpop.f32.mrf.mxu0
        %1615 = vmatprep.mubr.bf16.mxu0 0
        %1616 = vmatmul.mubr.bf16.gmra.mxu0 %v1447
        %v1617 = vpop.f32.mrf.mxu0
        %v1618 = vadd.f32 0.0, %v1617
        %v1619 = vpop.f32.mrf.mxu0
        %v1620 = vpop.f32.mrf.mxu0
        %v1621 = vadd.f32 0.0, %v1620
        %v1622 = vpop.f32.mrf.mxu0
        %1623 = vmatprep.mubr.bf16.mxu0 0
        %1624 = vmatmul.mubr.bf16.gmra.mxu0 %v1448
        %v1625 = vpop.f32.mrf.mxu0
        %v1626 = vadd.f32 0.0, %v1625
        %v1627 = vpop.f32.mrf.mxu0
        %v1628 = vpop.f32.mrf.mxu0
        %v1629 = vadd.f32 0.0, %v1628
        %v1630 = vpop.f32.mrf.mxu0
        %1631 = vmatprep.mubr.bf16.mxu0 0
        %1632 = vmatmul.mubr.bf16.gmra.mxu0 %v1449
        %v1633 = vpop.f32.mrf.mxu0
        %v1634 = vadd.f32 0.0, %v1633
        %v1635 = vpop.f32.mrf.mxu0
        %v1636 = vpop.f32.mrf.mxu0
        %v1637 = vadd.f32 0.0, %v1636
        %v1638 = vpop.f32.mrf.mxu0
        %1639 = vmatprep.mubr.bf16.mxu0 0
        %1640 = vmatmul.mubr.bf16.gmra.mxu0 %v1450
        %v1641 = vpop.f32.mrf.mxu0
        %v1642 = vadd.f32 0.0, %v1641
        %v1643 = vpop.f32.mrf.mxu0
        %v1644 = vpop.f32.mrf.mxu0
        %v1645 = vadd.f32 0.0, %v1644
        %v1646 = vpop.f32.mrf.mxu0
        %1647 = vmatprep.mubr.bf16.mxu0 0
        %1648 = vmatmul.mubr.bf16.gmra.mxu0 %v1451
        %v1649 = vpop.f32.mrf.mxu0
        %v1650 = vadd.f32 0.0, %v1649
        %v1651 = vpop.f32.mrf.mxu0
        %v1652 = vpop.f32.mrf.mxu0
        %v1653 = vadd.f32 0.0, %v1652
        %v1654 = vpop.f32.mrf.mxu0
        %1655 = vmatprep.mubr.bf16.mxu0 0
        %1656 = vmatmul.mubr.bf16.gmra.mxu0 %v1452
        %v1657 = vpop.f32.mrf.mxu0
        %v1658 = vadd.f32 0.0, %v1657
        %v1659 = vpop.f32.mrf.mxu0
        %v1660 = vpop.f32.mrf.mxu0
        %v1661 = vadd.f32 0.0, %v1660
        %v1662 = vpop.f32.mrf.mxu0
        %1663 = vmatprep.mubr.bf16.mxu0 0
        %1664 = vmatmul.mubr.bf16.gmra.mxu0 %v1453
        %v1665 = vpop.f32.mrf.mxu0
        %v1666 = vadd.f32 0.0, %v1665
        %v1667 = vpop.f32.mrf.mxu0
        %v1668 = vpop.f32.mrf.mxu0
        %v1669 = vadd.f32 0.0, %v1668
        %v1670 = vpop.f32.mrf.mxu0
        %1671 = vmatprep.mubr.bf16.mxu0 0
        %1672 = vmatmul.mubr.bf16.gmra.mxu0 %v1454
        %v1673 = vpop.f32.mrf.mxu0
        %v1674 = vadd.f32 0.0, %v1673
        %v1675 = vpop.f32.mrf.mxu0
        %v1676 = vpop.f32.mrf.mxu0
        %v1677 = vadd.f32 0.0, %v1676
        %v1678 = vpop.f32.mrf.mxu0
        %1679 = vdwg.mxu0
        %v1680 = vadd.f32 %v1101, %v1554
        %v1681 = vadd.f32 %v1104, %v1557
        %v1682 = vadd.f32 %v1109, %v1562
        %v1683 = vadd.f32 %v1112, %v1565
        %v1684 = vadd.f32 %v1117, %v1570
        %v1685 = vadd.f32 %v1120, %v1573
        %v1686 = vadd.f32 %v1125, %v1578
        %v1687 = vadd.f32 %v1128, %v1581
        %v1688 = vadd.f32 %v1133, %v1586
        %v1689 = vadd.f32 %v1136, %v1589
        %v1690 = vadd.f32 %v1141, %v1594
        %v1691 = vadd.f32 %v1144, %v1597
        %v1692 = vadd.f32 %v1149, %v1602
        %v1693 = vadd.f32 %v1152, %v1605
        %v1694 = vadd.f32 %v1157, %v1610
        %v1695 = vadd.f32 %v1160, %v1613
        %v1696 = vadd.f32 %v1165, %v1618
        %v1697 = vadd.f32 %v1168, %v1621
        %v1698 = vadd.f32 %v1173, %v1626
        %v1699 = vadd.f32 %v1176, %v1629
        %v1700 = vadd.f32 %v1181, %v1634
        %v1701 = vadd.f32 %v1184, %v1637
        %v1702 = vadd.f32 %v1189, %v1642
        %v1703 = vadd.f32 %v1192, %v1645
        %v1704 = vadd.f32 %v1197, %v1650
        %v1705 = vadd.f32 %v1200, %v1653
        %v1706 = vadd.f32 %v1205, %v1658
        %v1707 = vadd.f32 %v1208, %v1661
        %v1708 = vadd.f32 %v1213, %v1666
        %v1709 = vadd.f32 %v1216, %v1669
        %v1710 = vadd.f32 %v1221, %v1674
        %v1711 = vadd.f32 %v1224, %v1677
        %s1712 = scalar_lea.vmem %s179, 12
        %v1713 = vld [vmem:[%s1712] sm:$0xf]
        %v1714 = vld [vmem:[%s1712 + $0x4] sm:$0xf]
        %v1715 = vld [vmem:[%s1712 + $0xc] sm:$0xf]
        %v1716 = vld [vmem:[%s1712 + $0x10] sm:$0xf]
        %v1717 = vld [vmem:[%s1712 + $0x18] sm:$0xf]
        %v1718 = vld [vmem:[%s1712 + $0x1c] sm:$0xf]
        %v1719 = vld [vmem:[%s1712 + $0x24] sm:$0xf]
        %v1720 = vld [vmem:[%s1712 + $0x28] sm:$0xf]
        %v1721 = vld [vmem:[%s1712 + $0x30] sm:$0xf]
        %v1722 = vld [vmem:[%s1712 + $0x34] sm:$0xf]
        %v1723 = vld [vmem:[%s1712 + $0x3c] sm:$0xf]
        %v1724 = vld [vmem:[%s1712 + $0x40] sm:$0xf]
        %v1725 = vld [vmem:[%s1712 + $0x48] sm:$0xf]
        %v1726 = vld [vmem:[%s1712 + $0x4c] sm:$0xf]
        %v1727 = vld [vmem:[%s1712 + $0x54] sm:$0xf]
        %v1728 = vld [vmem:[%s1712 + $0x58] sm:$0xf]
        %v1729 = vld [vmem:[%s1712 + $0x60] sm:$0xf]
        %v1730 = vld [vmem:[%s1712 + $0x64] sm:$0xf]
        %v1731 = vld [vmem:[%s1712 + $0x6c] sm:$0xf]
        %v1732 = vld [vmem:[%s1712 + $0x70] sm:$0xf]
        %v1733 = vld [vmem:[%s1712 + $0x78] sm:$0xf]
        %v1734 = vld [vmem:[%s1712 + $0x7c] sm:$0xf]
        %v1735 = vld [vmem:[%s1712 + $0x84] sm:$0xf]
        %v1736 = vld [vmem:[%s1712 + $0x88] sm:$0xf]
        %v1737 = vld [vmem:[%s1712 + $0x90] sm:$0xf]
        %v1738 = vld [vmem:[%s1712 + $0x94] sm:$0xf]
        %v1739 = vld [vmem:[%s1712 + $0x9c] sm:$0xf]
        %v1740 = vld [vmem:[%s1712 + $0xa0] sm:$0xf]
        %v1741 = vld [vmem:[%s1712 + $0xa8] sm:$0xf]
        %v1742 = vld [vmem:[%s1712 + $0xac] sm:$0xf]
        %v1743 = vld [vmem:[%s1712 + $0xb4] sm:$0xf]
        %v1744 = vld [vmem:[%s1712 + $0xb8] sm:$0xf]
        %s1745 = scalar_lea.vmem %s1, 192
        %v1746 = vld [vmem:[%s1745] sm:$0xf]
        %v1747 = vld [vmem:[%s1745 + $0x4] sm:$0xf]
        %v1748 = vld [vmem:[%s1745 + $0x8] sm:$0xf]
        %v1749 = vld [vmem:[%s1745 + $0xc] sm:$0xf]
        %v1750 = vld [vmem:[%s1745 + $0x10] sm:$0xf]
        %v1751 = vld [vmem:[%s1745 + $0x14] sm:$0xf]
        %v1752 = vld [vmem:[%s1745 + $0x18] sm:$0xf]
        %v1753 = vld [vmem:[%s1745 + $0x1c] sm:$0xf]
        %v1754 = vld [vmem:[%s1745 + $0x20] sm:$0xf]
        %v1755 = vld [vmem:[%s1745 + $0x24] sm:$0xf]
        %v1756 = vld [vmem:[%s1745 + $0x28] sm:$0xf]
        %v1757 = vld [vmem:[%s1745 + $0x2c] sm:$0xf]
        %v1758 = vld [vmem:[%s1745 + $0x30] sm:$0xf]
        %v1759 = vld [vmem:[%s1745 + $0x34] sm:$0xf]
        %v1760 = vld [vmem:[%s1745 + $0x38] sm:$0xf]
        %v1761 = vld [vmem:[%s1745 + $0x3c] sm:$0xf]
        %v1794 = vunpack.c.l.b16 %v1713
        %v1795 = vunpack.c.l.b16 %v1714
        %v1796 = vunpack.c.l.b16 %v1715
        %v1797 = vunpack.c.l.b16 %v1716
        %v1798 = vunpack.c.l.b16 %v1717
        %v1799 = vunpack.c.l.b16 %v1718
        %v1800 = vunpack.c.l.b16 %v1719
        %v1801 = vunpack.c.l.b16 %v1720
        %v1802 = vunpack.c.l.b16 %v1721
        %v1803 = vunpack.c.l.b16 %v1722
        %v1804 = vunpack.c.l.b16 %v1723
        %v1805 = vunpack.c.l.b16 %v1724
        %v1806 = vunpack.c.l.b16 %v1725
        %v1807 = vunpack.c.l.b16 %v1726
        %v1808 = vunpack.c.l.b16 %v1727
        %v1809 = vunpack.c.l.b16 %v1728
        %v1810 = vunpack.c.l.b16 %v1729
        %v1811 = vunpack.c.l.b16 %v1730
        %v1812 = vunpack.c.l.b16 %v1731
        %v1813 = vunpack.c.l.b16 %v1732
        %v1814 = vunpack.c.l.b16 %v1733
        %v1815 = vunpack.c.l.b16 %v1734
        %v1816 = vunpack.c.l.b16 %v1735
        %v1817 = vunpack.c.l.b16 %v1736
        %v1818 = vunpack.c.l.b16 %v1737
        %v1819 = vunpack.c.l.b16 %v1738
        %v1820 = vunpack.c.l.b16 %v1739
        %v1821 = vunpack.c.l.b16 %v1740
        %v1822 = vunpack.c.l.b16 %v1741
        %v1823 = vunpack.c.l.b16 %v1742
        %v1824 = vunpack.c.l.b16 %v1743
        %v1825 = vunpack.c.l.b16 %v1744
        %v1826 = vpack.c.b16 %v1795, %v1794
        %v1827 = vpack.c.b16 %v1797, %v1796
        %v1828 = vpack.c.b16 %v1799, %v1798
        %v1829 = vpack.c.b16 %v1801, %v1800
        %v1830 = vpack.c.b16 %v1803, %v1802
        %v1831 = vpack.c.b16 %v1805, %v1804
        %v1832 = vpack.c.b16 %v1807, %v1806
        %v1833 = vpack.c.b16 %v1809, %v1808
        %v1834 = vpack.c.b16 %v1811, %v1810
        %v1835 = vpack.c.b16 %v1813, %v1812
        %v1836 = vpack.c.b16 %v1815, %v1814
        %v1837 = vpack.c.b16 %v1817, %v1816
        %v1838 = vpack.c.b16 %v1819, %v1818
        %v1839 = vpack.c.b16 %v1821, %v1820
        %v1840 = vpack.c.b16 %v1823, %v1822
        %v1841 = vpack.c.b16 %v1825, %v1824
        %v1874 = vunpack.c.l.b16 %v1746
        %v1875 = vunpack.c.l.b16 %v1747
        %v1876 = vunpack.c.l.b16 %v1748
        %v1877 = vunpack.c.l.b16 %v1749
        %v1878 = vunpack.c.l.b16 %v1750
        %v1879 = vunpack.c.l.b16 %v1751
        %v1880 = vunpack.c.l.b16 %v1752
        %v1881 = vunpack.c.l.b16 %v1753
        %v1882 = vunpack.c.l.b16 %v1754
        %v1883 = vunpack.c.l.b16 %v1755
        %v1884 = vunpack.c.l.b16 %v1756
        %v1885 = vunpack.c.l.b16 %v1757
        %v1886 = vunpack.c.l.b16 %v1758
        %v1887 = vunpack.c.l.b16 %v1759
        %v1888 = vunpack.c.l.b16 %v1760
        %v1889 = vunpack.c.l.b16 %v1761
        %v1890 = vpack.c.b16 %v1875, %v1874
        %v1891 = vpack.c.b16 %v1877, %v1876
        %v1892 = vpack.c.b16 %v1879, %v1878
        %v1893 = vpack.c.b16 %v1881, %v1880
        %v1894 = vpack.c.b16 %v1883, %v1882
        %v1895 = vpack.c.b16 %v1885, %v1884
        %v1896 = vpack.c.b16 %v1887, %v1886
        %v1897 = vpack.c.b16 %v1889, %v1888
        %1906 = vmatprep.subr.bf16.mxu0 0
        %1907 = vmatpush1.bf16.msra.mxu0 %v1897
        %1908 = vmatprep.subr.bf16.mxu0 0
        %1909 = vmatpush1.bf16.msra.mxu0 %v1896
        %1910 = vmatprep.subr.bf16.mxu0 0
        %1911 = vmatpush1.bf16.msra.mxu0 %v1895
        %1912 = vmatprep.subr.bf16.mxu0 0
        %1913 = vmatpush1.bf16.msra.mxu0 %v1894
        %1914 = vmatprep.subr.bf16.mxu0 0
        %1915 = vmatpush1.bf16.msra.mxu0 %v1893
        %1916 = vmatprep.subr.bf16.mxu0 0
        %1917 = vmatpush1.bf16.msra.mxu0 %v1892
        %1918 = vmatprep.subr.bf16.mxu0 0
        %1919 = vmatpush1.bf16.msra.mxu0 %v1891
        %1920 = vmatprep.subr.bf16.mxu0 0
        %1921 = vmatpush1.bf16.msra.mxu0 %v1890
        %1922 = vmatprep.subr.bf16.mxu0 0
        %1923 = vmatpush2.bf16.msra.mxu0 0
        %1924 = vmatprep.subr.bf16.mxu0 0
        %1925 = vmatpush2.bf16.msra.mxu0 0
        %1926 = vmatprep.subr.bf16.mxu0 0
        %1927 = vmatpush2.bf16.msra.mxu0 0
        %1928 = vmatprep.subr.bf16.mxu0 0
        %1929 = vmatpush2.bf16.msra.mxu0 0
        %1930 = vmatprep.subr.bf16.mxu0 0
        %1931 = vmatpush2.bf16.msra.mxu0 0
        %1932 = vmatprep.subr.bf16.mxu0 0
        %1933 = vmatpush2.bf16.msra.mxu0 0
        %1934 = vmatprep.subr.bf16.mxu0 0
        %1935 = vmatpush2.bf16.msra.mxu0 0
        %1936 = vmatprep.subr.bf16.mxu0 0
        %1937 = vmatpush2.bf16.msra.mxu0 0
        %1938 = vmatprep.mubr.bf16.mxu0 0
        %1939 = vmatmul.mubr.bf16.gmra.mxu0 %v1826
        %v1940 = vpop.f32.mrf.mxu0
        %v1941 = vadd.f32 0.0, %v1940
        %v1942 = vpop.f32.mrf.mxu0
        %v1943 = vpop.f32.mrf.mxu0
        %v1944 = vadd.f32 0.0, %v1943
        %v1945 = vpop.f32.mrf.mxu0
        %1946 = vmatprep.mubr.bf16.mxu0 0
        %1947 = vmatmul.mubr.bf16.gmra.mxu0 %v1827
        %v1948 = vpop.f32.mrf.mxu0
        %v1949 = vadd.f32 0.0, %v1948
        %v1950 = vpop.f32.mrf.mxu0
        %v1951 = vpop.f32.mrf.mxu0
        %v1952 = vadd.f32 0.0, %v1951
        %v1953 = vpop.f32.mrf.mxu0
        %1954 = vmatprep.mubr.bf16.mxu0 0
        %1955 = vmatmul.mubr.bf16.gmra.mxu0 %v1828
        %v1956 = vpop.f32.mrf.mxu0
        %v1957 = vadd.f32 0.0, %v1956
        %v1958 = vpop.f32.mrf.mxu0
        %v1959 = vpop.f32.mrf.mxu0
        %v1960 = vadd.f32 0.0, %v1959
        %v1961 = vpop.f32.mrf.mxu0
        %1962 = vmatprep.mubr.bf16.mxu0 0
        %1963 = vmatmul.mubr.bf16.gmra.mxu0 %v1829
        %v1964 = vpop.f32.mrf.mxu0
        %v1965 = vadd.f32 0.0, %v1964
        %v1966 = vpop.f32.mrf.mxu0
        %v1967 = vpop.f32.mrf.mxu0
        %v1968 = vadd.f32 0.0, %v1967
        %v1969 = vpop.f32.mrf.mxu0
        %1970 = vmatprep.mubr.bf16.mxu0 0
        %1971 = vmatmul.mubr.bf16.gmra.mxu0 %v1830
        %v1972 = vpop.f32.mrf.mxu0
        %v1973 = vadd.f32 0.0, %v1972
        %v1974 = vpop.f32.mrf.mxu0
        %v1975 = vpop.f32.mrf.mxu0
        %v1976 = vadd.f32 0.0, %v1975
        %v1977 = vpop.f32.mrf.mxu0
        %1978 = vmatprep.mubr.bf16.mxu0 0
        %1979 = vmatmul.mubr.bf16.gmra.mxu0 %v1831
        %v1980 = vpop.f32.mrf.mxu0
        %v1981 = vadd.f32 0.0, %v1980
        %v1982 = vpop.f32.mrf.mxu0
        %v1983 = vpop.f32.mrf.mxu0
        %v1984 = vadd.f32 0.0, %v1983
        %v1985 = vpop.f32.mrf.mxu0
        %1986 = vmatprep.mubr.bf16.mxu0 0
        %1987 = vmatmul.mubr.bf16.gmra.mxu0 %v1832
        %v1988 = vpop.f32.mrf.mxu0
        %v1989 = vadd.f32 0.0, %v1988
        %v1990 = vpop.f32.mrf.mxu0
        %v1991 = vpop.f32.mrf.mxu0
        %v1992 = vadd.f32 0.0, %v1991
        %v1993 = vpop.f32.mrf.mxu0
        %1994 = vmatprep.mubr.bf16.mxu0 0
        %1995 = vmatmul.mubr.bf16.gmra.mxu0 %v1833
        %v1996 = vpop.f32.mrf.mxu0
        %v1997 = vadd.f32 0.0, %v1996
        %v1998 = vpop.f32.mrf.mxu0
        %v1999 = vpop.f32.mrf.mxu0
        %v2000 = vadd.f32 0.0, %v1999
        %v2001 = vpop.f32.mrf.mxu0
        %2002 = vmatprep.mubr.bf16.mxu0 0
        %2003 = vmatmul.mubr.bf16.gmra.mxu0 %v1834
        %v2004 = vpop.f32.mrf.mxu0
        %v2005 = vadd.f32 0.0, %v2004
        %v2006 = vpop.f32.mrf.mxu0
        %v2007 = vpop.f32.mrf.mxu0
        %v2008 = vadd.f32 0.0, %v2007
        %v2009 = vpop.f32.mrf.mxu0
        %2010 = vmatprep.mubr.bf16.mxu0 0
        %2011 = vmatmul.mubr.bf16.gmra.mxu0 %v1835
        %v2012 = vpop.f32.mrf.mxu0
        %v2013 = vadd.f32 0.0, %v2012
        %v2014 = vpop.f32.mrf.mxu0
        %v2015 = vpop.f32.mrf.mxu0
        %v2016 = vadd.f32 0.0, %v2015
        %v2017 = vpop.f32.mrf.mxu0
        %2018 = vmatprep.mubr.bf16.mxu0 0
        %2019 = vmatmul.mubr.bf16.gmra.mxu0 %v1836
        %v2020 = vpop.f32.mrf.mxu0
        %v2021 = vadd.f32 0.0, %v2020
        %v2022 = vpop.f32.mrf.mxu0
        %v2023 = vpop.f32.mrf.mxu0
        %v2024 = vadd.f32 0.0, %v2023
        %v2025 = vpop.f32.mrf.mxu0
        %2026 = vmatprep.mubr.bf16.mxu0 0
        %2027 = vmatmul.mubr.bf16.gmra.mxu0 %v1837
        %v2028 = vpop.f32.mrf.mxu0
        %v2029 = vadd.f32 0.0, %v2028
        %v2030 = vpop.f32.mrf.mxu0
        %v2031 = vpop.f32.mrf.mxu0
        %v2032 = vadd.f32 0.0, %v2031
        %v2033 = vpop.f32.mrf.mxu0
        %2034 = vmatprep.mubr.bf16.mxu0 0
        %2035 = vmatmul.mubr.bf16.gmra.mxu0 %v1838
        %v2036 = vpop.f32.mrf.mxu0
        %v2037 = vadd.f32 0.0, %v2036
        %v2038 = vpop.f32.mrf.mxu0
        %v2039 = vpop.f32.mrf.mxu0
        %v2040 = vadd.f32 0.0, %v2039
        %v2041 = vpop.f32.mrf.mxu0
        %2042 = vmatprep.mubr.bf16.mxu0 0
        %2043 = vmatmul.mubr.bf16.gmra.mxu0 %v1839
        %v2044 = vpop.f32.mrf.mxu0
        %v2045 = vadd.f32 0.0, %v2044
        %v2046 = vpop.f32.mrf.mxu0
        %v2047 = vpop.f32.mrf.mxu0
        %v2048 = vadd.f32 0.0, %v2047
        %v2049 = vpop.f32.mrf.mxu0
        %2050 = vmatprep.mubr.bf16.mxu0 0
        %2051 = vmatmul.mubr.bf16.gmra.mxu0 %v1840
        %v2052 = vpop.f32.mrf.mxu0
        %v2053 = vadd.f32 0.0, %v2052
        %v2054 = vpop.f32.mrf.mxu0
        %v2055 = vpop.f32.mrf.mxu0
        %v2056 = vadd.f32 0.0, %v2055
        %v2057 = vpop.f32.mrf.mxu0
        %2058 = vmatprep.mubr.bf16.mxu0 0
        %2059 = vmatmul.mubr.bf16.gmra.mxu0 %v1841
        %v2060 = vpop.f32.mrf.mxu0
        %v2061 = vadd.f32 0.0, %v2060
        %v2062 = vpop.f32.mrf.mxu0
        %v2063 = vpop.f32.mrf.mxu0
        %v2064 = vadd.f32 0.0, %v2063
        %v2065 = vpop.f32.mrf.mxu0
        %2066 = vdwg.mxu0
        %v2067 = vadd.f32 %v1680, %v1941
        %v2068 = vadd.f32 %v1681, %v1944
        %v2069 = vadd.f32 %v1682, %v1949
        %v2070 = vadd.f32 %v1683, %v1952
        %v2071 = vadd.f32 %v1684, %v1957
        %v2072 = vadd.f32 %v1685, %v1960
        %v2073 = vadd.f32 %v1686, %v1965
        %v2074 = vadd.f32 %v1687, %v1968
        %v2075 = vadd.f32 %v1688, %v1973
        %v2076 = vadd.f32 %v1689, %v1976
        %v2077 = vadd.f32 %v1690, %v1981
        %v2078 = vadd.f32 %v1691, %v1984
        %v2079 = vadd.f32 %v1692, %v1989
        %v2080 = vadd.f32 %v1693, %v1992
        %v2081 = vadd.f32 %v1694, %v1997
        %v2082 = vadd.f32 %v1695, %v2000
        %v2083 = vadd.f32 %v1696, %v2005
        %v2084 = vadd.f32 %v1697, %v2008
        %v2085 = vadd.f32 %v1698, %v2013
        %v2086 = vadd.f32 %v1699, %v2016
        %v2087 = vadd.f32 %v1700, %v2021
        %v2088 = vadd.f32 %v1701, %v2024
        %v2089 = vadd.f32 %v1702, %v2029
        %v2090 = vadd.f32 %v1703, %v2032
        %v2091 = vadd.f32 %v1704, %v2037
        %v2092 = vadd.f32 %v1705, %v2040
        %v2093 = vadd.f32 %v1706, %v2045
        %v2094 = vadd.f32 %v1707, %v2048
        %v2095 = vadd.f32 %v1708, %v2053
        %v2096 = vadd.f32 %v1709, %v2056
        %v2097 = vadd.f32 %v1710, %v2061
        %v2098 = vadd.f32 %v1711, %v2064
        %v2099 = vld [vmem:[%s1712] sm:$0xf]
        %v2100 = vld [vmem:[%s1712 + $0x4] sm:$0xf]
        %v2101 = vld [vmem:[%s1712 + $0x8] sm:$0x1]
        %v2102 = vld [vmem:[%s1712 + $0xc] sm:$0xf]
        %v2103 = vld [vmem:[%s1712 + $0x10] sm:$0xf]
        %v2104 = vld [vmem:[%s1712 + $0x14] sm:$0x1]
        %v2105 = vld [vmem:[%s1712 + $0x18] sm:$0xf]
        %v2106 = vld [vmem:[%s1712 + $0x1c] sm:$0xf]
        %v2107 = vld [vmem:[%s1712 + $0x20] sm:$0x1]
        %v2108 = vld [vmem:[%s1712 + $0x24] sm:$0xf]
        %v2109 = vld [vmem:[%s1712 + $0x28] sm:$0xf]
        %v2110 = vld [vmem:[%s1712 + $0x2c] sm:$0x1]
        %v2111 = vld [vmem:[%s1712 + $0x30] sm:$0xf]
        %v2112 = vld [vmem:[%s1712 + $0x34] sm:$0xf]
        %v2113 = vld [vmem:[%s1712 + $0x38] sm:$0x1]
        %v2114 = vld [vmem:[%s1712 + $0x3c] sm:$0xf]
        %v2115 = vld [vmem:[%s1712 + $0x40] sm:$0xf]
        %v2116 = vld [vmem:[%s1712 + $0x44] sm:$0x1]
        %v2117 = vld [vmem:[%s1712 + $0x48] sm:$0xf]
        %v2118 = vld [vmem:[%s1712 + $0x4c] sm:$0xf]
        %v2119 = vld [vmem:[%s1712 + $0x50] sm:$0x1]
        %v2120 = vld [vmem:[%s1712 + $0x54] sm:$0xf]
        %v2121 = vld [vmem:[%s1712 + $0x58] sm:$0xf]
        %v2122 = vld [vmem:[%s1712 + $0x5c] sm:$0x1]
        %v2123 = vld [vmem:[%s1712 + $0x60] sm:$0xf]
        %v2124 = vld [vmem:[%s1712 + $0x64] sm:$0xf]
        %v2125 = vld [vmem:[%s1712 + $0x68] sm:$0x1]
        %v2126 = vld [vmem:[%s1712 + $0x6c] sm:$0xf]
        %v2127 = vld [vmem:[%s1712 + $0x70] sm:$0xf]
        %v2128 = vld [vmem:[%s1712 + $0x74] sm:$0x1]
        %v2129 = vld [vmem:[%s1712 + $0x78] sm:$0xf]
        %v2130 = vld [vmem:[%s1712 + $0x7c] sm:$0xf]
        %v2131 = vld [vmem:[%s1712 + $0x80] sm:$0x1]
        %v2132 = vld [vmem:[%s1712 + $0x84] sm:$0xf]
        %v2133 = vld [vmem:[%s1712 + $0x88] sm:$0xf]
        %v2134 = vld [vmem:[%s1712 + $0x8c] sm:$0x1]
        %v2135 = vld [vmem:[%s1712 + $0x90] sm:$0xf]
        %v2136 = vld [vmem:[%s1712 + $0x94] sm:$0xf]
        %v2137 = vld [vmem:[%s1712 + $0x98] sm:$0x1]
        %v2138 = vld [vmem:[%s1712 + $0x9c] sm:$0xf]
        %v2139 = vld [vmem:[%s1712 + $0xa0] sm:$0xf]
        %v2140 = vld [vmem:[%s1712 + $0xa4] sm:$0x1]
        %v2141 = vld [vmem:[%s1712 + $0xa8] sm:$0xf]
        %v2142 = vld [vmem:[%s1712 + $0xac] sm:$0xf]
        %v2143 = vld [vmem:[%s1712 + $0xb0] sm:$0x1]
        %v2144 = vld [vmem:[%s1712 + $0xb4] sm:$0xf]
        %v2145 = vld [vmem:[%s1712 + $0xb8] sm:$0xf]
        %v2146 = vld [vmem:[%s1712 + $0xbc] sm:$0x1]
        %v2148 = vshrl.u32 %v2099, 16
        %v2150 = vrot.slane %v2148, 4
        %v2151 = vshll.u32 %v2099, 16
        %v2153 = vrot.slane %v2151, 5
        %v2154 = vor.u32 %v2150, %v2153
        %v2155 = vrot.slane %v2154, 4
        %v2157 = vshll.u32 %v2100, 16
        %v2159 = vrot.slane %v2157, 5
        %v2160 = vsel %vm247, %v2155, %v2159
        %v2161 = vshrl.u32 %v2100, 16
        %v2163 = vrot.slane %v2161, 4
        %v2164 = vor.u32 %v2163, %v2159
        %v2165 = vrot.slane %v2164, 4
        %v2167 = vshll.u32 %v2101, 16
        %v2169 = vrot.slane %v2167, 5
        %v2170 = vsel %vm247, %v2165, %v2169
        %v2172 = vshrl.u32 %v2102, 16
        %v2174 = vrot.slane %v2172, 4
        %v2175 = vshll.u32 %v2102, 16
        %v2177 = vrot.slane %v2175, 5
        %v2178 = vor.u32 %v2174, %v2177
        %v2179 = vrot.slane %v2178, 4
        %v2181 = vshll.u32 %v2103, 16
        %v2183 = vrot.slane %v2181, 5
        %v2184 = vsel %vm247, %v2179, %v2183
        %v2185 = vshrl.u32 %v2103, 16
        %v2187 = vrot.slane %v2185, 4
        %v2188 = vor.u32 %v2187, %v2183
        %v2189 = vrot.slane %v2188, 4
        %v2191 = vshll.u32 %v2104, 16
        %v2193 = vrot.slane %v2191, 5
        %v2194 = vsel %vm247, %v2189, %v2193
        %v2196 = vshrl.u32 %v2105, 16
        %v2198 = vrot.slane %v2196, 4
        %v2199 = vshll.u32 %v2105, 16
        %v2201 = vrot.slane %v2199, 5
        %v2202 = vor.u32 %v2198, %v2201
        %v2203 = vrot.slane %v2202, 4
        %v2205 = vshll.u32 %v2106, 16
        %v2207 = vrot.slane %v2205, 5
        %v2208 = vsel %vm247, %v2203, %v2207
        %v2209 = vshrl.u32 %v2106, 16
        %v2211 = vrot.slane %v2209, 4
        %v2212 = vor.u32 %v2211, %v2207
        %v2213 = vrot.slane %v2212, 4
        %v2215 = vshll.u32 %v2107, 16
        %v2217 = vrot.slane %v2215, 5
        %v2218 = vsel %vm247, %v2213, %v2217
        %v2220 = vshrl.u32 %v2108, 16
        %v2222 = vrot.slane %v2220, 4
        %v2223 = vshll.u32 %v2108, 16
        %v2225 = vrot.slane %v2223, 5
        %v2226 = vor.u32 %v2222, %v2225
        %v2227 = vrot.slane %v2226, 4
        %v2229 = vshll.u32 %v2109, 16
        %v2231 = vrot.slane %v2229, 5
        %v2232 = vsel %vm247, %v2227, %v2231
        %v2233 = vshrl.u32 %v2109, 16
        %v2235 = vrot.slane %v2233, 4
        %v2236 = vor.u32 %v2235, %v2231
        %v2237 = vrot.slane %v2236, 4
        %v2239 = vshll.u32 %v2110, 16
        %v2241 = vrot.slane %v2239, 5
        %v2242 = vsel %vm247, %v2237, %v2241
        %v2244 = vshrl.u32 %v2111, 16
        %v2246 = vrot.slane %v2244, 4
        %v2247 = vshll.u32 %v2111, 16
        %v2249 = vrot.slane %v2247, 5
        %v2250 = vor.u32 %v2246, %v2249
        %v2251 = vrot.slane %v2250, 4
        %v2253 = vshll.u32 %v2112, 16
        %v2255 = vrot.slane %v2253, 5
        %v2256 = vsel %vm247, %v2251, %v2255
        %v2257 = vshrl.u32 %v2112, 16
        %v2259 = vrot.slane %v2257, 4
        %v2260 = vor.u32 %v2259, %v2255
        %v2261 = vrot.slane %v2260, 4
        %v2263 = vshll.u32 %v2113, 16
        %v2265 = vrot.slane %v2263, 5
        %v2266 = vsel %vm247, %v2261, %v2265
        %v2268 = vshrl.u32 %v2114, 16
        %v2270 = vrot.slane %v2268, 4
        %v2271 = vshll.u32 %v2114, 16
        %v2273 = vrot.slane %v2271, 5
        %v2274 = vor.u32 %v2270, %v2273
        %v2275 = vrot.slane %v2274, 4
        %v2277 = vshll.u32 %v2115, 16
        %v2279 = vrot.slane %v2277, 5
        %v2280 = vsel %vm247, %v2275, %v2279
        %v2281 = vshrl.u32 %v2115, 16
        %v2283 = vrot.slane %v2281, 4
        %v2284 = vor.u32 %v2283, %v2279
        %v2285 = vrot.slane %v2284, 4
        %v2287 = vshll.u32 %v2116, 16
        %v2289 = vrot.slane %v2287, 5
        %v2290 = vsel %vm247, %v2285, %v2289
        %v2292 = vshrl.u32 %v2117, 16
        %v2294 = vrot.slane %v2292, 4
        %v2295 = vshll.u32 %v2117, 16
        %v2297 = vrot.slane %v2295, 5
        %v2298 = vor.u32 %v2294, %v2297
        %v2299 = vrot.slane %v2298, 4
        %v2301 = vshll.u32 %v2118, 16
        %v2303 = vrot.slane %v2301, 5
        %v2304 = vsel %vm247, %v2299, %v2303
        %v2305 = vshrl.u32 %v2118, 16
        %v2307 = vrot.slane %v2305, 4
        %v2308 = vor.u32 %v2307, %v2303
        %v2309 = vrot.slane %v2308, 4
        %v2311 = vshll.u32 %v2119, 16
        %v2313 = vrot.slane %v2311, 5
        %v2314 = vsel %vm247, %v2309, %v2313
        %v2316 = vshrl.u32 %v2120, 16
        %v2318 = vrot.slane %v2316, 4
        %v2319 = vshll.u32 %v2120, 16
        %v2321 = vrot.slane %v2319, 5
        %v2322 = vor.u32 %v2318, %v2321
        %v2323 = vrot.slane %v2322, 4
        %v2325 = vshll.u32 %v2121, 16
        %v2327 = vrot.slane %v2325, 5
        %v2328 = vsel %vm247, %v2323, %v2327
        %v2329 = vshrl.u32 %v2121, 16
        %v2331 = vrot.slane %v2329, 4
        %v2332 = vor.u32 %v2331, %v2327
        %v2333 = vrot.slane %v2332, 4
        %v2335 = vshll.u32 %v2122, 16
        %v2337 = vrot.slane %v2335, 5
        %v2338 = vsel %vm247, %v2333, %v2337
        %v2340 = vshrl.u32 %v2123, 16
        %v2342 = vrot.slane %v2340, 4
        %v2343 = vshll.u32 %v2123, 16
        %v2345 = vrot.slane %v2343, 5
        %v2346 = vor.u32 %v2342, %v2345
        %v2347 = vrot.slane %v2346, 4
        %v2349 = vshll.u32 %v2124, 16
        %v2351 = vrot.slane %v2349, 5
        %v2352 = vsel %vm247, %v2347, %v2351
        %v2353 = vshrl.u32 %v2124, 16
        %v2355 = vrot.slane %v2353, 4
        %v2356 = vor.u32 %v2355, %v2351
        %v2357 = vrot.slane %v2356, 4
        %v2359 = vshll.u32 %v2125, 16
        %v2361 = vrot.slane %v2359, 5
        %v2362 = vsel %vm247, %v2357, %v2361
        %v2364 = vshrl.u32 %v2126, 16
        %v2366 = vrot.slane %v2364, 4
        %v2367 = vshll.u32 %v2126, 16
        %v2369 = vrot.slane %v2367, 5
        %v2370 = vor.u32 %v2366, %v2369
        %v2371 = vrot.slane %v2370, 4
        %v2373 = vshll.u32 %v2127, 16
        %v2375 = vrot.slane %v2373, 5
        %v2376 = vsel %vm247, %v2371, %v2375
        %v2377 = vshrl.u32 %v2127, 16
        %v2379 = vrot.slane %v2377, 4
        %v2380 = vor.u32 %v2379, %v2375
        %v2381 = vrot.slane %v2380, 4
        %v2383 = vshll.u32 %v2128, 16
        %v2385 = vrot.slane %v2383, 5
        %v2386 = vsel %vm247, %v2381, %v2385
        %v2388 = vshrl.u32 %v2129, 16
        %v2390 = vrot.slane %v2388, 4
        %v2391 = vshll.u32 %v2129, 16
        %v2393 = vrot.slane %v2391, 5
        %v2394 = vor.u32 %v2390, %v2393
        %v2395 = vrot.slane %v2394, 4
        %v2397 = vshll.u32 %v2130, 16
        %v2399 = vrot.slane %v2397, 5
        %v2400 = vsel %vm247, %v2395, %v2399
        %v2401 = vshrl.u32 %v2130, 16
        %v2403 = vrot.slane %v2401, 4
        %v2404 = vor.u32 %v2403, %v2399
        %v2405 = vrot.slane %v2404, 4
        %v2407 = vshll.u32 %v2131, 16
        %v2409 = vrot.slane %v2407, 5
        %v2410 = vsel %vm247, %v2405, %v2409
        %v2412 = vshrl.u32 %v2132, 16
        %v2414 = vrot.slane %v2412, 4
        %v2415 = vshll.u32 %v2132, 16
        %v2417 = vrot.slane %v2415, 5
        %v2418 = vor.u32 %v2414, %v2417
        %v2419 = vrot.slane %v2418, 4
        %v2421 = vshll.u32 %v2133, 16
        %v2423 = vrot.slane %v2421, 5
        %v2424 = vsel %vm247, %v2419, %v2423
        %v2425 = vshrl.u32 %v2133, 16
        %v2427 = vrot.slane %v2425, 4
        %v2428 = vor.u32 %v2427, %v2423
        %v2429 = vrot.slane %v2428, 4
        %v2431 = vshll.u32 %v2134, 16
        %v2433 = vrot.slane %v2431, 5
        %v2434 = vsel %vm247, %v2429, %v2433
        %v2436 = vshrl.u32 %v2135, 16
        %v2438 = vrot.slane %v2436, 4
        %v2439 = vshll.u32 %v2135, 16
        %v2441 = vrot.slane %v2439, 5
        %v2442 = vor.u32 %v2438, %v2441
        %v2443 = vrot.slane %v2442, 4
        %v2445 = vshll.u32 %v2136, 16
        %v2447 = vrot.slane %v2445, 5
        %v2448 = vsel %vm247, %v2443, %v2447
        %v2449 = vshrl.u32 %v2136, 16
        %v2451 = vrot.slane %v2449, 4
        %v2452 = vor.u32 %v2451, %v2447
        %v2453 = vrot.slane %v2452, 4
        %v2455 = vshll.u32 %v2137, 16
        %v2457 = vrot.slane %v2455, 5
        %v2458 = vsel %vm247, %v2453, %v2457
        %v2460 = vshrl.u32 %v2138, 16
        %v2462 = vrot.slane %v2460, 4
        %v2463 = vshll.u32 %v2138, 16
        %v2465 = vrot.slane %v2463, 5
        %v2466 = vor.u32 %v2462, %v2465
        %v2467 = vrot.slane %v2466, 4
        %v2469 = vshll.u32 %v2139, 16
        %v2471 = vrot.slane %v2469, 5
        %v2472 = vsel %vm247, %v2467, %v2471
        %v2473 = vshrl.u32 %v2139, 16
        %v2475 = vrot.slane %v2473, 4
        %v2476 = vor.u32 %v2475, %v2471
        %v2477 = vrot.slane %v2476, 4
        %v2479 = vshll.u32 %v2140, 16
        %v2481 = vrot.slane %v2479, 5
        %v2482 = vsel %vm247, %v2477, %v2481
        %v2484 = vshrl.u32 %v2141, 16
        %v2486 = vrot.slane %v2484, 4
        %v2487 = vshll.u32 %v2141, 16
        %v2489 = vrot.slane %v2487, 5
        %v2490 = vor.u32 %v2486, %v2489
        %v2491 = vrot.slane %v2490, 4
        %v2493 = vshll.u32 %v2142, 16
        %v2495 = vrot.slane %v2493, 5
        %v2496 = vsel %vm247, %v2491, %v2495
        %v2497 = vshrl.u32 %v2142, 16
        %v2499 = vrot.slane %v2497, 4
        %v2500 = vor.u32 %v2499, %v2495
        %v2501 = vrot.slane %v2500, 4
        %v2503 = vshll.u32 %v2143, 16
        %v2505 = vrot.slane %v2503, 5
        %v2506 = vsel %vm247, %v2501, %v2505
        %v2508 = vshrl.u32 %v2144, 16
        %v2510 = vrot.slane %v2508, 4
        %v2511 = vshll.u32 %v2144, 16
        %v2513 = vrot.slane %v2511, 5
        %v2514 = vor.u32 %v2510, %v2513
        %v2515 = vrot.slane %v2514, 4
        %v2517 = vshll.u32 %v2145, 16
        %v2519 = vrot.slane %v2517, 5
        %v2520 = vsel %vm247, %v2515, %v2519
        %v2521 = vshrl.u32 %v2145, 16
        %v2523 = vrot.slane %v2521, 4
        %v2524 = vor.u32 %v2523, %v2519
        %v2525 = vrot.slane %v2524, 4
        %v2527 = vshll.u32 %v2146, 16
        %v2529 = vrot.slane %v2527, 5
        %v2530 = vsel %vm247, %v2525, %v2529
        %s2531 = scalar_lea.vmem %s1, 256
        %v2532 = vld [vmem:[%s2531] sm:$0xf]
        %v2533 = vld [vmem:[%s2531 + $0x4] sm:$0xf]
        %v2534 = vld [vmem:[%s2531 + $0x8] sm:$0xf]
        %v2535 = vld [vmem:[%s2531 + $0xc] sm:$0xf]
        %v2536 = vld [vmem:[%s2531 + $0x10] sm:$0xf]
        %v2537 = vld [vmem:[%s2531 + $0x14] sm:$0xf]
        %v2538 = vld [vmem:[%s2531 + $0x18] sm:$0xf]
        %v2539 = vld [vmem:[%s2531 + $0x1c] sm:$0xf]
        %v2540 = vld [vmem:[%s2531 + $0x20] sm:$0xf]
        %v2541 = vld [vmem:[%s2531 + $0x24] sm:$0xf]
        %v2542 = vld [vmem:[%s2531 + $0x28] sm:$0xf]
        %v2543 = vld [vmem:[%s2531 + $0x2c] sm:$0xf]
        %v2544 = vld [vmem:[%s2531 + $0x30] sm:$0xf]
        %v2545 = vld [vmem:[%s2531 + $0x34] sm:$0xf]
        %v2546 = vld [vmem:[%s2531 + $0x38] sm:$0xf]
        %v2547 = vld [vmem:[%s2531 + $0x3c] sm:$0xf]
        %v2548 = vunpack.c.l.b16 %v2160
        %v2549 = vunpack.c.l.b16 %v2170
        %v2550 = vunpack.c.l.b16 %v2184
        %v2551 = vunpack.c.l.b16 %v2194
        %v2552 = vunpack.c.l.b16 %v2208
        %v2553 = vunpack.c.l.b16 %v2218
        %v2554 = vunpack.c.l.b16 %v2232
        %v2555 = vunpack.c.l.b16 %v2242
        %v2556 = vunpack.c.l.b16 %v2256
        %v2557 = vunpack.c.l.b16 %v2266
        %v2558 = vunpack.c.l.b16 %v2280
        %v2559 = vunpack.c.l.b16 %v2290
        %v2560 = vunpack.c.l.b16 %v2304
        %v2561 = vunpack.c.l.b16 %v2314
        %v2562 = vunpack.c.l.b16 %v2328
        %v2563 = vunpack.c.l.b16 %v2338
        %v2564 = vunpack.c.l.b16 %v2352
        %v2565 = vunpack.c.l.b16 %v2362
        %v2566 = vunpack.c.l.b16 %v2376
        %v2567 = vunpack.c.l.b16 %v2386
        %v2568 = vunpack.c.l.b16 %v2400
        %v2569 = vunpack.c.l.b16 %v2410
        %v2570 = vunpack.c.l.b16 %v2424
        %v2571 = vunpack.c.l.b16 %v2434
        %v2572 = vunpack.c.l.b16 %v2448
        %v2573 = vunpack.c.l.b16 %v2458
        %v2574 = vunpack.c.l.b16 %v2472
        %v2575 = vunpack.c.l.b16 %v2482
        %v2576 = vunpack.c.l.b16 %v2496
        %v2577 = vunpack.c.l.b16 %v2506
        %v2578 = vunpack.c.l.b16 %v2520
        %v2579 = vunpack.c.l.b16 %v2530
        %v2580 = vpack.c.b16 %v2549, %v2548
        %v2581 = vpack.c.b16 %v2551, %v2550
        %v2582 = vpack.c.b16 %v2553, %v2552
        %v2583 = vpack.c.b16 %v2555, %v2554
        %v2584 = vpack.c.b16 %v2557, %v2556
        %v2585 = vpack.c.b16 %v2559, %v2558
        %v2586 = vpack.c.b16 %v2561, %v2560
        %v2587 = vpack.c.b16 %v2563, %v2562
        %v2588 = vpack.c.b16 %v2565, %v2564
        %v2589 = vpack.c.b16 %v2567, %v2566
        %v2590 = vpack.c.b16 %v2569, %v2568
        %v2591 = vpack.c.b16 %v2571, %v2570
        %v2592 = vpack.c.b16 %v2573, %v2572
        %v2593 = vpack.c.b16 %v2575, %v2574
        %v2594 = vpack.c.b16 %v2577, %v2576
        %v2595 = vpack.c.b16 %v2579, %v2578
        %v2628 = vunpack.c.l.b16 %v2532
        %v2629 = vunpack.c.l.b16 %v2533
        %v2630 = vunpack.c.l.b16 %v2534
        %v2631 = vunpack.c.l.b16 %v2535
        %v2632 = vunpack.c.l.b16 %v2536
        %v2633 = vunpack.c.l.b16 %v2537
        %v2634 = vunpack.c.l.b16 %v2538
        %v2635 = vunpack.c.l.b16 %v2539
        %v2636 = vunpack.c.l.b16 %v2540
        %v2637 = vunpack.c.l.b16 %v2541
        %v2638 = vunpack.c.l.b16 %v2542
        %v2639 = vunpack.c.l.b16 %v2543
        %v2640 = vunpack.c.l.b16 %v2544
        %v2641 = vunpack.c.l.b16 %v2545
        %v2642 = vunpack.c.l.b16 %v2546
        %v2643 = vunpack.c.l.b16 %v2547
        %v2644 = vpack.c.b16 %v2629, %v2628
        %v2645 = vpack.c.b16 %v2631, %v2630
        %v2646 = vpack.c.b16 %v2633, %v2632
        %v2647 = vpack.c.b16 %v2635, %v2634
        %v2648 = vpack.c.b16 %v2637, %v2636
        %v2649 = vpack.c.b16 %v2639, %v2638
        %v2650 = vpack.c.b16 %v2641, %v2640
        %v2651 = vpack.c.b16 %v2643, %v2642
        %2660 = vmatprep.subr.bf16.mxu0 0
        %2661 = vmatpush1.bf16.msra.mxu0 %v2651
        %2662 = vmatprep.subr.bf16.mxu0 0
        %2663 = vmatpush1.bf16.msra.mxu0 %v2650
        %2664 = vmatprep.subr.bf16.mxu0 0
        %2665 = vmatpush1.bf16.msra.mxu0 %v2649
        %2666 = vmatprep.subr.bf16.mxu0 0
        %2667 = vmatpush1.bf16.msra.mxu0 %v2648
        %2668 = vmatprep.subr.bf16.mxu0 0
        %2669 = vmatpush1.bf16.msra.mxu0 %v2647
        %2670 = vmatprep.subr.bf16.mxu0 0
        %2671 = vmatpush1.bf16.msra.mxu0 %v2646
        %2672 = vmatprep.subr.bf16.mxu0 0
        %2673 = vmatpush1.bf16.msra.mxu0 %v2645
        %2674 = vmatprep.subr.bf16.mxu0 0
        %2675 = vmatpush1.bf16.msra.mxu0 %v2644
        %2676 = vmatprep.subr.bf16.mxu0 0
        %2677 = vmatpush2.bf16.msra.mxu0 0
        %2678 = vmatprep.subr.bf16.mxu0 0
        %2679 = vmatpush2.bf16.msra.mxu0 0
        %2680 = vmatprep.subr.bf16.mxu0 0
        %2681 = vmatpush2.bf16.msra.mxu0 0
        %2682 = vmatprep.subr.bf16.mxu0 0
        %2683 = vmatpush2.bf16.msra.mxu0 0
        %2684 = vmatprep.subr.bf16.mxu0 0
        %2685 = vmatpush2.bf16.msra.mxu0 0
        %2686 = vmatprep.subr.bf16.mxu0 0
        %2687 = vmatpush2.bf16.msra.mxu0 0
        %2688 = vmatprep.subr.bf16.mxu0 0
        %2689 = vmatpush2.bf16.msra.mxu0 0
        %2690 = vmatprep.subr.bf16.mxu0 0
        %2691 = vmatpush2.bf16.msra.mxu0 0
        %2692 = vmatprep.mubr.bf16.mxu0 0
        %2693 = vmatmul.mubr.bf16.gmra.mxu0 %v2580
        %v2694 = vpop.f32.mrf.mxu0
        %v2695 = vadd.f32 0.0, %v2694
        %v2696 = vpop.f32.mrf.mxu0
        %v2697 = vpop.f32.mrf.mxu0
        %v2698 = vadd.f32 0.0, %v2697
        %v2699 = vpop.f32.mrf.mxu0
        %2700 = vmatprep.mubr.bf16.mxu0 0
        %2701 = vmatmul.mubr.bf16.gmra.mxu0 %v2581
        %v2702 = vpop.f32.mrf.mxu0
        %v2703 = vadd.f32 0.0, %v2702
        %v2704 = vpop.f32.mrf.mxu0
        %v2705 = vpop.f32.mrf.mxu0
        %v2706 = vadd.f32 0.0, %v2705
        %v2707 = vpop.f32.mrf.mxu0
        %2708 = vmatprep.mubr.bf16.mxu0 0
        %2709 = vmatmul.mubr.bf16.gmra.mxu0 %v2582
        %v2710 = vpop.f32.mrf.mxu0
        %v2711 = vadd.f32 0.0, %v2710
        %v2712 = vpop.f32.mrf.mxu0
        %v2713 = vpop.f32.mrf.mxu0
        %v2714 = vadd.f32 0.0, %v2713
        %v2715 = vpop.f32.mrf.mxu0
        %2716 = vmatprep.mubr.bf16.mxu0 0
        %2717 = vmatmul.mubr.bf16.gmra.mxu0 %v2583
        %v2718 = vpop.f32.mrf.mxu0
        %v2719 = vadd.f32 0.0, %v2718
        %v2720 = vpop.f32.mrf.mxu0
        %v2721 = vpop.f32.mrf.mxu0
        %v2722 = vadd.f32 0.0, %v2721
        %v2723 = vpop.f32.mrf.mxu0
        %2724 = vmatprep.mubr.bf16.mxu0 0
        %2725 = vmatmul.mubr.bf16.gmra.mxu0 %v2584
        %v2726 = vpop.f32.mrf.mxu0
        %v2727 = vadd.f32 0.0, %v2726
        %v2728 = vpop.f32.mrf.mxu0
        %v2729 = vpop.f32.mrf.mxu0
        %v2730 = vadd.f32 0.0, %v2729
        %v2731 = vpop.f32.mrf.mxu0
        %2732 = vmatprep.mubr.bf16.mxu0 0
        %2733 = vmatmul.mubr.bf16.gmra.mxu0 %v2585
        %v2734 = vpop.f32.mrf.mxu0
        %v2735 = vadd.f32 0.0, %v2734
        %v2736 = vpop.f32.mrf.mxu0
        %v2737 = vpop.f32.mrf.mxu0
        %v2738 = vadd.f32 0.0, %v2737
        %v2739 = vpop.f32.mrf.mxu0
        %2740 = vmatprep.mubr.bf16.mxu0 0
        %2741 = vmatmul.mubr.bf16.gmra.mxu0 %v2586
        %v2742 = vpop.f32.mrf.mxu0
        %v2743 = vadd.f32 0.0, %v2742
        %v2744 = vpop.f32.mrf.mxu0
        %v2745 = vpop.f32.mrf.mxu0
        %v2746 = vadd.f32 0.0, %v2745
        %v2747 = vpop.f32.mrf.mxu0
        %2748 = vmatprep.mubr.bf16.mxu0 0
        %2749 = vmatmul.mubr.bf16.gmra.mxu0 %v2587
        %v2750 = vpop.f32.mrf.mxu0
        %v2751 = vadd.f32 0.0, %v2750
        %v2752 = vpop.f32.mrf.mxu0
        %v2753 = vpop.f32.mrf.mxu0
        %v2754 = vadd.f32 0.0, %v2753
        %v2755 = vpop.f32.mrf.mxu0
        %2756 = vmatprep.mubr.bf16.mxu0 0
        %2757 = vmatmul.mubr.bf16.gmra.mxu0 %v2588
        %v2758 = vpop.f32.mrf.mxu0
        %v2759 = vadd.f32 0.0, %v2758
        %v2760 = vpop.f32.mrf.mxu0
        %v2761 = vpop.f32.mrf.mxu0
        %v2762 = vadd.f32 0.0, %v2761
        %v2763 = vpop.f32.mrf.mxu0
        %2764 = vmatprep.mubr.bf16.mxu0 0
        %2765 = vmatmul.mubr.bf16.gmra.mxu0 %v2589
        %v2766 = vpop.f32.mrf.mxu0
        %v2767 = vadd.f32 0.0, %v2766
        %v2768 = vpop.f32.mrf.mxu0
        %v2769 = vpop.f32.mrf.mxu0
        %v2770 = vadd.f32 0.0, %v2769
        %v2771 = vpop.f32.mrf.mxu0
        %2772 = vmatprep.mubr.bf16.mxu0 0
        %2773 = vmatmul.mubr.bf16.gmra.mxu0 %v2590
        %v2774 = vpop.f32.mrf.mxu0
        %v2775 = vadd.f32 0.0, %v2774
        %v2776 = vpop.f32.mrf.mxu0
        %v2777 = vpop.f32.mrf.mxu0
        %v2778 = vadd.f32 0.0, %v2777
        %v2779 = vpop.f32.mrf.mxu0
        %2780 = vmatprep.mubr.bf16.mxu0 0
        %2781 = vmatmul.mubr.bf16.gmra.mxu0 %v2591
        %v2782 = vpop.f32.mrf.mxu0
        %v2783 = vadd.f32 0.0, %v2782
        %v2784 = vpop.f32.mrf.mxu0
        %v2785 = vpop.f32.mrf.mxu0
        %v2786 = vadd.f32 0.0, %v2785
        %v2787 = vpop.f32.mrf.mxu0
        %2788 = vmatprep.mubr.bf16.mxu0 0
        %2789 = vmatmul.mubr.bf16.gmra.mxu0 %v2592
        %v2790 = vpop.f32.mrf.mxu0
        %v2791 = vadd.f32 0.0, %v2790
        %v2792 = vpop.f32.mrf.mxu0
        %v2793 = vpop.f32.mrf.mxu0
        %v2794 = vadd.f32 0.0, %v2793
        %v2795 = vpop.f32.mrf.mxu0
        %2796 = vmatprep.mubr.bf16.mxu0 0
        %2797 = vmatmul.mubr.bf16.gmra.mxu0 %v2593
        %v2798 = vpop.f32.mrf.mxu0
        %v2799 = vadd.f32 0.0, %v2798
        %v2800 = vpop.f32.mrf.mxu0
        %v2801 = vpop.f32.mrf.mxu0
        %v2802 = vadd.f32 0.0, %v2801
        %v2803 = vpop.f32.mrf.mxu0
        %2804 = vmatprep.mubr.bf16.mxu0 0
        %2805 = vmatmul.mubr.bf16.gmra.mxu0 %v2594
        %v2806 = vpop.f32.mrf.mxu0
        %v2807 = vadd.f32 0.0, %v2806
        %v2808 = vpop.f32.mrf.mxu0
        %v2809 = vpop.f32.mrf.mxu0
        %v2810 = vadd.f32 0.0, %v2809
        %v2811 = vpop.f32.mrf.mxu0
        %2812 = vmatprep.mubr.bf16.mxu0 0
        %2813 = vmatmul.mubr.bf16.gmra.mxu0 %v2595
        %v2814 = vpop.f32.mrf.mxu0
        %v2815 = vadd.f32 0.0, %v2814
        %v2816 = vpop.f32.mrf.mxu0
        %v2817 = vpop.f32.mrf.mxu0
        %v2818 = vadd.f32 0.0, %v2817
        %v2819 = vpop.f32.mrf.mxu0
        %2820 = vdwg.mxu0
        %v2821 = vadd.f32 %v2067, %v2695
        %v2822 = vadd.f32 %v2068, %v2698
        %v2823 = vadd.f32 %v2069, %v2703
        %v2824 = vadd.f32 %v2070, %v2706
        %v2825 = vadd.f32 %v2071, %v2711
        %v2826 = vadd.f32 %v2072, %v2714
        %v2827 = vadd.f32 %v2073, %v2719
        %v2828 = vadd.f32 %v2074, %v2722
        %v2829 = vadd.f32 %v2075, %v2727
        %v2830 = vadd.f32 %v2076, %v2730
        %v2831 = vadd.f32 %v2077, %v2735
        %v2832 = vadd.f32 %v2078, %v2738
        %v2833 = vadd.f32 %v2079, %v2743
        %v2834 = vadd.f32 %v2080, %v2746
        %v2835 = vadd.f32 %v2081, %v2751
        %v2836 = vadd.f32 %v2082, %v2754
        %v2837 = vadd.f32 %v2083, %v2759
        %v2838 = vadd.f32 %v2084, %v2762
        %v2839 = vadd.f32 %v2085, %v2767
        %v2840 = vadd.f32 %v2086, %v2770
        %v2841 = vadd.f32 %v2087, %v2775
        %v2842 = vadd.f32 %v2088, %v2778
        %v2843 = vadd.f32 %v2089, %v2783
        %v2844 = vadd.f32 %v2090, %v2786
        %v2845 = vadd.f32 %v2091, %v2791
        %v2846 = vadd.f32 %v2092, %v2794
        %v2847 = vadd.f32 %v2093, %v2799
        %v2848 = vadd.f32 %v2094, %v2802
        %v2849 = vadd.f32 %v2095, %v2807
        %v2850 = vadd.f32 %v2096, %v2810
        %v2851 = vadd.f32 %v2097, %v2815
        %v2852 = vadd.f32 %v2098, %v2818
        %v2853 = vld [vmem:[%s1712] sm:$0xe]
        %v2854 = vld [vmem:[%s1712 + $0xc] sm:$0xe]
        %v2855 = vld [vmem:[%s1712 + $0x18] sm:$0xe]
        %v2856 = vld [vmem:[%s1712 + $0x24] sm:$0xe]
        %v2857 = vld [vmem:[%s1712 + $0x30] sm:$0xe]
        %v2858 = vld [vmem:[%s1712 + $0x3c] sm:$0xe]
        %v2859 = vld [vmem:[%s1712 + $0x48] sm:$0xe]
        %v2860 = vld [vmem:[%s1712 + $0x54] sm:$0xe]
        %v2861 = vld [vmem:[%s1712 + $0x60] sm:$0xe]
        %v2862 = vld [vmem:[%s1712 + $0x6c] sm:$0xe]
        %v2863 = vld [vmem:[%s1712 + $0x78] sm:$0xe]
        %v2864 = vld [vmem:[%s1712 + $0x84] sm:$0xe]
        %v2865 = vld [vmem:[%s1712 + $0x90] sm:$0xe]
        %v2866 = vld [vmem:[%s1712 + $0x9c] sm:$0xe]
        %v2867 = vld [vmem:[%s1712 + $0xa8] sm:$0xe]
        %v2868 = vld [vmem:[%s1712 + $0xb4] sm:$0xe]
        %v2917 = vrot.slane %v2853, 5
        %v2918 = vrot.slane %v2917, 4
        %v2919 = vrot.slane %v2100, 5
        %v2920 = vsel %vm1277, %v2918, %v2919
        %v2921 = vrot.slane %v2919, 4
        %v2922 = vrot.slane %v2101, 5
        %v2923 = vsel %vm1277, %v2921, %v2922
        %v2924 = vrot.slane %v2854, 5
        %v2925 = vrot.slane %v2924, 4
        %v2926 = vrot.slane %v2103, 5
        %v2927 = vsel %vm1277, %v2925, %v2926
        %v2928 = vrot.slane %v2926, 4
        %v2929 = vrot.slane %v2104, 5
        %v2930 = vsel %vm1277, %v2928, %v2929
        %v2931 = vrot.slane %v2855, 5
        %v2932 = vrot.slane %v2931, 4
        %v2933 = vrot.slane %v2106, 5
        %v2934 = vsel %vm1277, %v2932, %v2933
        %v2935 = vrot.slane %v2933, 4
        %v2936 = vrot.slane %v2107, 5
        %v2937 = vsel %vm1277, %v2935, %v2936
        %v2938 = vrot.slane %v2856, 5
        %v2939 = vrot.slane %v2938, 4
        %v2940 = vrot.slane %v2109, 5
        %v2941 = vsel %vm1277, %v2939, %v2940
        %v2942 = vrot.slane %v2940, 4
        %v2943 = vrot.slane %v2110, 5
        %v2944 = vsel %vm1277, %v2942, %v2943
        %v2945 = vrot.slane %v2857, 5
        %v2946 = vrot.slane %v2945, 4
        %v2947 = vrot.slane %v2112, 5
        %v2948 = vsel %vm1277, %v2946, %v2947
        %v2949 = vrot.slane %v2947, 4
        %v2950 = vrot.slane %v2113, 5
        %v2951 = vsel %vm1277, %v2949, %v2950
        %v2952 = vrot.slane %v2858, 5
        %v2953 = vrot.slane %v2952, 4
        %v2954 = vrot.slane %v2115, 5
        %v2955 = vsel %vm1277, %v2953, %v2954
        %v2956 = vrot.slane %v2954, 4
        %v2957 = vrot.slane %v2116, 5
        %v2958 = vsel %vm1277, %v2956, %v2957
        %v2959 = vrot.slane %v2859, 5
        %v2960 = vrot.slane %v2959, 4
        %v2961 = vrot.slane %v2118, 5
        %v2962 = vsel %vm1277, %v2960, %v2961
        %v2963 = vrot.slane %v2961, 4
        %v2964 = vrot.slane %v2119, 5
        %v2965 = vsel %vm1277, %v2963, %v2964
        %v2966 = vrot.slane %v2860, 5
        %v2967 = vrot.slane %v2966, 4
        %v2968 = vrot.slane %v2121, 5
        %v2969 = vsel %vm1277, %v2967, %v2968
        %v2970 = vrot.slane %v2968, 4
        %v2971 = vrot.slane %v2122, 5
        %v2972 = vsel %vm1277, %v2970, %v2971
        %v2973 = vrot.slane %v2861, 5
        %v2974 = vrot.slane %v2973, 4
        %v2975 = vrot.slane %v2124, 5
        %v2976 = vsel %vm1277, %v2974, %v2975
        %v2977 = vrot.slane %v2975, 4
        %v2978 = vrot.slane %v2125, 5
        %v2979 = vsel %vm1277, %v2977, %v2978
        %v2980 = vrot.slane %v2862, 5
        %v2981 = vrot.slane %v2980, 4
        %v2982 = vrot.slane %v2127, 5
        %v2983 = vsel %vm1277, %v2981, %v2982
        %v2984 = vrot.slane %v2982, 4
        %v2985 = vrot.slane %v2128, 5
        %v2986 = vsel %vm1277, %v2984, %v2985
        %v2987 = vrot.slane %v2863, 5
        %v2988 = vrot.slane %v2987, 4
        %v2989 = vrot.slane %v2130, 5
        %v2990 = vsel %vm1277, %v2988, %v2989
        %v2991 = vrot.slane %v2989, 4
        %v2992 = vrot.slane %v2131, 5
        %v2993 = vsel %vm1277, %v2991, %v2992
        %v2994 = vrot.slane %v2864, 5
        %v2995 = vrot.slane %v2994, 4
        %v2996 = vrot.slane %v2133, 5
        %v2997 = vsel %vm1277, %v2995, %v2996
        %v2998 = vrot.slane %v2996, 4
        %v2999 = vrot.slane %v2134, 5
        %v3000 = vsel %vm1277, %v2998, %v2999
        %v3001 = vrot.slane %v2865, 5
        %v3002 = vrot.slane %v3001, 4
        %v3003 = vrot.slane %v2136, 5
        %v3004 = vsel %vm1277, %v3002, %v3003
        %v3005 = vrot.slane %v3003, 4
        %v3006 = vrot.slane %v2137, 5
        %v3007 = vsel %vm1277, %v3005, %v3006
        %v3008 = vrot.slane %v2866, 5
        %v3009 = vrot.slane %v3008, 4
        %v3010 = vrot.slane %v2139, 5
        %v3011 = vsel %vm1277, %v3009, %v3010
        %v3012 = vrot.slane %v3010, 4
        %v3013 = vrot.slane %v2140, 5
        %v3014 = vsel %vm1277, %v3012, %v3013
        %v3015 = vrot.slane %v2867, 5
        %v3016 = vrot.slane %v3015, 4
        %v3017 = vrot.slane %v2142, 5
        %v3018 = vsel %vm1277, %v3016, %v3017
        %v3019 = vrot.slane %v3017, 4
        %v3020 = vrot.slane %v2143, 5
        %v3021 = vsel %vm1277, %v3019, %v3020
        %v3022 = vrot.slane %v2868, 5
        %v3023 = vrot.slane %v3022, 4
        %v3024 = vrot.slane %v2145, 5
        %v3025 = vsel %vm1277, %v3023, %v3024
        %v3026 = vrot.slane %v3024, 4
        %v3027 = vrot.slane %v2146, 5
        %v3028 = vsel %vm1277, %v3026, %v3027
        %s3029 = scalar_lea.vmem %s1, 320
        %v3030 = vld [vmem:[%s3029] sm:$0xf]
        %v3031 = vld [vmem:[%s3029 + $0x4] sm:$0xf]
        %v3032 = vld [vmem:[%s3029 + $0x8] sm:$0xf]
        %v3033 = vld [vmem:[%s3029 + $0xc] sm:$0xf]
        %v3034 = vld [vmem:[%s3029 + $0x10] sm:$0xf]
        %v3035 = vld [vmem:[%s3029 + $0x14] sm:$0xf]
        %v3036 = vld [vmem:[%s3029 + $0x18] sm:$0xf]
        %v3037 = vld [vmem:[%s3029 + $0x1c] sm:$0xf]
        %v3038 = vld [vmem:[%s3029 + $0x20] sm:$0xf]
        %v3039 = vld [vmem:[%s3029 + $0x24] sm:$0xf]
        %v3040 = vld [vmem:[%s3029 + $0x28] sm:$0xf]
        %v3041 = vld [vmem:[%s3029 + $0x2c] sm:$0xf]
        %v3042 = vld [vmem:[%s3029 + $0x30] sm:$0xf]
        %v3043 = vld [vmem:[%s3029 + $0x34] sm:$0xf]
        %v3044 = vld [vmem:[%s3029 + $0x38] sm:$0xf]
        %v3045 = vld [vmem:[%s3029 + $0x3c] sm:$0xf]
        %v3046 = vunpack.c.l.b16 %v2920
        %v3047 = vunpack.c.l.b16 %v2923
        %v3048 = vunpack.c.l.b16 %v2927
        %v3049 = vunpack.c.l.b16 %v2930
        %v3050 = vunpack.c.l.b16 %v2934
        %v3051 = vunpack.c.l.b16 %v2937
        %v3052 = vunpack.c.l.b16 %v2941
        %v3053 = vunpack.c.l.b16 %v2944
        %v3054 = vunpack.c.l.b16 %v2948
        %v3055 = vunpack.c.l.b16 %v2951
        %v3056 = vunpack.c.l.b16 %v2955
        %v3057 = vunpack.c.l.b16 %v2958
        %v3058 = vunpack.c.l.b16 %v2962
        %v3059 = vunpack.c.l.b16 %v2965
        %v3060 = vunpack.c.l.b16 %v2969
        %v3061 = vunpack.c.l.b16 %v2972
        %v3062 = vunpack.c.l.b16 %v2976
        %v3063 = vunpack.c.l.b16 %v2979
        %v3064 = vunpack.c.l.b16 %v2983
        %v3065 = vunpack.c.l.b16 %v2986
        %v3066 = vunpack.c.l.b16 %v2990
        %v3067 = vunpack.c.l.b16 %v2993
        %v3068 = vunpack.c.l.b16 %v2997
        %v3069 = vunpack.c.l.b16 %v3000
        %v3070 = vunpack.c.l.b16 %v3004
        %v3071 = vunpack.c.l.b16 %v3007
        %v3072 = vunpack.c.l.b16 %v3011
        %v3073 = vunpack.c.l.b16 %v3014
        %v3074 = vunpack.c.l.b16 %v3018
        %v3075 = vunpack.c.l.b16 %v3021
        %v3076 = vunpack.c.l.b16 %v3025
        %v3077 = vunpack.c.l.b16 %v3028
        %v3078 = vpack.c.b16 %v3047, %v3046
        %v3079 = vpack.c.b16 %v3049, %v3048
        %v3080 = vpack.c.b16 %v3051, %v3050
        %v3081 = vpack.c.b16 %v3053, %v3052
        %v3082 = vpack.c.b16 %v3055, %v3054
        %v3083 = vpack.c.b16 %v3057, %v3056
        %v3084 = vpack.c.b16 %v3059, %v3058
        %v3085 = vpack.c.b16 %v3061, %v3060
        %v3086 = vpack.c.b16 %v3063, %v3062
        %v3087 = vpack.c.b16 %v3065, %v3064
        %v3088 = vpack.c.b16 %v3067, %v3066
        %v3089 = vpack.c.b16 %v3069, %v3068
        %v3090 = vpack.c.b16 %v3071, %v3070
        %v3091 = vpack.c.b16 %v3073, %v3072
        %v3092 = vpack.c.b16 %v3075, %v3074
        %v3093 = vpack.c.b16 %v3077, %v3076
        %v3126 = vunpack.c.l.b16 %v3030
        %v3127 = vunpack.c.l.b16 %v3031
        %v3128 = vunpack.c.l.b16 %v3032
        %v3129 = vunpack.c.l.b16 %v3033
        %v3130 = vunpack.c.l.b16 %v3034
        %v3131 = vunpack.c.l.b16 %v3035
        %v3132 = vunpack.c.l.b16 %v3036
        %v3133 = vunpack.c.l.b16 %v3037
        %v3134 = vunpack.c.l.b16 %v3038
        %v3135 = vunpack.c.l.b16 %v3039
        %v3136 = vunpack.c.l.b16 %v3040
        %v3137 = vunpack.c.l.b16 %v3041
        %v3138 = vunpack.c.l.b16 %v3042
        %v3139 = vunpack.c.l.b16 %v3043
        %v3140 = vunpack.c.l.b16 %v3044
        %v3141 = vunpack.c.l.b16 %v3045
        %v3142 = vpack.c.b16 %v3127, %v3126
        %v3143 = vpack.c.b16 %v3129, %v3128
        %v3144 = vpack.c.b16 %v3131, %v3130
        %v3145 = vpack.c.b16 %v3133, %v3132
        %v3146 = vpack.c.b16 %v3135, %v3134
        %v3147 = vpack.c.b16 %v3137, %v3136
        %v3148 = vpack.c.b16 %v3139, %v3138
        %v3149 = vpack.c.b16 %v3141, %v3140
        %3158 = vmatprep.subr.bf16.mxu0 0
        %3159 = vmatpush1.bf16.msra.mxu0 %v3149
        %3160 = vmatprep.subr.bf16.mxu0 0
        %3161 = vmatpush1.bf16.msra.mxu0 %v3148
        %3162 = vmatprep.subr.bf16.mxu0 0
        %3163 = vmatpush1.bf16.msra.mxu0 %v3147
        %3164 = vmatprep.subr.bf16.mxu0 0
        %3165 = vmatpush1.bf16.msra.mxu0 %v3146
        %3166 = vmatprep.subr.bf16.mxu0 0
        %3167 = vmatpush1.bf16.msra.mxu0 %v3145
        %3168 = vmatprep.subr.bf16.mxu0 0
        %3169 = vmatpush1.bf16.msra.mxu0 %v3144
        %3170 = vmatprep.subr.bf16.mxu0 0
        %3171 = vmatpush1.bf16.msra.mxu0 %v3143
        %3172 = vmatprep.subr.bf16.mxu0 0
        %3173 = vmatpush1.bf16.msra.mxu0 %v3142
        %3174 = vmatprep.subr.bf16.mxu0 0
        %3175 = vmatpush2.bf16.msra.mxu0 0
        %3176 = vmatprep.subr.bf16.mxu0 0
        %3177 = vmatpush2.bf16.msra.mxu0 0
        %3178 = vmatprep.subr.bf16.mxu0 0
        %3179 = vmatpush2.bf16.msra.mxu0 0
        %3180 = vmatprep.subr.bf16.mxu0 0
        %3181 = vmatpush2.bf16.msra.mxu0 0
        %3182 = vmatprep.subr.bf16.mxu0 0
        %3183 = vmatpush2.bf16.msra.mxu0 0
        %3184 = vmatprep.subr.bf16.mxu0 0
        %3185 = vmatpush2.bf16.msra.mxu0 0
        %3186 = vmatprep.subr.bf16.mxu0 0
        %3187 = vmatpush2.bf16.msra.mxu0 0
        %3188 = vmatprep.subr.bf16.mxu0 0
        %3189 = vmatpush2.bf16.msra.mxu0 0
        %3190 = vmatprep.mubr.bf16.mxu0 0
        %3191 = vmatmul.mubr.bf16.gmra.mxu0 %v3078
        %v3192 = vpop.f32.mrf.mxu0
        %v3193 = vadd.f32 0.0, %v3192
        %v3194 = vpop.f32.mrf.mxu0
        %v3195 = vpop.f32.mrf.mxu0
        %v3196 = vadd.f32 0.0, %v3195
        %v3197 = vpop.f32.mrf.mxu0
        %3198 = vmatprep.mubr.bf16.mxu0 0
        %3199 = vmatmul.mubr.bf16.gmra.mxu0 %v3079
        %v3200 = vpop.f32.mrf.mxu0
        %v3201 = vadd.f32 0.0, %v3200
        %v3202 = vpop.f32.mrf.mxu0
        %v3203 = vpop.f32.mrf.mxu0
        %v3204 = vadd.f32 0.0, %v3203
        %v3205 = vpop.f32.mrf.mxu0
        %3206 = vmatprep.mubr.bf16.mxu0 0
        %3207 = vmatmul.mubr.bf16.gmra.mxu0 %v3080
        %v3208 = vpop.f32.mrf.mxu0
        %v3209 = vadd.f32 0.0, %v3208
        %v3210 = vpop.f32.mrf.mxu0
        %v3211 = vpop.f32.mrf.mxu0
        %v3212 = vadd.f32 0.0, %v3211
        %v3213 = vpop.f32.mrf.mxu0
        %3214 = vmatprep.mubr.bf16.mxu0 0
        %3215 = vmatmul.mubr.bf16.gmra.mxu0 %v3081
        %v3216 = vpop.f32.mrf.mxu0
        %v3217 = vadd.f32 0.0, %v3216
        %v3218 = vpop.f32.mrf.mxu0
        %v3219 = vpop.f32.mrf.mxu0
        %v3220 = vadd.f32 0.0, %v3219
        %v3221 = vpop.f32.mrf.mxu0
        %3222 = vmatprep.mubr.bf16.mxu0 0
        %3223 = vmatmul.mubr.bf16.gmra.mxu0 %v3082
        %v3224 = vpop.f32.mrf.mxu0
        %v3225 = vadd.f32 0.0, %v3224
        %v3226 = vpop.f32.mrf.mxu0
        %v3227 = vpop.f32.mrf.mxu0
        %v3228 = vadd.f32 0.0, %v3227
        %v3229 = vpop.f32.mrf.mxu0
        %3230 = vmatprep.mubr.bf16.mxu0 0
        %3231 = vmatmul.mubr.bf16.gmra.mxu0 %v3083
        %v3232 = vpop.f32.mrf.mxu0
        %v3233 = vadd.f32 0.0, %v3232
        %v3234 = vpop.f32.mrf.mxu0
        %v3235 = vpop.f32.mrf.mxu0
        %v3236 = vadd.f32 0.0, %v3235
        %v3237 = vpop.f32.mrf.mxu0
        %3238 = vmatprep.mubr.bf16.mxu0 0
        %3239 = vmatmul.mubr.bf16.gmra.mxu0 %v3084
        %v3240 = vpop.f32.mrf.mxu0
        %v3241 = vadd.f32 0.0, %v3240
        %v3242 = vpop.f32.mrf.mxu0
        %v3243 = vpop.f32.mrf.mxu0
        %v3244 = vadd.f32 0.0, %v3243
        %v3245 = vpop.f32.mrf.mxu0
        %3246 = vmatprep.mubr.bf16.mxu0 0
        %3247 = vmatmul.mubr.bf16.gmra.mxu0 %v3085
        %v3248 = vpop.f32.mrf.mxu0
        %v3249 = vadd.f32 0.0, %v3248
        %v3250 = vpop.f32.mrf.mxu0
        %v3251 = vpop.f32.mrf.mxu0
        %v3252 = vadd.f32 0.0, %v3251
        %v3253 = vpop.f32.mrf.mxu0
        %3254 = vmatprep.mubr.bf16.mxu0 0
        %3255 = vmatmul.mubr.bf16.gmra.mxu0 %v3086
        %v3256 = vpop.f32.mrf.mxu0
        %v3257 = vadd.f32 0.0, %v3256
        %v3258 = vpop.f32.mrf.mxu0
        %v3259 = vpop.f32.mrf.mxu0
        %v3260 = vadd.f32 0.0, %v3259
        %v3261 = vpop.f32.mrf.mxu0
        %3262 = vmatprep.mubr.bf16.mxu0 0
        %3263 = vmatmul.mubr.bf16.gmra.mxu0 %v3087
        %v3264 = vpop.f32.mrf.mxu0
        %v3265 = vadd.f32 0.0, %v3264
        %v3266 = vpop.f32.mrf.mxu0
        %v3267 = vpop.f32.mrf.mxu0
        %v3268 = vadd.f32 0.0, %v3267
        %v3269 = vpop.f32.mrf.mxu0
        %3270 = vmatprep.mubr.bf16.mxu0 0
        %3271 = vmatmul.mubr.bf16.gmra.mxu0 %v3088
        %v3272 = vpop.f32.mrf.mxu0
        %v3273 = vadd.f32 0.0, %v3272
        %v3274 = vpop.f32.mrf.mxu0
        %v3275 = vpop.f32.mrf.mxu0
        %v3276 = vadd.f32 0.0, %v3275
        %v3277 = vpop.f32.mrf.mxu0
        %3278 = vmatprep.mubr.bf16.mxu0 0
        %3279 = vmatmul.mubr.bf16.gmra.mxu0 %v3089
        %v3280 = vpop.f32.mrf.mxu0
        %v3281 = vadd.f32 0.0, %v3280
        %v3282 = vpop.f32.mrf.mxu0
        %v3283 = vpop.f32.mrf.mxu0
        %v3284 = vadd.f32 0.0, %v3283
        %v3285 = vpop.f32.mrf.mxu0
        %3286 = vmatprep.mubr.bf16.mxu0 0
        %3287 = vmatmul.mubr.bf16.gmra.mxu0 %v3090
        %v3288 = vpop.f32.mrf.mxu0
        %v3289 = vadd.f32 0.0, %v3288
        %v3290 = vpop.f32.mrf.mxu0
        %v3291 = vpop.f32.mrf.mxu0
        %v3292 = vadd.f32 0.0, %v3291
        %v3293 = vpop.f32.mrf.mxu0
        %3294 = vmatprep.mubr.bf16.mxu0 0
        %3295 = vmatmul.mubr.bf16.gmra.mxu0 %v3091
        %v3296 = vpop.f32.mrf.mxu0
        %v3297 = vadd.f32 0.0, %v3296
        %v3298 = vpop.f32.mrf.mxu0
        %v3299 = vpop.f32.mrf.mxu0
        %v3300 = vadd.f32 0.0, %v3299
        %v3301 = vpop.f32.mrf.mxu0
        %3302 = vmatprep.mubr.bf16.mxu0 0
        %3303 = vmatmul.mubr.bf16.gmra.mxu0 %v3092
        %v3304 = vpop.f32.mrf.mxu0
        %v3305 = vadd.f32 0.0, %v3304
        %v3306 = vpop.f32.mrf.mxu0
        %v3307 = vpop.f32.mrf.mxu0
        %v3308 = vadd.f32 0.0, %v3307
        %v3309 = vpop.f32.mrf.mxu0
        %3310 = vmatprep.mubr.bf16.mxu0 0
        %3311 = vmatmul.mubr.bf16.gmra.mxu0 %v3093
        %v3312 = vpop.f32.mrf.mxu0
        %v3313 = vadd.f32 0.0, %v3312
        %v3314 = vpop.f32.mrf.mxu0
        %v3315 = vpop.f32.mrf.mxu0
        %v3316 = vadd.f32 0.0, %v3315
        %v3317 = vpop.f32.mrf.mxu0
        %3318 = vdwg.mxu0
        %v3319 = vadd.f32 %v2821, %v3193
        %v3320 = vadd.f32 %v2822, %v3196
        %v3321 = vadd.f32 %v2823, %v3201
        %v3322 = vadd.f32 %v2824, %v3204
        %v3323 = vadd.f32 %v2825, %v3209
        %v3324 = vadd.f32 %v2826, %v3212
        %v3325 = vadd.f32 %v2827, %v3217
        %v3326 = vadd.f32 %v2828, %v3220
        %v3327 = vadd.f32 %v2829, %v3225
        %v3328 = vadd.f32 %v2830, %v3228
        %v3329 = vadd.f32 %v2831, %v3233
        %v3330 = vadd.f32 %v2832, %v3236
        %v3331 = vadd.f32 %v2833, %v3241
        %v3332 = vadd.f32 %v2834, %v3244
        %v3333 = vadd.f32 %v2835, %v3249
        %v3334 = vadd.f32 %v2836, %v3252
        %v3335 = vadd.f32 %v2837, %v3257
        %v3336 = vadd.f32 %v2838, %v3260
        %v3337 = vadd.f32 %v2839, %v3265
        %v3338 = vadd.f32 %v2840, %v3268
        %v3339 = vadd.f32 %v2841, %v3273
        %v3340 = vadd.f32 %v2842, %v3276
        %v3341 = vadd.f32 %v2843, %v3281
        %v3342 = vadd.f32 %v2844, %v3284
        %v3343 = vadd.f32 %v2845, %v3289
        %v3344 = vadd.f32 %v2846, %v3292
        %v3345 = vadd.f32 %v2847, %v3297
        %v3346 = vadd.f32 %v2848, %v3300
        %v3347 = vadd.f32 %v2849, %v3305
        %v3348 = vadd.f32 %v2850, %v3308
        %v3349 = vadd.f32 %v2851, %v3313
        %v3350 = vadd.f32 %v2852, %v3316
        %s3351 = scalar_lea.vmem %s179, 24
        %v3352 = vld [vmem:[%s3351] sm:$0xf]
        %v3353 = vld [vmem:[%s3351 + $0x4] sm:$0xf]
        %v3354 = vld [vmem:[%s3351 + $0xc] sm:$0xf]
        %v3355 = vld [vmem:[%s3351 + $0x10] sm:$0xf]
        %v3356 = vld [vmem:[%s3351 + $0x18] sm:$0xf]
        %v3357 = vld [vmem:[%s3351 + $0x1c] sm:$0xf]
        %v3358 = vld [vmem:[%s3351 + $0x24] sm:$0xf]
        %v3359 = vld [vmem:[%s3351 + $0x28] sm:$0xf]
        %v3360 = vld [vmem:[%s3351 + $0x30] sm:$0xf]
        %v3361 = vld [vmem:[%s3351 + $0x34] sm:$0xf]
        %v3362 = vld [vmem:[%s3351 + $0x3c] sm:$0xf]
        %v3363 = vld [vmem:[%s3351 + $0x40] sm:$0xf]
        %v3364 = vld [vmem:[%s3351 + $0x48] sm:$0xf]
        %v3365 = vld [vmem:[%s3351 + $0x4c] sm:$0xf]
        %v3366 = vld [vmem:[%s3351 + $0x54] sm:$0xf]
        %v3367 = vld [vmem:[%s3351 + $0x58] sm:$0xf]
        %v3368 = vld [vmem:[%s3351 + $0x60] sm:$0xf]
        %v3369 = vld [vmem:[%s3351 + $0x64] sm:$0xf]
        %v3370 = vld [vmem:[%s3351 + $0x6c] sm:$0xf]
        %v3371 = vld [vmem:[%s3351 + $0x70] sm:$0xf]
        %v3372 = vld [vmem:[%s3351 + $0x78] sm:$0xf]
        %v3373 = vld [vmem:[%s3351 + $0x7c] sm:$0xf]
        %v3374 = vld [vmem:[%s3351 + $0x84] sm:$0xf]
        %v3375 = vld [vmem:[%s3351 + $0x88] sm:$0xf]
        %v3376 = vld [vmem:[%s3351 + $0x90] sm:$0xf]
        %v3377 = vld [vmem:[%s3351 + $0x94] sm:$0xf]
        %v3378 = vld [vmem:[%s3351 + $0x9c] sm:$0xf]
        %v3379 = vld [vmem:[%s3351 + $0xa0] sm:$0xf]
        %v3380 = vld [vmem:[%s3351 + $0xa8] sm:$0xf]
        %v3381 = vld [vmem:[%s3351 + $0xac] sm:$0xf]
        %v3382 = vld [vmem:[%s3351 + $0xb4] sm:$0xf]
        %v3383 = vld [vmem:[%s3351 + $0xb8] sm:$0xf]
        %s3384 = scalar_lea.vmem %s1, 384
        %v3385 = vld [vmem:[%s3384] sm:$0xf]
        %v3386 = vld [vmem:[%s3384 + $0x4] sm:$0xf]
        %v3387 = vld [vmem:[%s3384 + $0x8] sm:$0xf]
        %v3388 = vld [vmem:[%s3384 + $0xc] sm:$0xf]
        %v3389 = vld [vmem:[%s3384 + $0x10] sm:$0xf]
        %v3390 = vld [vmem:[%s3384 + $0x14] sm:$0xf]
        %v3391 = vld [vmem:[%s3384 + $0x18] sm:$0xf]
        %v3392 = vld [vmem:[%s3384 + $0x1c] sm:$0xf]
        %v3393 = vld [vmem:[%s3384 + $0x20] sm:$0xf]
        %v3394 = vld [vmem:[%s3384 + $0x24] sm:$0xf]
        %v3395 = vld [vmem:[%s3384 + $0x28] sm:$0xf]
        %v3396 = vld [vmem:[%s3384 + $0x2c] sm:$0xf]
        %v3397 = vld [vmem:[%s3384 + $0x30] sm:$0xf]
        %v3398 = vld [vmem:[%s3384 + $0x34] sm:$0xf]
        %v3399 = vld [vmem:[%s3384 + $0x38] sm:$0xf]
        %v3400 = vld [vmem:[%s3384 + $0x3c] sm:$0xf]
        %v3433 = vunpack.c.l.b16 %v3352
        %v3434 = vunpack.c.l.b16 %v3353
        %v3435 = vunpack.c.l.b16 %v3354
        %v3436 = vunpack.c.l.b16 %v3355
        %v3437 = vunpack.c.l.b16 %v3356
        %v3438 = vunpack.c.l.b16 %v3357
        %v3439 = vunpack.c.l.b16 %v3358
        %v3440 = vunpack.c.l.b16 %v3359
        %v3441 = vunpack.c.l.b16 %v3360
        %v3442 = vunpack.c.l.b16 %v3361
        %v3443 = vunpack.c.l.b16 %v3362
        %v3444 = vunpack.c.l.b16 %v3363
        %v3445 = vunpack.c.l.b16 %v3364
        %v3446 = vunpack.c.l.b16 %v3365
        %v3447 = vunpack.c.l.b16 %v3366
        %v3448 = vunpack.c.l.b16 %v3367
        %v3449 = vunpack.c.l.b16 %v3368
        %v3450 = vunpack.c.l.b16 %v3369
        %v3451 = vunpack.c.l.b16 %v3370
        %v3452 = vunpack.c.l.b16 %v3371
        %v3453 = vunpack.c.l.b16 %v3372
        %v3454 = vunpack.c.l.b16 %v3373
        %v3455 = vunpack.c.l.b16 %v3374
        %v3456 = vunpack.c.l.b16 %v3375
        %v3457 = vunpack.c.l.b16 %v3376
        %v3458 = vunpack.c.l.b16 %v3377
        %v3459 = vunpack.c.l.b16 %v3378
        %v3460 = vunpack.c.l.b16 %v3379
        %v3461 = vunpack.c.l.b16 %v3380
        %v3462 = vunpack.c.l.b16 %v3381
        %v3463 = vunpack.c.l.b16 %v3382
        %v3464 = vunpack.c.l.b16 %v3383
        %v3465 = vpack.c.b16 %v3434, %v3433
        %v3466 = vpack.c.b16 %v3436, %v3435
        %v3467 = vpack.c.b16 %v3438, %v3437
        %v3468 = vpack.c.b16 %v3440, %v3439
        %v3469 = vpack.c.b16 %v3442, %v3441
        %v3470 = vpack.c.b16 %v3444, %v3443
        %v3471 = vpack.c.b16 %v3446, %v3445
        %v3472 = vpack.c.b16 %v3448, %v3447
        %v3473 = vpack.c.b16 %v3450, %v3449
        %v3474 = vpack.c.b16 %v3452, %v3451
        %v3475 = vpack.c.b16 %v3454, %v3453
        %v3476 = vpack.c.b16 %v3456, %v3455
        %v3477 = vpack.c.b16 %v3458, %v3457
        %v3478 = vpack.c.b16 %v3460, %v3459
        %v3479 = vpack.c.b16 %v3462, %v3461
        %v3480 = vpack.c.b16 %v3464, %v3463
        %v3513 = vunpack.c.l.b16 %v3385
        %v3514 = vunpack.c.l.b16 %v3386
        %v3515 = vunpack.c.l.b16 %v3387
        %v3516 = vunpack.c.l.b16 %v3388
        %v3517 = vunpack.c.l.b16 %v3389
        %v3518 = vunpack.c.l.b16 %v3390
        %v3519 = vunpack.c.l.b16 %v3391
        %v3520 = vunpack.c.l.b16 %v3392
        %v3521 = vunpack.c.l.b16 %v3393
        %v3522 = vunpack.c.l.b16 %v3394
        %v3523 = vunpack.c.l.b16 %v3395
        %v3524 = vunpack.c.l.b16 %v3396
        %v3525 = vunpack.c.l.b16 %v3397
        %v3526 = vunpack.c.l.b16 %v3398
        %v3527 = vunpack.c.l.b16 %v3399
        %v3528 = vunpack.c.l.b16 %v3400
        %v3529 = vpack.c.b16 %v3514, %v3513
        %v3530 = vpack.c.b16 %v3516, %v3515
        %v3531 = vpack.c.b16 %v3518, %v3517
        %v3532 = vpack.c.b16 %v3520, %v3519
        %v3533 = vpack.c.b16 %v3522, %v3521
        %v3534 = vpack.c.b16 %v3524, %v3523
        %v3535 = vpack.c.b16 %v3526, %v3525
        %v3536 = vpack.c.b16 %v3528, %v3527
        %3545 = vmatprep.subr.bf16.mxu0 0
        %3546 = vmatpush1.bf16.msra.mxu0 %v3536
        %3547 = vmatprep.subr.bf16.mxu0 0
        %3548 = vmatpush1.bf16.msra.mxu0 %v3535
        %3549 = vmatprep.subr.bf16.mxu0 0
        %3550 = vmatpush1.bf16.msra.mxu0 %v3534
        %3551 = vmatprep.subr.bf16.mxu0 0
        %3552 = vmatpush1.bf16.msra.mxu0 %v3533
        %3553 = vmatprep.subr.bf16.mxu0 0
        %3554 = vmatpush1.bf16.msra.mxu0 %v3532
        %3555 = vmatprep.subr.bf16.mxu0 0
        %3556 = vmatpush1.bf16.msra.mxu0 %v3531
        %3557 = vmatprep.subr.bf16.mxu0 0
        %3558 = vmatpush1.bf16.msra.mxu0 %v3530
        %3559 = vmatprep.subr.bf16.mxu0 0
        %3560 = vmatpush1.bf16.msra.mxu0 %v3529
        %3561 = vmatprep.subr.bf16.mxu0 0
        %3562 = vmatpush2.bf16.msra.mxu0 0
        %3563 = vmatprep.subr.bf16.mxu0 0
        %3564 = vmatpush2.bf16.msra.mxu0 0
        %3565 = vmatprep.subr.bf16.mxu0 0
        %3566 = vmatpush2.bf16.msra.mxu0 0
        %3567 = vmatprep.subr.bf16.mxu0 0
        %3568 = vmatpush2.bf16.msra.mxu0 0
        %3569 = vmatprep.subr.bf16.mxu0 0
        %3570 = vmatpush2.bf16.msra.mxu0 0
        %3571 = vmatprep.subr.bf16.mxu0 0
        %3572 = vmatpush2.bf16.msra.mxu0 0
        %3573 = vmatprep.subr.bf16.mxu0 0
        %3574 = vmatpush2.bf16.msra.mxu0 0
        %3575 = vmatprep.subr.bf16.mxu0 0
        %3576 = vmatpush2.bf16.msra.mxu0 0
        %3577 = vmatprep.mubr.bf16.mxu0 0
        %3578 = vmatmul.mubr.bf16.gmra.mxu0 %v3465
        %v3579 = vpop.f32.mrf.mxu0
        %v3580 = vadd.f32 0.0, %v3579
        %v3581 = vpop.f32.mrf.mxu0
        %v3582 = vpop.f32.mrf.mxu0
        %v3583 = vadd.f32 0.0, %v3582
        %v3584 = vpop.f32.mrf.mxu0
        %3585 = vmatprep.mubr.bf16.mxu0 0
        %3586 = vmatmul.mubr.bf16.gmra.mxu0 %v3466
        %v3587 = vpop.f32.mrf.mxu0
        %v3588 = vadd.f32 0.0, %v3587
        %v3589 = vpop.f32.mrf.mxu0
        %v3590 = vpop.f32.mrf.mxu0
        %v3591 = vadd.f32 0.0, %v3590
        %v3592 = vpop.f32.mrf.mxu0
        %3593 = vmatprep.mubr.bf16.mxu0 0
        %3594 = vmatmul.mubr.bf16.gmra.mxu0 %v3467
        %v3595 = vpop.f32.mrf.mxu0
        %v3596 = vadd.f32 0.0, %v3595
        %v3597 = vpop.f32.mrf.mxu0
        %v3598 = vpop.f32.mrf.mxu0
        %v3599 = vadd.f32 0.0, %v3598
        %v3600 = vpop.f32.mrf.mxu0
        %3601 = vmatprep.mubr.bf16.mxu0 0
        %3602 = vmatmul.mubr.bf16.gmra.mxu0 %v3468
        %v3603 = vpop.f32.mrf.mxu0
        %v3604 = vadd.f32 0.0, %v3603
        %v3605 = vpop.f32.mrf.mxu0
        %v3606 = vpop.f32.mrf.mxu0
        %v3607 = vadd.f32 0.0, %v3606
        %v3608 = vpop.f32.mrf.mxu0
        %3609 = vmatprep.mubr.bf16.mxu0 0
        %3610 = vmatmul.mubr.bf16.gmra.mxu0 %v3469
        %v3611 = vpop.f32.mrf.mxu0
        %v3612 = vadd.f32 0.0, %v3611
        %v3613 = vpop.f32.mrf.mxu0
        %v3614 = vpop.f32.mrf.mxu0
        %v3615 = vadd.f32 0.0, %v3614
        %v3616 = vpop.f32.mrf.mxu0
        %3617 = vmatprep.mubr.bf16.mxu0 0
        %3618 = vmatmul.mubr.bf16.gmra.mxu0 %v3470
        %v3619 = vpop.f32.mrf.mxu0
        %v3620 = vadd.f32 0.0, %v3619
        %v3621 = vpop.f32.mrf.mxu0
        %v3622 = vpop.f32.mrf.mxu0
        %v3623 = vadd.f32 0.0, %v3622
        %v3624 = vpop.f32.mrf.mxu0
        %3625 = vmatprep.mubr.bf16.mxu0 0
        %3626 = vmatmul.mubr.bf16.gmra.mxu0 %v3471
        %v3627 = vpop.f32.mrf.mxu0
        %v3628 = vadd.f32 0.0, %v3627
        %v3629 = vpop.f32.mrf.mxu0
        %v3630 = vpop.f32.mrf.mxu0
        %v3631 = vadd.f32 0.0, %v3630
        %v3632 = vpop.f32.mrf.mxu0
        %3633 = vmatprep.mubr.bf16.mxu0 0
        %3634 = vmatmul.mubr.bf16.gmra.mxu0 %v3472
        %v3635 = vpop.f32.mrf.mxu0
        %v3636 = vadd.f32 0.0, %v3635
        %v3637 = vpop.f32.mrf.mxu0
        %v3638 = vpop.f32.mrf.mxu0
        %v3639 = vadd.f32 0.0, %v3638
        %v3640 = vpop.f32.mrf.mxu0
        %3641 = vmatprep.mubr.bf16.mxu0 0
        %3642 = vmatmul.mubr.bf16.gmra.mxu0 %v3473
        %v3643 = vpop.f32.mrf.mxu0
        %v3644 = vadd.f32 0.0, %v3643
        %v3645 = vpop.f32.mrf.mxu0
        %v3646 = vpop.f32.mrf.mxu0
        %v3647 = vadd.f32 0.0, %v3646
        %v3648 = vpop.f32.mrf.mxu0
        %3649 = vmatprep.mubr.bf16.mxu0 0
        %3650 = vmatmul.mubr.bf16.gmra.mxu0 %v3474
        %v3651 = vpop.f32.mrf.mxu0
        %v3652 = vadd.f32 0.0, %v3651
        %v3653 = vpop.f32.mrf.mxu0
        %v3654 = vpop.f32.mrf.mxu0
        %v3655 = vadd.f32 0.0, %v3654
        %v3656 = vpop.f32.mrf.mxu0
        %3657 = vmatprep.mubr.bf16.mxu0 0
        %3658 = vmatmul.mubr.bf16.gmra.mxu0 %v3475
        %v3659 = vpop.f32.mrf.mxu0
        %v3660 = vadd.f32 0.0, %v3659
        %v3661 = vpop.f32.mrf.mxu0
        %v3662 = vpop.f32.mrf.mxu0
        %v3663 = vadd.f32 0.0, %v3662
        %v3664 = vpop.f32.mrf.mxu0
        %3665 = vmatprep.mubr.bf16.mxu0 0
        %3666 = vmatmul.mubr.bf16.gmra.mxu0 %v3476
        %v3667 = vpop.f32.mrf.mxu0
        %v3668 = vadd.f32 0.0, %v3667
        %v3669 = vpop.f32.mrf.mxu0
        %v3670 = vpop.f32.mrf.mxu0
        %v3671 = vadd.f32 0.0, %v3670
        %v3672 = vpop.f32.mrf.mxu0
        %3673 = vmatprep.mubr.bf16.mxu0 0
        %3674 = vmatmul.mubr.bf16.gmra.mxu0 %v3477
        %v3675 = vpop.f32.mrf.mxu0
        %v3676 = vadd.f32 0.0, %v3675
        %v3677 = vpop.f32.mrf.mxu0
        %v3678 = vpop.f32.mrf.mxu0
        %v3679 = vadd.f32 0.0, %v3678
        %v3680 = vpop.f32.mrf.mxu0
        %3681 = vmatprep.mubr.bf16.mxu0 0
        %3682 = vmatmul.mubr.bf16.gmra.mxu0 %v3478
        %v3683 = vpop.f32.mrf.mxu0
        %v3684 = vadd.f32 0.0, %v3683
        %v3685 = vpop.f32.mrf.mxu0
        %v3686 = vpop.f32.mrf.mxu0
        %v3687 = vadd.f32 0.0, %v3686
        %v3688 = vpop.f32.mrf.mxu0
        %3689 = vmatprep.mubr.bf16.mxu0 0
        %3690 = vmatmul.mubr.bf16.gmra.mxu0 %v3479
        %v3691 = vpop.f32.mrf.mxu0
        %v3692 = vadd.f32 0.0, %v3691
        %v3693 = vpop.f32.mrf.mxu0
        %v3694 = vpop.f32.mrf.mxu0
        %v3695 = vadd.f32 0.0, %v3694
        %v3696 = vpop.f32.mrf.mxu0
        %3697 = vmatprep.mubr.bf16.mxu0 0
        %3698 = vmatmul.mubr.bf16.gmra.mxu0 %v3480
        %v3699 = vpop.f32.mrf.mxu0
        %v3700 = vadd.f32 0.0, %v3699
        %v3701 = vpop.f32.mrf.mxu0
        %v3702 = vpop.f32.mrf.mxu0
        %v3703 = vadd.f32 0.0, %v3702
        %v3704 = vpop.f32.mrf.mxu0
        %3705 = vdwg.mxu0
        %v3706 = vadd.f32 %v3319, %v3580
        %v3707 = vadd.f32 %v3320, %v3583
        %v3708 = vadd.f32 %v3321, %v3588
        %v3709 = vadd.f32 %v3322, %v3591
        %v3710 = vadd.f32 %v3323, %v3596
        %v3711 = vadd.f32 %v3324, %v3599
        %v3712 = vadd.f32 %v3325, %v3604
        %v3713 = vadd.f32 %v3326, %v3607
        %v3714 = vadd.f32 %v3327, %v3612
        %v3715 = vadd.f32 %v3328, %v3615
        %v3716 = vadd.f32 %v3329, %v3620
        %v3717 = vadd.f32 %v3330, %v3623
        %v3718 = vadd.f32 %v3331, %v3628
        %v3719 = vadd.f32 %v3332, %v3631
        %v3720 = vadd.f32 %v3333, %v3636
        %v3721 = vadd.f32 %v3334, %v3639
        %v3722 = vadd.f32 %v3335, %v3644
        %v3723 = vadd.f32 %v3336, %v3647
        %v3724 = vadd.f32 %v3337, %v3652
        %v3725 = vadd.f32 %v3338, %v3655
        %v3726 = vadd.f32 %v3339, %v3660
        %v3727 = vadd.f32 %v3340, %v3663
        %v3728 = vadd.f32 %v3341, %v3668
        %v3729 = vadd.f32 %v3342, %v3671
        %v3730 = vadd.f32 %v3343, %v3676
        %v3731 = vadd.f32 %v3344, %v3679
        %v3732 = vadd.f32 %v3345, %v3684
        %v3733 = vadd.f32 %v3346, %v3687
        %v3734 = vadd.f32 %v3347, %v3692
        %v3735 = vadd.f32 %v3348, %v3695
        %v3736 = vadd.f32 %v3349, %v3700
        %v3737 = vadd.f32 %v3350, %v3703
        %v3738 = vld [vmem:[%s3351] sm:$0xf]
        %v3739 = vld [vmem:[%s3351 + $0x4] sm:$0xf]
        %v3740 = vld [vmem:[%s3351 + $0x8] sm:$0x1]
        %v3741 = vld [vmem:[%s3351 + $0xc] sm:$0xf]
        %v3742 = vld [vmem:[%s3351 + $0x10] sm:$0xf]
        %v3743 = vld [vmem:[%s3351 + $0x14] sm:$0x1]
        %v3744 = vld [vmem:[%s3351 + $0x18] sm:$0xf]
        %v3745 = vld [vmem:[%s3351 + $0x1c] sm:$0xf]
        %v3746 = vld [vmem:[%s3351 + $0x20] sm:$0x1]
        %v3747 = vld [vmem:[%s3351 + $0x24] sm:$0xf]
        %v3748 = vld [vmem:[%s3351 + $0x28] sm:$0xf]
        %v3749 = vld [vmem:[%s3351 + $0x2c] sm:$0x1]
        %v3750 = vld [vmem:[%s3351 + $0x30] sm:$0xf]
        %v3751 = vld [vmem:[%s3351 + $0x34] sm:$0xf]
        %v3752 = vld [vmem:[%s3351 + $0x38] sm:$0x1]
        %v3753 = vld [vmem:[%s3351 + $0x3c] sm:$0xf]
        %v3754 = vld [vmem:[%s3351 + $0x40] sm:$0xf]
        %v3755 = vld [vmem:[%s3351 + $0x44] sm:$0x1]
        %v3756 = vld [vmem:[%s3351 + $0x48] sm:$0xf]
        %v3757 = vld [vmem:[%s3351 + $0x4c] sm:$0xf]
        %v3758 = vld [vmem:[%s3351 + $0x50] sm:$0x1]
        %v3759 = vld [vmem:[%s3351 + $0x54] sm:$0xf]
        %v3760 = vld [vmem:[%s3351 + $0x58] sm:$0xf]
        %v3761 = vld [vmem:[%s3351 + $0x5c] sm:$0x1]
        %v3762 = vld [vmem:[%s3351 + $0x60] sm:$0xf]
        %v3763 = vld [vmem:[%s3351 + $0x64] sm:$0xf]
        %v3764 = vld [vmem:[%s3351 + $0x68] sm:$0x1]
        %v3765 = vld [vmem:[%s3351 + $0x6c] sm:$0xf]
        %v3766 = vld [vmem:[%s3351 + $0x70] sm:$0xf]
        %v3767 = vld [vmem:[%s3351 + $0x74] sm:$0x1]
        %v3768 = vld [vmem:[%s3351 + $0x78] sm:$0xf]
        %v3769 = vld [vmem:[%s3351 + $0x7c] sm:$0xf]
        %v3770 = vld [vmem:[%s3351 + $0x80] sm:$0x1]
        %v3771 = vld [vmem:[%s3351 + $0x84] sm:$0xf]
        %v3772 = vld [vmem:[%s3351 + $0x88] sm:$0xf]
        %v3773 = vld [vmem:[%s3351 + $0x8c] sm:$0x1]
        %v3774 = vld [vmem:[%s3351 + $0x90] sm:$0xf]
        %v3775 = vld [vmem:[%s3351 + $0x94] sm:$0xf]
        %v3776 = vld [vmem:[%s3351 + $0x98] sm:$0x1]
        %v3777 = vld [vmem:[%s3351 + $0x9c] sm:$0xf]
        %v3778 = vld [vmem:[%s3351 + $0xa0] sm:$0xf]
        %v3779 = vld [vmem:[%s3351 + $0xa4] sm:$0x1]
        %v3780 = vld [vmem:[%s3351 + $0xa8] sm:$0xf]
        %v3781 = vld [vmem:[%s3351 + $0xac] sm:$0xf]
        %v3782 = vld [vmem:[%s3351 + $0xb0] sm:$0x1]
        %v3783 = vld [vmem:[%s3351 + $0xb4] sm:$0xf]
        %v3784 = vld [vmem:[%s3351 + $0xb8] sm:$0xf]
        %v3785 = vld [vmem:[%s3351 + $0xbc] sm:$0x1]
        %v3787 = vshrl.u32 %v3738, 16
        %v3789 = vrot.slane %v3787, 4
        %v3790 = vshll.u32 %v3738, 16
        %v3792 = vrot.slane %v3790, 5
        %v3793 = vor.u32 %v3789, %v3792
        %v3794 = vrot.slane %v3793, 4
        %v3796 = vshll.u32 %v3739, 16
        %v3798 = vrot.slane %v3796, 5
        %v3799 = vsel %vm247, %v3794, %v3798
        %v3800 = vshrl.u32 %v3739, 16
        %v3802 = vrot.slane %v3800, 4
        %v3803 = vor.u32 %v3802, %v3798
        %v3804 = vrot.slane %v3803, 4
        %v3806 = vshll.u32 %v3740, 16
        %v3808 = vrot.slane %v3806, 5
        %v3809 = vsel %vm247, %v3804, %v3808
        %v3811 = vshrl.u32 %v3741, 16
        %v3813 = vrot.slane %v3811, 4
        %v3814 = vshll.u32 %v3741, 16
        %v3816 = vrot.slane %v3814, 5
        %v3817 = vor.u32 %v3813, %v3816
        %v3818 = vrot.slane %v3817, 4
        %v3820 = vshll.u32 %v3742, 16
        %v3822 = vrot.slane %v3820, 5
        %v3823 = vsel %vm247, %v3818, %v3822
        %v3824 = vshrl.u32 %v3742, 16
        %v3826 = vrot.slane %v3824, 4
        %v3827 = vor.u32 %v3826, %v3822
        %v3828 = vrot.slane %v3827, 4
        %v3830 = vshll.u32 %v3743, 16
        %v3832 = vrot.slane %v3830, 5
        %v3833 = vsel %vm247, %v3828, %v3832
        %v3835 = vshrl.u32 %v3744, 16
        %v3837 = vrot.slane %v3835, 4
        %v3838 = vshll.u32 %v3744, 16
        %v3840 = vrot.slane %v3838, 5
        %v3841 = vor.u32 %v3837, %v3840
        %v3842 = vrot.slane %v3841, 4
        %v3844 = vshll.u32 %v3745, 16
        %v3846 = vrot.slane %v3844, 5
        %v3847 = vsel %vm247, %v3842, %v3846
        %v3848 = vshrl.u32 %v3745, 16
        %v3850 = vrot.slane %v3848, 4
        %v3851 = vor.u32 %v3850, %v3846
        %v3852 = vrot.slane %v3851, 4
        %v3854 = vshll.u32 %v3746, 16
        %v3856 = vrot.slane %v3854, 5
        %v3857 = vsel %vm247, %v3852, %v3856
        %v3859 = vshrl.u32 %v3747, 16
        %v3861 = vrot.slane %v3859, 4
        %v3862 = vshll.u32 %v3747, 16
        %v3864 = vrot.slane %v3862, 5
        %v3865 = vor.u32 %v3861, %v3864
        %v3866 = vrot.slane %v3865, 4
        %v3868 = vshll.u32 %v3748, 16
        %v3870 = vrot.slane %v3868, 5
        %v3871 = vsel %vm247, %v3866, %v3870
        %v3872 = vshrl.u32 %v3748, 16
        %v3874 = vrot.slane %v3872, 4
        %v3875 = vor.u32 %v3874, %v3870
        %v3876 = vrot.slane %v3875, 4
        %v3878 = vshll.u32 %v3749, 16
        %v3880 = vrot.slane %v3878, 5
        %v3881 = vsel %vm247, %v3876, %v3880
        %v3883 = vshrl.u32 %v3750, 16
        %v3885 = vrot.slane %v3883, 4
        %v3886 = vshll.u32 %v3750, 16
        %v3888 = vrot.slane %v3886, 5
        %v3889 = vor.u32 %v3885, %v3888
        %v3890 = vrot.slane %v3889, 4
        %v3892 = vshll.u32 %v3751, 16
        %v3894 = vrot.slane %v3892, 5
        %v3895 = vsel %vm247, %v3890, %v3894
        %v3896 = vshrl.u32 %v3751, 16
        %v3898 = vrot.slane %v3896, 4
        %v3899 = vor.u32 %v3898, %v3894
        %v3900 = vrot.slane %v3899, 4
        %v3902 = vshll.u32 %v3752, 16
        %v3904 = vrot.slane %v3902, 5
        %v3905 = vsel %vm247, %v3900, %v3904
        %v3907 = vshrl.u32 %v3753, 16
        %v3909 = vrot.slane %v3907, 4
        %v3910 = vshll.u32 %v3753, 16
        %v3912 = vrot.slane %v3910, 5
        %v3913 = vor.u32 %v3909, %v3912
        %v3914 = vrot.slane %v3913, 4
        %v3916 = vshll.u32 %v3754, 16
        %v3918 = vrot.slane %v3916, 5
        %v3919 = vsel %vm247, %v3914, %v3918
        %v3920 = vshrl.u32 %v3754, 16
        %v3922 = vrot.slane %v3920, 4
        %v3923 = vor.u32 %v3922, %v3918
        %v3924 = vrot.slane %v3923, 4
        %v3926 = vshll.u32 %v3755, 16
        %v3928 = vrot.slane %v3926, 5
        %v3929 = vsel %vm247, %v3924, %v3928
        %v3931 = vshrl.u32 %v3756, 16
        %v3933 = vrot.slane %v3931, 4
        %v3934 = vshll.u32 %v3756, 16
        %v3936 = vrot.slane %v3934, 5
        %v3937 = vor.u32 %v3933, %v3936
        %v3938 = vrot.slane %v3937, 4
        %v3940 = vshll.u32 %v3757, 16
        %v3942 = vrot.slane %v3940, 5
        %v3943 = vsel %vm247, %v3938, %v3942
        %v3944 = vshrl.u32 %v3757, 16
        %v3946 = vrot.slane %v3944, 4
        %v3947 = vor.u32 %v3946, %v3942
        %v3948 = vrot.slane %v3947, 4
        %v3950 = vshll.u32 %v3758, 16
        %v3952 = vrot.slane %v3950, 5
        %v3953 = vsel %vm247, %v3948, %v3952
        %v3955 = vshrl.u32 %v3759, 16
        %v3957 = vrot.slane %v3955, 4
        %v3958 = vshll.u32 %v3759, 16
        %v3960 = vrot.slane %v3958, 5
        %v3961 = vor.u32 %v3957, %v3960
        %v3962 = vrot.slane %v3961, 4
        %v3964 = vshll.u32 %v3760, 16
        %v3966 = vrot.slane %v3964, 5
        %v3967 = vsel %vm247, %v3962, %v3966
        %v3968 = vshrl.u32 %v3760, 16
        %v3970 = vrot.slane %v3968, 4
        %v3971 = vor.u32 %v3970, %v3966
        %v3972 = vrot.slane %v3971, 4
        %v3974 = vshll.u32 %v3761, 16
        %v3976 = vrot.slane %v3974, 5
        %v3977 = vsel %vm247, %v3972, %v3976
        %v3979 = vshrl.u32 %v3762, 16
        %v3981 = vrot.slane %v3979, 4
        %v3982 = vshll.u32 %v3762, 16
        %v3984 = vrot.slane %v3982, 5
        %v3985 = vor.u32 %v3981, %v3984
        %v3986 = vrot.slane %v3985, 4
        %v3988 = vshll.u32 %v3763, 16
        %v3990 = vrot.slane %v3988, 5
        %v3991 = vsel %vm247, %v3986, %v3990
        %v3992 = vshrl.u32 %v3763, 16
        %v3994 = vrot.slane %v3992, 4
        %v3995 = vor.u32 %v3994, %v3990
        %v3996 = vrot.slane %v3995, 4
        %v3998 = vshll.u32 %v3764, 16
        %v4000 = vrot.slane %v3998, 5
        %v4001 = vsel %vm247, %v3996, %v4000
        %v4003 = vshrl.u32 %v3765, 16
        %v4005 = vrot.slane %v4003, 4
        %v4006 = vshll.u32 %v3765, 16
        %v4008 = vrot.slane %v4006, 5
        %v4009 = vor.u32 %v4005, %v4008
        %v4010 = vrot.slane %v4009, 4
        %v4012 = vshll.u32 %v3766, 16
        %v4014 = vrot.slane %v4012, 5
        %v4015 = vsel %vm247, %v4010, %v4014
        %v4016 = vshrl.u32 %v3766, 16
        %v4018 = vrot.slane %v4016, 4
        %v4019 = vor.u32 %v4018, %v4014
        %v4020 = vrot.slane %v4019, 4
        %v4022 = vshll.u32 %v3767, 16
        %v4024 = vrot.slane %v4022, 5
        %v4025 = vsel %vm247, %v4020, %v4024
        %v4027 = vshrl.u32 %v3768, 16
        %v4029 = vrot.slane %v4027, 4
        %v4030 = vshll.u32 %v3768, 16
        %v4032 = vrot.slane %v4030, 5
        %v4033 = vor.u32 %v4029, %v4032
        %v4034 = vrot.slane %v4033, 4
        %v4036 = vshll.u32 %v3769, 16
        %v4038 = vrot.slane %v4036, 5
        %v4039 = vsel %vm247, %v4034, %v4038
        %v4040 = vshrl.u32 %v3769, 16
        %v4042 = vrot.slane %v4040, 4
        %v4043 = vor.u32 %v4042, %v4038
        %v4044 = vrot.slane %v4043, 4
        %v4046 = vshll.u32 %v3770, 16
        %v4048 = vrot.slane %v4046, 5
        %v4049 = vsel %vm247, %v4044, %v4048
        %v4051 = vshrl.u32 %v3771, 16
        %v4053 = vrot.slane %v4051, 4
        %v4054 = vshll.u32 %v3771, 16
        %v4056 = vrot.slane %v4054, 5
        %v4057 = vor.u32 %v4053, %v4056
        %v4058 = vrot.slane %v4057, 4
        %v4060 = vshll.u32 %v3772, 16
        %v4062 = vrot.slane %v4060, 5
        %v4063 = vsel %vm247, %v4058, %v4062
        %v4064 = vshrl.u32 %v3772, 16
        %v4066 = vrot.slane %v4064, 4
        %v4067 = vor.u32 %v4066, %v4062
        %v4068 = vrot.slane %v4067, 4
        %v4070 = vshll.u32 %v3773, 16
        %v4072 = vrot.slane %v4070, 5
        %v4073 = vsel %vm247, %v4068, %v4072
        %v4075 = vshrl.u32 %v3774, 16
        %v4077 = vrot.slane %v4075, 4
        %v4078 = vshll.u32 %v3774, 16
        %v4080 = vrot.slane %v4078, 5
        %v4081 = vor.u32 %v4077, %v4080
        %v4082 = vrot.slane %v4081, 4
        %v4084 = vshll.u32 %v3775, 16
        %v4086 = vrot.slane %v4084, 5
        %v4087 = vsel %vm247, %v4082, %v4086
        %v4088 = vshrl.u32 %v3775, 16
        %v4090 = vrot.slane %v4088, 4
        %v4091 = vor.u32 %v4090, %v4086
        %v4092 = vrot.slane %v4091, 4
        %v4094 = vshll.u32 %v3776, 16
        %v4096 = vrot.slane %v4094, 5
        %v4097 = vsel %vm247, %v4092, %v4096
        %v4099 = vshrl.u32 %v3777, 16
        %v4101 = vrot.slane %v4099, 4
        %v4102 = vshll.u32 %v3777, 16
        %v4104 = vrot.slane %v4102, 5
        %v4105 = vor.u32 %v4101, %v4104
        %v4106 = vrot.slane %v4105, 4
        %v4108 = vshll.u32 %v3778, 16
        %v4110 = vrot.slane %v4108, 5
        %v4111 = vsel %vm247, %v4106, %v4110
        %v4112 = vshrl.u32 %v3778, 16
        %v4114 = vrot.slane %v4112, 4
        %v4115 = vor.u32 %v4114, %v4110
        %v4116 = vrot.slane %v4115, 4
        %v4118 = vshll.u32 %v3779, 16
        %v4120 = vrot.slane %v4118, 5
        %v4121 = vsel %vm247, %v4116, %v4120
        %v4123 = vshrl.u32 %v3780, 16
        %v4125 = vrot.slane %v4123, 4
        %v4126 = vshll.u32 %v3780, 16
        %v4128 = vrot.slane %v4126, 5
        %v4129 = vor.u32 %v4125, %v4128
        %v4130 = vrot.slane %v4129, 4
        %v4132 = vshll.u32 %v3781, 16
        %v4134 = vrot.slane %v4132, 5
        %v4135 = vsel %vm247, %v4130, %v4134
        %v4136 = vshrl.u32 %v3781, 16
        %v4138 = vrot.slane %v4136, 4
        %v4139 = vor.u32 %v4138, %v4134
        %v4140 = vrot.slane %v4139, 4
        %v4142 = vshll.u32 %v3782, 16
        %v4144 = vrot.slane %v4142, 5
        %v4145 = vsel %vm247, %v4140, %v4144
        %v4147 = vshrl.u32 %v3783, 16
        %v4149 = vrot.slane %v4147, 4
        %v4150 = vshll.u32 %v3783, 16
        %v4152 = vrot.slane %v4150, 5
        %v4153 = vor.u32 %v4149, %v4152
        %v4154 = vrot.slane %v4153, 4
        %v4156 = vshll.u32 %v3784, 16
        %v4158 = vrot.slane %v4156, 5
        %v4159 = vsel %vm247, %v4154, %v4158
        %v4160 = vshrl.u32 %v3784, 16
        %v4162 = vrot.slane %v4160, 4
        %v4163 = vor.u32 %v4162, %v4158
        %v4164 = vrot.slane %v4163, 4
        %v4166 = vshll.u32 %v3785, 16
        %v4168 = vrot.slane %v4166, 5
        %v4169 = vsel %vm247, %v4164, %v4168
        %s4170 = scalar_lea.vmem %s1, 448
        %v4171 = vld [vmem:[%s4170] sm:$0xf]
        %v4172 = vld [vmem:[%s4170 + $0x4] sm:$0xf]
        %v4173 = vld [vmem:[%s4170 + $0x8] sm:$0xf]
        %v4174 = vld [vmem:[%s4170 + $0xc] sm:$0xf]
        %v4175 = vld [vmem:[%s4170 + $0x10] sm:$0xf]
        %v4176 = vld [vmem:[%s4170 + $0x14] sm:$0xf]
        %v4177 = vld [vmem:[%s4170 + $0x18] sm:$0xf]
        %v4178 = vld [vmem:[%s4170 + $0x1c] sm:$0xf]
        %v4179 = vld [vmem:[%s4170 + $0x20] sm:$0xf]
        %v4180 = vld [vmem:[%s4170 + $0x24] sm:$0xf]
        %v4181 = vld [vmem:[%s4170 + $0x28] sm:$0xf]
        %v4182 = vld [vmem:[%s4170 + $0x2c] sm:$0xf]
        %v4183 = vld [vmem:[%s4170 + $0x30] sm:$0xf]
        %v4184 = vld [vmem:[%s4170 + $0x34] sm:$0xf]
        %v4185 = vld [vmem:[%s4170 + $0x38] sm:$0xf]
        %v4186 = vld [vmem:[%s4170 + $0x3c] sm:$0xf]
        %v4187 = vunpack.c.l.b16 %v3799
        %v4188 = vunpack.c.l.b16 %v3809
        %v4189 = vunpack.c.l.b16 %v3823
        %v4190 = vunpack.c.l.b16 %v3833
        %v4191 = vunpack.c.l.b16 %v3847
        %v4192 = vunpack.c.l.b16 %v3857
        %v4193 = vunpack.c.l.b16 %v3871
        %v4194 = vunpack.c.l.b16 %v3881
        %v4195 = vunpack.c.l.b16 %v3895
        %v4196 = vunpack.c.l.b16 %v3905
        %v4197 = vunpack.c.l.b16 %v3919
        %v4198 = vunpack.c.l.b16 %v3929
        %v4199 = vunpack.c.l.b16 %v3943
        %v4200 = vunpack.c.l.b16 %v3953
        %v4201 = vunpack.c.l.b16 %v3967
        %v4202 = vunpack.c.l.b16 %v3977
        %v4203 = vunpack.c.l.b16 %v3991
        %v4204 = vunpack.c.l.b16 %v4001
        %v4205 = vunpack.c.l.b16 %v4015
        %v4206 = vunpack.c.l.b16 %v4025
        %v4207 = vunpack.c.l.b16 %v4039
        %v4208 = vunpack.c.l.b16 %v4049
        %v4209 = vunpack.c.l.b16 %v4063
        %v4210 = vunpack.c.l.b16 %v4073
        %v4211 = vunpack.c.l.b16 %v4087
        %v4212 = vunpack.c.l.b16 %v4097
        %v4213 = vunpack.c.l.b16 %v4111
        %v4214 = vunpack.c.l.b16 %v4121
        %v4215 = vunpack.c.l.b16 %v4135
        %v4216 = vunpack.c.l.b16 %v4145
        %v4217 = vunpack.c.l.b16 %v4159
        %v4218 = vunpack.c.l.b16 %v4169
        %v4219 = vpack.c.b16 %v4188, %v4187
        %v4220 = vpack.c.b16 %v4190, %v4189
        %v4221 = vpack.c.b16 %v4192, %v4191
        %v4222 = vpack.c.b16 %v4194, %v4193
        %v4223 = vpack.c.b16 %v4196, %v4195
        %v4224 = vpack.c.b16 %v4198, %v4197
        %v4225 = vpack.c.b16 %v4200, %v4199
        %v4226 = vpack.c.b16 %v4202, %v4201
        %v4227 = vpack.c.b16 %v4204, %v4203
        %v4228 = vpack.c.b16 %v4206, %v4205
        %v4229 = vpack.c.b16 %v4208, %v4207
        %v4230 = vpack.c.b16 %v4210, %v4209
        %v4231 = vpack.c.b16 %v4212, %v4211
        %v4232 = vpack.c.b16 %v4214, %v4213
        %v4233 = vpack.c.b16 %v4216, %v4215
        %v4234 = vpack.c.b16 %v4218, %v4217
        %v4267 = vunpack.c.l.b16 %v4171
        %v4268 = vunpack.c.l.b16 %v4172
        %v4269 = vunpack.c.l.b16 %v4173
        %v4270 = vunpack.c.l.b16 %v4174
        %v4271 = vunpack.c.l.b16 %v4175
        %v4272 = vunpack.c.l.b16 %v4176
        %v4273 = vunpack.c.l.b16 %v4177
        %v4274 = vunpack.c.l.b16 %v4178
        %v4275 = vunpack.c.l.b16 %v4179
        %v4276 = vunpack.c.l.b16 %v4180
        %v4277 = vunpack.c.l.b16 %v4181
        %v4278 = vunpack.c.l.b16 %v4182
        %v4279 = vunpack.c.l.b16 %v4183
        %v4280 = vunpack.c.l.b16 %v4184
        %v4281 = vunpack.c.l.b16 %v4185
        %v4282 = vunpack.c.l.b16 %v4186
        %v4283 = vpack.c.b16 %v4268, %v4267
        %v4284 = vpack.c.b16 %v4270, %v4269
        %v4285 = vpack.c.b16 %v4272, %v4271
        %v4286 = vpack.c.b16 %v4274, %v4273
        %v4287 = vpack.c.b16 %v4276, %v4275
        %v4288 = vpack.c.b16 %v4278, %v4277
        %v4289 = vpack.c.b16 %v4280, %v4279
        %v4290 = vpack.c.b16 %v4282, %v4281
        %4299 = vmatprep.subr.bf16.mxu0 0
        %4300 = vmatpush1.bf16.msra.mxu0 %v4290
        %4301 = vmatprep.subr.bf16.mxu0 0
        %4302 = vmatpush1.bf16.msra.mxu0 %v4289
        %4303 = vmatprep.subr.bf16.mxu0 0
        %4304 = vmatpush1.bf16.msra.mxu0 %v4288
        %4305 = vmatprep.subr.bf16.mxu0 0
        %4306 = vmatpush1.bf16.msra.mxu0 %v4287
        %4307 = vmatprep.subr.bf16.mxu0 0
        %4308 = vmatpush1.bf16.msra.mxu0 %v4286
        %4309 = vmatprep.subr.bf16.mxu0 0
        %4310 = vmatpush1.bf16.msra.mxu0 %v4285
        %4311 = vmatprep.subr.bf16.mxu0 0
        %4312 = vmatpush1.bf16.msra.mxu0 %v4284
        %4313 = vmatprep.subr.bf16.mxu0 0
        %4314 = vmatpush1.bf16.msra.mxu0 %v4283
        %4315 = vmatprep.subr.bf16.mxu0 0
        %4316 = vmatpush2.bf16.msra.mxu0 0
        %4317 = vmatprep.subr.bf16.mxu0 0
        %4318 = vmatpush2.bf16.msra.mxu0 0
        %4319 = vmatprep.subr.bf16.mxu0 0
        %4320 = vmatpush2.bf16.msra.mxu0 0
        %4321 = vmatprep.subr.bf16.mxu0 0
        %4322 = vmatpush2.bf16.msra.mxu0 0
        %4323 = vmatprep.subr.bf16.mxu0 0
        %4324 = vmatpush2.bf16.msra.mxu0 0
        %4325 = vmatprep.subr.bf16.mxu0 0
        %4326 = vmatpush2.bf16.msra.mxu0 0
        %4327 = vmatprep.subr.bf16.mxu0 0
        %4328 = vmatpush2.bf16.msra.mxu0 0
        %4329 = vmatprep.subr.bf16.mxu0 0
        %4330 = vmatpush2.bf16.msra.mxu0 0
        %4331 = vmatprep.mubr.bf16.mxu0 0
        %4332 = vmatmul.mubr.bf16.gmra.mxu0 %v4219
        %v4333 = vpop.f32.mrf.mxu0
        %v4334 = vadd.f32 0.0, %v4333
        %v4335 = vpop.f32.mrf.mxu0
        %v4336 = vpop.f32.mrf.mxu0
        %v4337 = vadd.f32 0.0, %v4336
        %v4338 = vpop.f32.mrf.mxu0
        %4339 = vmatprep.mubr.bf16.mxu0 0
        %4340 = vmatmul.mubr.bf16.gmra.mxu0 %v4220
        %v4341 = vpop.f32.mrf.mxu0
        %v4342 = vadd.f32 0.0, %v4341
        %v4343 = vpop.f32.mrf.mxu0
        %v4344 = vpop.f32.mrf.mxu0
        %v4345 = vadd.f32 0.0, %v4344
        %v4346 = vpop.f32.mrf.mxu0
        %4347 = vmatprep.mubr.bf16.mxu0 0
        %4348 = vmatmul.mubr.bf16.gmra.mxu0 %v4221
        %v4349 = vpop.f32.mrf.mxu0
        %v4350 = vadd.f32 0.0, %v4349
        %v4351 = vpop.f32.mrf.mxu0
        %v4352 = vpop.f32.mrf.mxu0
        %v4353 = vadd.f32 0.0, %v4352
        %v4354 = vpop.f32.mrf.mxu0
        %4355 = vmatprep.mubr.bf16.mxu0 0
        %4356 = vmatmul.mubr.bf16.gmra.mxu0 %v4222
        %v4357 = vpop.f32.mrf.mxu0
        %v4358 = vadd.f32 0.0, %v4357
        %v4359 = vpop.f32.mrf.mxu0
        %v4360 = vpop.f32.mrf.mxu0
        %v4361 = vadd.f32 0.0, %v4360
        %v4362 = vpop.f32.mrf.mxu0
        %4363 = vmatprep.mubr.bf16.mxu0 0
        %4364 = vmatmul.mubr.bf16.gmra.mxu0 %v4223
        %v4365 = vpop.f32.mrf.mxu0
        %v4366 = vadd.f32 0.0, %v4365
        %v4367 = vpop.f32.mrf.mxu0
        %v4368 = vpop.f32.mrf.mxu0
        %v4369 = vadd.f32 0.0, %v4368
        %v4370 = vpop.f32.mrf.mxu0
        %4371 = vmatprep.mubr.bf16.mxu0 0
        %4372 = vmatmul.mubr.bf16.gmra.mxu0 %v4224
        %v4373 = vpop.f32.mrf.mxu0
        %v4374 = vadd.f32 0.0, %v4373
        %v4375 = vpop.f32.mrf.mxu0
        %v4376 = vpop.f32.mrf.mxu0
        %v4377 = vadd.f32 0.0, %v4376
        %v4378 = vpop.f32.mrf.mxu0
        %4379 = vmatprep.mubr.bf16.mxu0 0
        %4380 = vmatmul.mubr.bf16.gmra.mxu0 %v4225
        %v4381 = vpop.f32.mrf.mxu0
        %v4382 = vadd.f32 0.0, %v4381
        %v4383 = vpop.f32.mrf.mxu0
        %v4384 = vpop.f32.mrf.mxu0
        %v4385 = vadd.f32 0.0, %v4384
        %v4386 = vpop.f32.mrf.mxu0
        %4387 = vmatprep.mubr.bf16.mxu0 0
        %4388 = vmatmul.mubr.bf16.gmra.mxu0 %v4226
        %v4389 = vpop.f32.mrf.mxu0
        %v4390 = vadd.f32 0.0, %v4389
        %v4391 = vpop.f32.mrf.mxu0
        %v4392 = vpop.f32.mrf.mxu0
        %v4393 = vadd.f32 0.0, %v4392
        %v4394 = vpop.f32.mrf.mxu0
        %4395 = vmatprep.mubr.bf16.mxu0 0
        %4396 = vmatmul.mubr.bf16.gmra.mxu0 %v4227
        %v4397 = vpop.f32.mrf.mxu0
        %v4398 = vadd.f32 0.0, %v4397
        %v4399 = vpop.f32.mrf.mxu0
        %v4400 = vpop.f32.mrf.mxu0
        %v4401 = vadd.f32 0.0, %v4400
        %v4402 = vpop.f32.mrf.mxu0
        %4403 = vmatprep.mubr.bf16.mxu0 0
        %4404 = vmatmul.mubr.bf16.gmra.mxu0 %v4228
        %v4405 = vpop.f32.mrf.mxu0
        %v4406 = vadd.f32 0.0, %v4405
        %v4407 = vpop.f32.mrf.mxu0
        %v4408 = vpop.f32.mrf.mxu0
        %v4409 = vadd.f32 0.0, %v4408
        %v4410 = vpop.f32.mrf.mxu0
        %4411 = vmatprep.mubr.bf16.mxu0 0
        %4412 = vmatmul.mubr.bf16.gmra.mxu0 %v4229
        %v4413 = vpop.f32.mrf.mxu0
        %v4414 = vadd.f32 0.0, %v4413
        %v4415 = vpop.f32.mrf.mxu0
        %v4416 = vpop.f32.mrf.mxu0
        %v4417 = vadd.f32 0.0, %v4416
        %v4418 = vpop.f32.mrf.mxu0
        %4419 = vmatprep.mubr.bf16.mxu0 0
        %4420 = vmatmul.mubr.bf16.gmra.mxu0 %v4230
        %v4421 = vpop.f32.mrf.mxu0
        %v4422 = vadd.f32 0.0, %v4421
        %v4423 = vpop.f32.mrf.mxu0
        %v4424 = vpop.f32.mrf.mxu0
        %v4425 = vadd.f32 0.0, %v4424
        %v4426 = vpop.f32.mrf.mxu0
        %4427 = vmatprep.mubr.bf16.mxu0 0
        %4428 = vmatmul.mubr.bf16.gmra.mxu0 %v4231
        %v4429 = vpop.f32.mrf.mxu0
        %v4430 = vadd.f32 0.0, %v4429
        %v4431 = vpop.f32.mrf.mxu0
        %v4432 = vpop.f32.mrf.mxu0
        %v4433 = vadd.f32 0.0, %v4432
        %v4434 = vpop.f32.mrf.mxu0
        %4435 = vmatprep.mubr.bf16.mxu0 0
        %4436 = vmatmul.mubr.bf16.gmra.mxu0 %v4232
        %v4437 = vpop.f32.mrf.mxu0
        %v4438 = vadd.f32 0.0, %v4437
        %v4439 = vpop.f32.mrf.mxu0
        %v4440 = vpop.f32.mrf.mxu0
        %v4441 = vadd.f32 0.0, %v4440
        %v4442 = vpop.f32.mrf.mxu0
        %4443 = vmatprep.mubr.bf16.mxu0 0
        %4444 = vmatmul.mubr.bf16.gmra.mxu0 %v4233
        %v4445 = vpop.f32.mrf.mxu0
        %v4446 = vadd.f32 0.0, %v4445
        %v4447 = vpop.f32.mrf.mxu0
        %v4448 = vpop.f32.mrf.mxu0
        %v4449 = vadd.f32 0.0, %v4448
        %v4450 = vpop.f32.mrf.mxu0
        %4451 = vmatprep.mubr.bf16.mxu0 0
        %4452 = vmatmul.mubr.bf16.gmra.mxu0 %v4234
        %v4453 = vpop.f32.mrf.mxu0
        %v4454 = vadd.f32 0.0, %v4453
        %v4455 = vpop.f32.mrf.mxu0
        %v4456 = vpop.f32.mrf.mxu0
        %v4457 = vadd.f32 0.0, %v4456
        %v4458 = vpop.f32.mrf.mxu0
        %4459 = vdwg.mxu0
        %v4460 = vadd.f32 %v3706, %v4334
        %v4461 = vadd.f32 %v3707, %v4337
        %v4462 = vadd.f32 %v3708, %v4342
        %v4463 = vadd.f32 %v3709, %v4345
        %v4464 = vadd.f32 %v3710, %v4350
        %v4465 = vadd.f32 %v3711, %v4353
        %v4466 = vadd.f32 %v3712, %v4358
        %v4467 = vadd.f32 %v3713, %v4361
        %v4468 = vadd.f32 %v3714, %v4366
        %v4469 = vadd.f32 %v3715, %v4369
        %v4470 = vadd.f32 %v3716, %v4374
        %v4471 = vadd.f32 %v3717, %v4377
        %v4472 = vadd.f32 %v3718, %v4382
        %v4473 = vadd.f32 %v3719, %v4385
        %v4474 = vadd.f32 %v3720, %v4390
        %v4475 = vadd.f32 %v3721, %v4393
        %v4476 = vadd.f32 %v3722, %v4398
        %v4477 = vadd.f32 %v3723, %v4401
        %v4478 = vadd.f32 %v3724, %v4406
        %v4479 = vadd.f32 %v3725, %v4409
        %v4480 = vadd.f32 %v3726, %v4414
        %v4481 = vadd.f32 %v3727, %v4417
        %v4482 = vadd.f32 %v3728, %v4422
        %v4483 = vadd.f32 %v3729, %v4425
        %v4484 = vadd.f32 %v3730, %v4430
        %v4485 = vadd.f32 %v3731, %v4433
        %v4486 = vadd.f32 %v3732, %v4438
        %v4487 = vadd.f32 %v3733, %v4441
        %v4488 = vadd.f32 %v3734, %v4446
        %v4489 = vadd.f32 %v3735, %v4449
        %v4490 = vadd.f32 %v3736, %v4454
        %v4491 = vadd.f32 %v3737, %v4457
        %v4492 = vld [vmem:[%s3351] sm:$0xe]
        %v4493 = vld [vmem:[%s3351 + $0xc] sm:$0xe]
        %v4494 = vld [vmem:[%s3351 + $0x18] sm:$0xe]
        %v4495 = vld [vmem:[%s3351 + $0x24] sm:$0xe]
        %v4496 = vld [vmem:[%s3351 + $0x30] sm:$0xe]
        %v4497 = vld [vmem:[%s3351 + $0x3c] sm:$0xe]
        %v4498 = vld [vmem:[%s3351 + $0x48] sm:$0xe]
        %v4499 = vld [vmem:[%s3351 + $0x54] sm:$0xe]
        %v4500 = vld [vmem:[%s3351 + $0x60] sm:$0xe]
        %v4501 = vld [vmem:[%s3351 + $0x6c] sm:$0xe]
        %v4502 = vld [vmem:[%s3351 + $0x78] sm:$0xe]
        %v4503 = vld [vmem:[%s3351 + $0x84] sm:$0xe]
        %v4504 = vld [vmem:[%s3351 + $0x90] sm:$0xe]
        %v4505 = vld [vmem:[%s3351 + $0x9c] sm:$0xe]
        %v4506 = vld [vmem:[%s3351 + $0xa8] sm:$0xe]
        %v4507 = vld [vmem:[%s3351 + $0xb4] sm:$0xe]
        %v4556 = vrot.slane %v4492, 5
        %v4557 = vrot.slane %v4556, 4
        %v4558 = vrot.slane %v3739, 5
        %v4559 = vsel %vm1277, %v4557, %v4558
        %v4560 = vrot.slane %v4558, 4
        %v4561 = vrot.slane %v3740, 5
        %v4562 = vsel %vm1277, %v4560, %v4561
        %v4563 = vrot.slane %v4493, 5
        %v4564 = vrot.slane %v4563, 4
        %v4565 = vrot.slane %v3742, 5
        %v4566 = vsel %vm1277, %v4564, %v4565
        %v4567 = vrot.slane %v4565, 4
        %v4568 = vrot.slane %v3743, 5
        %v4569 = vsel %vm1277, %v4567, %v4568
        %v4570 = vrot.slane %v4494, 5
        %v4571 = vrot.slane %v4570, 4
        %v4572 = vrot.slane %v3745, 5
        %v4573 = vsel %vm1277, %v4571, %v4572
        %v4574 = vrot.slane %v4572, 4
        %v4575 = vrot.slane %v3746, 5
        %v4576 = vsel %vm1277, %v4574, %v4575
        %v4577 = vrot.slane %v4495, 5
        %v4578 = vrot.slane %v4577, 4
        %v4579 = vrot.slane %v3748, 5
        %v4580 = vsel %vm1277, %v4578, %v4579
        %v4581 = vrot.slane %v4579, 4
        %v4582 = vrot.slane %v3749, 5
        %v4583 = vsel %vm1277, %v4581, %v4582
        %v4584 = vrot.slane %v4496, 5
        %v4585 = vrot.slane %v4584, 4
        %v4586 = vrot.slane %v3751, 5
        %v4587 = vsel %vm1277, %v4585, %v4586
        %v4588 = vrot.slane %v4586, 4
        %v4589 = vrot.slane %v3752, 5
        %v4590 = vsel %vm1277, %v4588, %v4589
        %v4591 = vrot.slane %v4497, 5
        %v4592 = vrot.slane %v4591, 4
        %v4593 = vrot.slane %v3754, 5
        %v4594 = vsel %vm1277, %v4592, %v4593
        %v4595 = vrot.slane %v4593, 4
        %v4596 = vrot.slane %v3755, 5
        %v4597 = vsel %vm1277, %v4595, %v4596
        %v4598 = vrot.slane %v4498, 5
        %v4599 = vrot.slane %v4598, 4
        %v4600 = vrot.slane %v3757, 5
        %v4601 = vsel %vm1277, %v4599, %v4600
        %v4602 = vrot.slane %v4600, 4
        %v4603 = vrot.slane %v3758, 5
        %v4604 = vsel %vm1277, %v4602, %v4603
        %v4605 = vrot.slane %v4499, 5
        %v4606 = vrot.slane %v4605, 4
        %v4607 = vrot.slane %v3760, 5
        %v4608 = vsel %vm1277, %v4606, %v4607
        %v4609 = vrot.slane %v4607, 4
        %v4610 = vrot.slane %v3761, 5
        %v4611 = vsel %vm1277, %v4609, %v4610
        %v4612 = vrot.slane %v4500, 5
        %v4613 = vrot.slane %v4612, 4
        %v4614 = vrot.slane %v3763, 5
        %v4615 = vsel %vm1277, %v4613, %v4614
        %v4616 = vrot.slane %v4614, 4
        %v4617 = vrot.slane %v3764, 5
        %v4618 = vsel %vm1277, %v4616, %v4617
        %v4619 = vrot.slane %v4501, 5
        %v4620 = vrot.slane %v4619, 4
        %v4621 = vrot.slane %v3766, 5
        %v4622 = vsel %vm1277, %v4620, %v4621
        %v4623 = vrot.slane %v4621, 4
        %v4624 = vrot.slane %v3767, 5
        %v4625 = vsel %vm1277, %v4623, %v4624
        %v4626 = vrot.slane %v4502, 5
        %v4627 = vrot.slane %v4626, 4
        %v4628 = vrot.slane %v3769, 5
        %v4629 = vsel %vm1277, %v4627, %v4628
        %v4630 = vrot.slane %v4628, 4
        %v4631 = vrot.slane %v3770, 5
        %v4632 = vsel %vm1277, %v4630, %v4631
        %v4633 = vrot.slane %v4503, 5
        %v4634 = vrot.slane %v4633, 4
        %v4635 = vrot.slane %v3772, 5
        %v4636 = vsel %vm1277, %v4634, %v4635
        %v4637 = vrot.slane %v4635, 4
        %v4638 = vrot.slane %v3773, 5
        %v4639 = vsel %vm1277, %v4637, %v4638
        %v4640 = vrot.slane %v4504, 5
        %v4641 = vrot.slane %v4640, 4
        %v4642 = vrot.slane %v3775, 5
        %v4643 = vsel %vm1277, %v4641, %v4642
        %v4644 = vrot.slane %v4642, 4
        %v4645 = vrot.slane %v3776, 5
        %v4646 = vsel %vm1277, %v4644, %v4645
        %v4647 = vrot.slane %v4505, 5
        %v4648 = vrot.slane %v4647, 4
        %v4649 = vrot.slane %v3778, 5
        %v4650 = vsel %vm1277, %v4648, %v4649
        %v4651 = vrot.slane %v4649, 4
        %v4652 = vrot.slane %v3779, 5
        %v4653 = vsel %vm1277, %v4651, %v4652
        %v4654 = vrot.slane %v4506, 5
        %v4655 = vrot.slane %v4654, 4
        %v4656 = vrot.slane %v3781, 5
        %v4657 = vsel %vm1277, %v4655, %v4656
        %v4658 = vrot.slane %v4656, 4
        %v4659 = vrot.slane %v3782, 5
        %v4660 = vsel %vm1277, %v4658, %v4659
        %v4661 = vrot.slane %v4507, 5
        %v4662 = vrot.slane %v4661, 4
        %v4663 = vrot.slane %v3784, 5
        %v4664 = vsel %vm1277, %v4662, %v4663
        %v4665 = vrot.slane %v4663, 4
        %v4666 = vrot.slane %v3785, 5
        %v4667 = vsel %vm1277, %v4665, %v4666
        %s4668 = scalar_lea.vmem %s1, 512
        %v4669 = vld [vmem:[%s4668] sm:$0xf]
        %v4670 = vld [vmem:[%s4668 + $0x4] sm:$0xf]
        %v4671 = vld [vmem:[%s4668 + $0x8] sm:$0xf]
        %v4672 = vld [vmem:[%s4668 + $0xc] sm:$0xf]
        %v4673 = vld [vmem:[%s4668 + $0x10] sm:$0xf]
        %v4674 = vld [vmem:[%s4668 + $0x14] sm:$0xf]
        %v4675 = vld [vmem:[%s4668 + $0x18] sm:$0xf]
        %v4676 = vld [vmem:[%s4668 + $0x1c] sm:$0xf]
        %v4677 = vld [vmem:[%s4668 + $0x20] sm:$0xf]
        %v4678 = vld [vmem:[%s4668 + $0x24] sm:$0xf]
        %v4679 = vld [vmem:[%s4668 + $0x28] sm:$0xf]
        %v4680 = vld [vmem:[%s4668 + $0x2c] sm:$0xf]
        %v4681 = vld [vmem:[%s4668 + $0x30] sm:$0xf]
        %v4682 = vld [vmem:[%s4668 + $0x34] sm:$0xf]
        %v4683 = vld [vmem:[%s4668 + $0x38] sm:$0xf]
        %v4684 = vld [vmem:[%s4668 + $0x3c] sm:$0xf]
        %v4685 = vunpack.c.l.b16 %v4559
        %v4686 = vunpack.c.l.b16 %v4562
        %v4687 = vunpack.c.l.b16 %v4566
        %v4688 = vunpack.c.l.b16 %v4569
        %v4689 = vunpack.c.l.b16 %v4573
        %v4690 = vunpack.c.l.b16 %v4576
        %v4691 = vunpack.c.l.b16 %v4580
        %v4692 = vunpack.c.l.b16 %v4583
        %v4693 = vunpack.c.l.b16 %v4587
        %v4694 = vunpack.c.l.b16 %v4590
        %v4695 = vunpack.c.l.b16 %v4594
        %v4696 = vunpack.c.l.b16 %v4597
        %v4697 = vunpack.c.l.b16 %v4601
        %v4698 = vunpack.c.l.b16 %v4604
        %v4699 = vunpack.c.l.b16 %v4608
        %v4700 = vunpack.c.l.b16 %v4611
        %v4701 = vunpack.c.l.b16 %v4615
        %v4702 = vunpack.c.l.b16 %v4618
        %v4703 = vunpack.c.l.b16 %v4622
        %v4704 = vunpack.c.l.b16 %v4625
        %v4705 = vunpack.c.l.b16 %v4629
        %v4706 = vunpack.c.l.b16 %v4632
        %v4707 = vunpack.c.l.b16 %v4636
        %v4708 = vunpack.c.l.b16 %v4639
        %v4709 = vunpack.c.l.b16 %v4643
        %v4710 = vunpack.c.l.b16 %v4646
        %v4711 = vunpack.c.l.b16 %v4650
        %v4712 = vunpack.c.l.b16 %v4653
        %v4713 = vunpack.c.l.b16 %v4657
        %v4714 = vunpack.c.l.b16 %v4660
        %v4715 = vunpack.c.l.b16 %v4664
        %v4716 = vunpack.c.l.b16 %v4667
        %v4717 = vpack.c.b16 %v4686, %v4685
        %v4718 = vpack.c.b16 %v4688, %v4687
        %v4719 = vpack.c.b16 %v4690, %v4689
        %v4720 = vpack.c.b16 %v4692, %v4691
        %v4721 = vpack.c.b16 %v4694, %v4693
        %v4722 = vpack.c.b16 %v4696, %v4695
        %v4723 = vpack.c.b16 %v4698, %v4697
        %v4724 = vpack.c.b16 %v4700, %v4699
        %v4725 = vpack.c.b16 %v4702, %v4701
        %v4726 = vpack.c.b16 %v4704, %v4703
        %v4727 = vpack.c.b16 %v4706, %v4705
        %v4728 = vpack.c.b16 %v4708, %v4707
        %v4729 = vpack.c.b16 %v4710, %v4709
        %v4730 = vpack.c.b16 %v4712, %v4711
        %v4731 = vpack.c.b16 %v4714, %v4713
        %v4732 = vpack.c.b16 %v4716, %v4715
        %v4765 = vunpack.c.l.b16 %v4669
        %v4766 = vunpack.c.l.b16 %v4670
        %v4767 = vunpack.c.l.b16 %v4671
        %v4768 = vunpack.c.l.b16 %v4672
        %v4769 = vunpack.c.l.b16 %v4673
        %v4770 = vunpack.c.l.b16 %v4674
        %v4771 = vunpack.c.l.b16 %v4675
        %v4772 = vunpack.c.l.b16 %v4676
        %v4773 = vunpack.c.l.b16 %v4677
        %v4774 = vunpack.c.l.b16 %v4678
        %v4775 = vunpack.c.l.b16 %v4679
        %v4776 = vunpack.c.l.b16 %v4680
        %v4777 = vunpack.c.l.b16 %v4681
        %v4778 = vunpack.c.l.b16 %v4682
        %v4779 = vunpack.c.l.b16 %v4683
        %v4780 = vunpack.c.l.b16 %v4684
        %v4781 = vpack.c.b16 %v4766, %v4765
        %v4782 = vpack.c.b16 %v4768, %v4767
        %v4783 = vpack.c.b16 %v4770, %v4769
        %v4784 = vpack.c.b16 %v4772, %v4771
        %v4785 = vpack.c.b16 %v4774, %v4773
        %v4786 = vpack.c.b16 %v4776, %v4775
        %v4787 = vpack.c.b16 %v4778, %v4777
        %v4788 = vpack.c.b16 %v4780, %v4779
        %4797 = vmatprep.subr.bf16.mxu0 0
        %4798 = vmatpush1.bf16.msra.mxu0 %v4788
        %4799 = vmatprep.subr.bf16.mxu0 0
        %4800 = vmatpush1.bf16.msra.mxu0 %v4787
        %4801 = vmatprep.subr.bf16.mxu0 0
        %4802 = vmatpush1.bf16.msra.mxu0 %v4786
        %4803 = vmatprep.subr.bf16.mxu0 0
        %4804 = vmatpush1.bf16.msra.mxu0 %v4785
        %4805 = vmatprep.subr.bf16.mxu0 0
        %4806 = vmatpush1.bf16.msra.mxu0 %v4784
        %4807 = vmatprep.subr.bf16.mxu0 0
        %4808 = vmatpush1.bf16.msra.mxu0 %v4783
        %4809 = vmatprep.subr.bf16.mxu0 0
        %4810 = vmatpush1.bf16.msra.mxu0 %v4782
        %4811 = vmatprep.subr.bf16.mxu0 0
        %4812 = vmatpush1.bf16.msra.mxu0 %v4781
        %4813 = vmatprep.subr.bf16.mxu0 0
        %4814 = vmatpush2.bf16.msra.mxu0 0
        %4815 = vmatprep.subr.bf16.mxu0 0
        %4816 = vmatpush2.bf16.msra.mxu0 0
        %4817 = vmatprep.subr.bf16.mxu0 0
        %4818 = vmatpush2.bf16.msra.mxu0 0
        %4819 = vmatprep.subr.bf16.mxu0 0
        %4820 = vmatpush2.bf16.msra.mxu0 0
        %4821 = vmatprep.subr.bf16.mxu0 0
        %4822 = vmatpush2.bf16.msra.mxu0 0
        %4823 = vmatprep.subr.bf16.mxu0 0
        %4824 = vmatpush2.bf16.msra.mxu0 0
        %4825 = vmatprep.subr.bf16.mxu0 0
        %4826 = vmatpush2.bf16.msra.mxu0 0
        %4827 = vmatprep.subr.bf16.mxu0 0
        %4828 = vmatpush2.bf16.msra.mxu0 0
        %4829 = vmatprep.mubr.bf16.mxu0 0
        %4830 = vmatmul.mubr.bf16.gmra.mxu0 %v4717
        %v4831 = vpop.f32.mrf.mxu0
        %v4832 = vadd.f32 0.0, %v4831
        %v4833 = vpop.f32.mrf.mxu0
        %v4834 = vpop.f32.mrf.mxu0
        %v4835 = vadd.f32 0.0, %v4834
        %v4836 = vpop.f32.mrf.mxu0
        %4837 = vmatprep.mubr.bf16.mxu0 0
        %4838 = vmatmul.mubr.bf16.gmra.mxu0 %v4718
        %v4839 = vpop.f32.mrf.mxu0
        %v4840 = vadd.f32 0.0, %v4839
        %v4841 = vpop.f32.mrf.mxu0
        %v4842 = vpop.f32.mrf.mxu0
        %v4843 = vadd.f32 0.0, %v4842
        %v4844 = vpop.f32.mrf.mxu0
        %4845 = vmatprep.mubr.bf16.mxu0 0
        %4846 = vmatmul.mubr.bf16.gmra.mxu0 %v4719
        %v4847 = vpop.f32.mrf.mxu0
        %v4848 = vadd.f32 0.0, %v4847
        %v4849 = vpop.f32.mrf.mxu0
        %v4850 = vpop.f32.mrf.mxu0
        %v4851 = vadd.f32 0.0, %v4850
        %v4852 = vpop.f32.mrf.mxu0
        %4853 = vmatprep.mubr.bf16.mxu0 0
        %4854 = vmatmul.mubr.bf16.gmra.mxu0 %v4720
        %v4855 = vpop.f32.mrf.mxu0
        %v4856 = vadd.f32 0.0, %v4855
        %v4857 = vpop.f32.mrf.mxu0
        %v4858 = vpop.f32.mrf.mxu0
        %v4859 = vadd.f32 0.0, %v4858
        %v4860 = vpop.f32.mrf.mxu0
        %4861 = vmatprep.mubr.bf16.mxu0 0
        %4862 = vmatmul.mubr.bf16.gmra.mxu0 %v4721
        %v4863 = vpop.f32.mrf.mxu0
        %v4864 = vadd.f32 0.0, %v4863
        %v4865 = vpop.f32.mrf.mxu0
        %v4866 = vpop.f32.mrf.mxu0
        %v4867 = vadd.f32 0.0, %v4866
        %v4868 = vpop.f32.mrf.mxu0
        %4869 = vmatprep.mubr.bf16.mxu0 0
        %4870 = vmatmul.mubr.bf16.gmra.mxu0 %v4722
        %v4871 = vpop.f32.mrf.mxu0
        %v4872 = vadd.f32 0.0, %v4871
        %v4873 = vpop.f32.mrf.mxu0
        %v4874 = vpop.f32.mrf.mxu0
        %v4875 = vadd.f32 0.0, %v4874
        %v4876 = vpop.f32.mrf.mxu0
        %4877 = vmatprep.mubr.bf16.mxu0 0
        %4878 = vmatmul.mubr.bf16.gmra.mxu0 %v4723
        %v4879 = vpop.f32.mrf.mxu0
        %v4880 = vadd.f32 0.0, %v4879
        %v4881 = vpop.f32.mrf.mxu0
        %v4882 = vpop.f32.mrf.mxu0
        %v4883 = vadd.f32 0.0, %v4882
        %v4884 = vpop.f32.mrf.mxu0
        %4885 = vmatprep.mubr.bf16.mxu0 0
        %4886 = vmatmul.mubr.bf16.gmra.mxu0 %v4724
        %v4887 = vpop.f32.mrf.mxu0
        %v4888 = vadd.f32 0.0, %v4887
        %v4889 = vpop.f32.mrf.mxu0
        %v4890 = vpop.f32.mrf.mxu0
        %v4891 = vadd.f32 0.0, %v4890
        %v4892 = vpop.f32.mrf.mxu0
        %4893 = vmatprep.mubr.bf16.mxu0 0
        %4894 = vmatmul.mubr.bf16.gmra.mxu0 %v4725
        %v4895 = vpop.f32.mrf.mxu0
        %v4896 = vadd.f32 0.0, %v4895
        %v4897 = vpop.f32.mrf.mxu0
        %v4898 = vpop.f32.mrf.mxu0
        %v4899 = vadd.f32 0.0, %v4898
        %v4900 = vpop.f32.mrf.mxu0
        %4901 = vmatprep.mubr.bf16.mxu0 0
        %4902 = vmatmul.mubr.bf16.gmra.mxu0 %v4726
        %v4903 = vpop.f32.mrf.mxu0
        %v4904 = vadd.f32 0.0, %v4903
        %v4905 = vpop.f32.mrf.mxu0
        %v4906 = vpop.f32.mrf.mxu0
        %v4907 = vadd.f32 0.0, %v4906
        %v4908 = vpop.f32.mrf.mxu0
        %4909 = vmatprep.mubr.bf16.mxu0 0
        %4910 = vmatmul.mubr.bf16.gmra.mxu0 %v4727
        %v4911 = vpop.f32.mrf.mxu0
        %v4912 = vadd.f32 0.0, %v4911
        %v4913 = vpop.f32.mrf.mxu0
        %v4914 = vpop.f32.mrf.mxu0
        %v4915 = vadd.f32 0.0, %v4914
        %v4916 = vpop.f32.mrf.mxu0
        %4917 = vmatprep.mubr.bf16.mxu0 0
        %4918 = vmatmul.mubr.bf16.gmra.mxu0 %v4728
        %v4919 = vpop.f32.mrf.mxu0
        %v4920 = vadd.f32 0.0, %v4919
        %v4921 = vpop.f32.mrf.mxu0
        %v4922 = vpop.f32.mrf.mxu0
        %v4923 = vadd.f32 0.0, %v4922
        %v4924 = vpop.f32.mrf.mxu0
        %4925 = vmatprep.mubr.bf16.mxu0 0
        %4926 = vmatmul.mubr.bf16.gmra.mxu0 %v4729
        %v4927 = vpop.f32.mrf.mxu0
        %v4928 = vadd.f32 0.0, %v4927
        %v4929 = vpop.f32.mrf.mxu0
        %v4930 = vpop.f32.mrf.mxu0
        %v4931 = vadd.f32 0.0, %v4930
        %v4932 = vpop.f32.mrf.mxu0
        %4933 = vmatprep.mubr.bf16.mxu0 0
        %4934 = vmatmul.mubr.bf16.gmra.mxu0 %v4730
        %v4935 = vpop.f32.mrf.mxu0
        %v4936 = vadd.f32 0.0, %v4935
        %v4937 = vpop.f32.mrf.mxu0
        %v4938 = vpop.f32.mrf.mxu0
        %v4939 = vadd.f32 0.0, %v4938
        %v4940 = vpop.f32.mrf.mxu0
        %4941 = vmatprep.mubr.bf16.mxu0 0
        %4942 = vmatmul.mubr.bf16.gmra.mxu0 %v4731
        %v4943 = vpop.f32.mrf.mxu0
        %v4944 = vadd.f32 0.0, %v4943
        %v4945 = vpop.f32.mrf.mxu0
        %v4946 = vpop.f32.mrf.mxu0
        %v4947 = vadd.f32 0.0, %v4946
        %v4948 = vpop.f32.mrf.mxu0
        %4949 = vmatprep.mubr.bf16.mxu0 0
        %4950 = vmatmul.mubr.bf16.gmra.mxu0 %v4732
        %v4951 = vpop.f32.mrf.mxu0
        %v4952 = vadd.f32 0.0, %v4951
        %v4953 = vpop.f32.mrf.mxu0
        %v4954 = vpop.f32.mrf.mxu0
        %v4955 = vadd.f32 0.0, %v4954
        %v4956 = vpop.f32.mrf.mxu0
        %4957 = vdwg.mxu0
        %v4958 = vadd.f32 %v4460, %v4832
        %v4959 = vadd.f32 %v4461, %v4835
        %v4960 = vadd.f32 %v4462, %v4840
        %v4961 = vadd.f32 %v4463, %v4843
        %v4962 = vadd.f32 %v4464, %v4848
        %v4963 = vadd.f32 %v4465, %v4851
        %v4964 = vadd.f32 %v4466, %v4856
        %v4965 = vadd.f32 %v4467, %v4859
        %v4966 = vadd.f32 %v4468, %v4864
        %v4967 = vadd.f32 %v4469, %v4867
        %v4968 = vadd.f32 %v4470, %v4872
        %v4969 = vadd.f32 %v4471, %v4875
        %v4970 = vadd.f32 %v4472, %v4880
        %v4971 = vadd.f32 %v4473, %v4883
        %v4972 = vadd.f32 %v4474, %v4888
        %v4973 = vadd.f32 %v4475, %v4891
        %v4974 = vadd.f32 %v4476, %v4896
        %v4975 = vadd.f32 %v4477, %v4899
        %v4976 = vadd.f32 %v4478, %v4904
        %v4977 = vadd.f32 %v4479, %v4907
        %v4978 = vadd.f32 %v4480, %v4912
        %v4979 = vadd.f32 %v4481, %v4915
        %v4980 = vadd.f32 %v4482, %v4920
        %v4981 = vadd.f32 %v4483, %v4923
        %v4982 = vadd.f32 %v4484, %v4928
        %v4983 = vadd.f32 %v4485, %v4931
        %v4984 = vadd.f32 %v4486, %v4936
        %v4985 = vadd.f32 %v4487, %v4939
        %v4986 = vadd.f32 %v4488, %v4944
        %v4987 = vadd.f32 %v4489, %v4947
        %v4988 = vadd.f32 %v4490, %v4952
        %v4989 = vadd.f32 %v4491, %v4955
        %v4990 = vadd.f32 %v4958, %v4959
        %v4991 = vadd.f32 %v4990, %v4960
        %v4992 = vadd.f32 %v4991, %v4961
        %v4993 = vadd.f32 %v4992, %v4962
        %v4994 = vadd.f32 %v4993, %v4963
        %v4995 = vadd.f32 %v4994, %v4964
        %v4996 = vadd.f32 %v4995, %v4965
        %v4997 = vadd.f32 %v4996, %v4966
        %v4998 = vadd.f32 %v4997, %v4967
        %v4999 = vadd.f32 %v4998, %v4968
        %v5000 = vadd.f32 %v4999, %v4969
        %v5001 = vadd.f32 %v5000, %v4970
        %v5002 = vadd.f32 %v5001, %v4971
        %v5003 = vadd.f32 %v5002, %v4972
        %v5004 = vadd.f32 %v5003, %v4973
        %v5005 = vadd.f32 %v5004, %v4974
        %v5006 = vadd.f32 %v5005, %v4975
        %v5007 = vadd.f32 %v5006, %v4976
        %v5008 = vadd.f32 %v5007, %v4977
        %v5009 = vadd.f32 %v5008, %v4978
        %v5010 = vadd.f32 %v5009, %v4979
        %v5011 = vadd.f32 %v5010, %v4980
        %v5012 = vadd.f32 %v5011, %v4981
        %v5013 = vadd.f32 %v5012, %v4982
        %v5014 = vadd.f32 %v5013, %v4983
        %v5015 = vadd.f32 %v5014, %v4984
        %v5016 = vadd.f32 %v5015, %v4985
        %v5017 = vadd.f32 %v5016, %v4986
        %v5018 = vadd.f32 %v5017, %v4987
        %v5019 = vadd.f32 %v5018, %v4988
        %v5020 = vadd.f32 %v5019, %v4989
        %v5021 = vrot.slane %v5020, 4
        %v5022 = vadd.f32 %v5020, %v5021
        %v5023 = vrot.slane %v5022, 2
        %v5024 = vadd.f32 %v5022, %v5023
        %v5025 = vrot.slane %v5024, 1
        %v5026 = vadd.f32 %v5024, %v5025
        %v5027 = vmul.f32 %v5026, 0.00390625
        %v5028 = vsub.f32 %v4958, %v5027
        %v5029 = vsub.f32 %v4959, %v5027
        %v5030 = vsub.f32 %v4960, %v5027
        %v5031 = vsub.f32 %v4961, %v5027
        %v5032 = vsub.f32 %v4962, %v5027
        %v5033 = vsub.f32 %v4963, %v5027
        %v5034 = vsub.f32 %v4964, %v5027
        %v5035 = vsub.f32 %v4965, %v5027
        %v5036 = vsub.f32 %v4966, %v5027
        %v5037 = vsub.f32 %v4967, %v5027
        %v5038 = vsub.f32 %v4968, %v5027
        %v5039 = vsub.f32 %v4969, %v5027
        %v5040 = vsub.f32 %v4970, %v5027
        %v5041 = vsub.f32 %v4971, %v5027
        %v5042 = vsub.f32 %v4972, %v5027
        %v5043 = vsub.f32 %v4973, %v5027
        %v5044 = vsub.f32 %v4974, %v5027
        %v5045 = vsub.f32 %v4975, %v5027
        %v5046 = vsub.f32 %v4976, %v5027
        %v5047 = vsub.f32 %v4977, %v5027
        %v5048 = vsub.f32 %v4978, %v5027
        %v5049 = vsub.f32 %v4979, %v5027
        %v5050 = vsub.f32 %v4980, %v5027
        %v5051 = vsub.f32 %v4981, %v5027
        %v5052 = vsub.f32 %v4982, %v5027
        %v5053 = vsub.f32 %v4983, %v5027
        %v5054 = vsub.f32 %v4984, %v5027
        %v5055 = vsub.f32 %v4985, %v5027
        %v5056 = vsub.f32 %v4986, %v5027
        %v5057 = vsub.f32 %v4987, %v5027
        %v5058 = vsub.f32 %v4988, %v5027
        %v5059 = vsub.f32 %v4989, %v5027
        %v5060 = vmul.f32 %v5028, %v5028
        %v5061 = vmul.f32 %v5029, %v5029
        %v5062 = vmul.f32 %v5030, %v5030
        %v5063 = vmul.f32 %v5031, %v5031
        %v5064 = vmul.f32 %v5032, %v5032
        %v5065 = vmul.f32 %v5033, %v5033
        %v5066 = vmul.f32 %v5034, %v5034
        %v5067 = vmul.f32 %v5035, %v5035
        %v5068 = vmul.f32 %v5036, %v5036
        %v5069 = vmul.f32 %v5037, %v5037
        %v5070 = vmul.f32 %v5038, %v5038
        %v5071 = vmul.f32 %v5039, %v5039
        %v5072 = vmul.f32 %v5040, %v5040
        %v5073 = vmul.f32 %v5041, %v5041
        %v5074 = vmul.f32 %v5042, %v5042
        %v5075 = vmul.f32 %v5043, %v5043
        %v5076 = vmul.f32 %v5044, %v5044
        %v5077 = vmul.f32 %v5045, %v5045
        %v5078 = vmul.f32 %v5046, %v5046
        %v5079 = vmul.f32 %v5047, %v5047
        %v5080 = vmul.f32 %v5048, %v5048
        %v5081 = vmul.f32 %v5049, %v5049
        %v5082 = vmul.f32 %v5050, %v5050
        %v5083 = vmul.f32 %v5051, %v5051
        %v5084 = vmul.f32 %v5052, %v5052
        %v5085 = vmul.f32 %v5053, %v5053
        %v5086 = vmul.f32 %v5054, %v5054
        %v5087 = vmul.f32 %v5055, %v5055
        %v5088 = vmul.f32 %v5056, %v5056
        %v5089 = vmul.f32 %v5057, %v5057
        %v5090 = vmul.f32 %v5058, %v5058
        %v5091 = vmul.f32 %v5059, %v5059
        %v5092 = vadd.f32 %v5060, %v5061
        %v5093 = vadd.f32 %v5092, %v5062
        %v5094 = vadd.f32 %v5093, %v5063
        %v5095 = vadd.f32 %v5094, %v5064
        %v5096 = vadd.f32 %v5095, %v5065
        %v5097 = vadd.f32 %v5096, %v5066
        %v5098 = vadd.f32 %v5097, %v5067
        %v5099 = vadd.f32 %v5098, %v5068
        %v5100 = vadd.f32 %v5099, %v5069
        %v5101 = vadd.f32 %v5100, %v5070
        %v5102 = vadd.f32 %v5101, %v5071
        %v5103 = vadd.f32 %v5102, %v5072
        %v5104 = vadd.f32 %v5103, %v5073
        %v5105 = vadd.f32 %v5104, %v5074
        %v5106 = vadd.f32 %v5105, %v5075
        %v5107 = vadd.f32 %v5106, %v5076
        %v5108 = vadd.f32 %v5107, %v5077
        %v5109 = vadd.f32 %v5108, %v5078
        %v5110 = vadd.f32 %v5109, %v5079
        %v5111 = vadd.f32 %v5110, %v5080
        %v5112 = vadd.f32 %v5111, %v5081
        %v5113 = vadd.f32 %v5112, %v5082
        %v5114 = vadd.f32 %v5113, %v5083
        %v5115 = vadd.f32 %v5114, %v5084
        %v5116 = vadd.f32 %v5115, %v5085
        %v5117 = vadd.f32 %v5116, %v5086
        %v5118 = vadd.f32 %v5117, %v5087
        %v5119 = vadd.f32 %v5118, %v5088
        %v5120 = vadd.f32 %v5119, %v5089
        %v5121 = vadd.f32 %v5120, %v5090
        %v5122 = vadd.f32 %v5121, %v5091
        %v5123 = vrot.slane %v5122, 4
        %v5124 = vadd.f32 %v5122, %v5123
        %v5125 = vrot.slane %v5124, 2
        %v5126 = vadd.f32 %v5124, %v5125
        %v5127 = vrot.slane %v5126, 1
        %v5128 = vadd.f32 %v5126, %v5127
        %5129 = vst [vmem:[%s174] sm:$0x1] %v5026
        %5130 = vst [vmem:[%s174 + $0x1] sm:$0x1] %v5128
        %v5131 = vpack.c.bf16 %v4959, %v4958
        %v5132 = vpack.c.bf16 %v4961, %v4960
        %v5133 = vpack.c.bf16 %v4963, %v4962
        %v5134 = vpack.c.bf16 %v4965, %v4964
        %v5135 = vpack.c.bf16 %v4967, %v4966
        %v5136 = vpack.c.bf16 %v4969, %v4968
        %v5137 = vpack.c.bf16 %v4971, %v4970
        %v5138 = vpack.c.bf16 %v4973, %v4972
        %v5139 = vpack.c.bf16 %v4975, %v4974
        %v5140 = vpack.c.bf16 %v4977, %v4976
        %v5141 = vpack.c.bf16 %v4979, %v4978
        %v5142 = vpack.c.bf16 %v4981, %v4980
        %v5143 = vpack.c.bf16 %v4983, %v4982
        %v5144 = vpack.c.bf16 %v4985, %v4984
        %v5145 = vpack.c.bf16 %v4987, %v4986
        %v5146 = vpack.c.bf16 %v4989, %v4988
        %v5163 = vunpack.c.l.b16 %v5131
        %v5164 = vunpack.c.h.b16 %v5131
        %v5165 = vunpack.c.l.b16 %v5132
        %v5166 = vunpack.c.h.b16 %v5132
        %v5167 = vunpack.c.l.b16 %v5133
        %v5168 = vunpack.c.h.b16 %v5133
        %v5169 = vunpack.c.l.b16 %v5134
        %v5170 = vunpack.c.h.b16 %v5134
        %v5171 = vunpack.c.l.b16 %v5135
        %v5172 = vunpack.c.h.b16 %v5135
        %v5173 = vunpack.c.l.b16 %v5136
        %v5174 = vunpack.c.h.b16 %v5136
        %v5175 = vunpack.c.l.b16 %v5137
        %v5176 = vunpack.c.h.b16 %v5137
        %v5177 = vunpack.c.l.b16 %v5138
        %v5178 = vunpack.c.h.b16 %v5138
        %v5179 = vunpack.c.l.b16 %v5139
        %v5180 = vunpack.c.h.b16 %v5139
        %v5181 = vunpack.c.l.b16 %v5140
        %v5182 = vunpack.c.h.b16 %v5140
        %v5183 = vunpack.c.l.b16 %v5141
        %v5184 = vunpack.c.h.b16 %v5141
        %v5185 = vunpack.c.l.b16 %v5142
        %v5186 = vunpack.c.h.b16 %v5142
        %v5187 = vunpack.c.l.b16 %v5143
        %v5188 = vunpack.c.h.b16 %v5143
        %v5189 = vunpack.c.l.b16 %v5144
        %v5190 = vunpack.c.h.b16 %v5144
        %v5191 = vunpack.c.l.b16 %v5145
        %v5192 = vunpack.c.h.b16 %v5145
        %v5193 = vunpack.c.l.b16 %v5146
        %v5194 = vunpack.c.h.b16 %v5146
        %v5195 = vpack.c.b16 %v5163, %v5163
        %v5196 = vpack.c.b16 %v5164, %v5164
        %v5197 = vpack.c.b16 %v5165, %v5165
        %v5198 = vpack.c.b16 %v5166, %v5166
        %v5199 = vpack.c.b16 %v5167, %v5167
        %v5200 = vpack.c.b16 %v5168, %v5168
        %v5201 = vpack.c.b16 %v5169, %v5169
        %v5202 = vpack.c.b16 %v5170, %v5170
        %v5203 = vpack.c.b16 %v5171, %v5171
        %v5204 = vpack.c.b16 %v5172, %v5172
        %v5205 = vpack.c.b16 %v5173, %v5173
        %v5206 = vpack.c.b16 %v5174, %v5174
        %v5207 = vpack.c.b16 %v5175, %v5175
        %v5208 = vpack.c.b16 %v5176, %v5176
        %v5209 = vpack.c.b16 %v5177, %v5177
        %v5210 = vpack.c.b16 %v5178, %v5178
        %v5211 = vpack.c.b16 %v5179, %v5179
        %v5212 = vpack.c.b16 %v5180, %v5180
        %v5213 = vpack.c.b16 %v5181, %v5181
        %v5214 = vpack.c.b16 %v5182, %v5182
        %v5215 = vpack.c.b16 %v5183, %v5183
        %v5216 = vpack.c.b16 %v5184, %v5184
        %v5217 = vpack.c.b16 %v5185, %v5185
        %v5218 = vpack.c.b16 %v5186, %v5186
        %v5219 = vpack.c.b16 %v5187, %v5187
        %v5220 = vpack.c.b16 %v5188, %v5188
        %v5221 = vpack.c.b16 %v5189, %v5189
        %v5222 = vpack.c.b16 %v5190, %v5190
        %v5223 = vpack.c.b16 %v5191, %v5191
        %v5224 = vpack.c.b16 %v5192, %v5192
        %v5225 = vpack.c.b16 %v5193, %v5193
        %v5226 = vpack.c.b16 %v5194, %v5194
        %5259 = vst [vmem:[%s167] sm:$0xf] %v5195
        %5260 = vst [vmem:[%s167 + $0x4] sm:$0xf] %v5196
        %5261 = vst [vmem:[%s167 + $0x8] sm:$0xf] %v5197
        %5262 = vst [vmem:[%s167 + $0xc] sm:$0xf] %v5198
        %5263 = vst [vmem:[%s167 + $0x10] sm:$0xf] %v5199
        %5264 = vst [vmem:[%s167 + $0x14] sm:$0xf] %v5200
        %5265 = vst [vmem:[%s167 + $0x18] sm:$0xf] %v5201
        %5266 = vst [vmem:[%s167 + $0x1c] sm:$0xf] %v5202
        %5267 = vst [vmem:[%s167 + $0x20] sm:$0xf] %v5203
        %5268 = vst [vmem:[%s167 + $0x24] sm:$0xf] %v5204
        %5269 = vst [vmem:[%s167 + $0x28] sm:$0xf] %v5205
        %5270 = vst [vmem:[%s167 + $0x2c] sm:$0xf] %v5206
        %5271 = vst [vmem:[%s167 + $0x30] sm:$0xf] %v5207
        %5272 = vst [vmem:[%s167 + $0x34] sm:$0xf] %v5208
        %5273 = vst [vmem:[%s167 + $0x38] sm:$0xf] %v5209
        %5274 = vst [vmem:[%s167 + $0x3c] sm:$0xf] %v5210
        %5275 = vst [vmem:[%s167 + $0x40] sm:$0xf] %v5211
        %5276 = vst [vmem:[%s167 + $0x44] sm:$0xf] %v5212
        %5277 = vst [vmem:[%s167 + $0x48] sm:$0xf] %v5213
        %5278 = vst [vmem:[%s167 + $0x4c] sm:$0xf] %v5214
        %5279 = vst [vmem:[%s167 + $0x50] sm:$0xf] %v5215
        %5280 = vst [vmem:[%s167 + $0x54] sm:$0xf] %v5216
        %5281 = vst [vmem:[%s167 + $0x58] sm:$0xf] %v5217
        %5282 = vst [vmem:[%s167 + $0x5c] sm:$0xf] %v5218
        %5283 = vst [vmem:[%s167 + $0x60] sm:$0xf] %v5219
        %5284 = vst [vmem:[%s167 + $0x64] sm:$0xf] %v5220
        %5285 = vst [vmem:[%s167 + $0x68] sm:$0xf] %v5221
        %5286 = vst [vmem:[%s167 + $0x6c] sm:$0xf] %v5222
        %5287 = vst [vmem:[%s167 + $0x70] sm:$0xf] %v5223
        %5288 = vst [vmem:[%s167 + $0x74] sm:$0xf] %v5224
        %5289 = vst [vmem:[%s167 + $0x78] sm:$0xf] %v5225
        %5290 = vst [vmem:[%s167 + $0x7c] sm:$0xf] %v5226
        %s5291 = sand.u32 %s76, 1
        %s5292 = scalar_lea.sflag [#allocation3], %s5291
        %s5293 = sand.u32 %s76, 1
        %s5294 = smul.addr %s5293, 128
        %s5295 = scalar_lea.vmem [#allocation2], %s5294
        %s5296 = sand.u32 %s102, 1
        %s5297 = scalar_lea.sflag [#allocation5], %s5296
        %s5298 = sand.u32 %s102, 1
        %s5299 = smul.addr %s5298, 2
        %s5300 = scalar_lea.vmem [#allocation4], %s5299
        // Predicated region
        $region29: #{tpu_custom_call.1} parent=27 // pred_check
          %p5301 = pneg %p86
        $region30: #{tpu_custom_call.1} parent=27 // pred_check_branch
          %5303 = sbr.rel (%p5301) target = $region32
        $region31: #{tpu_custom_call.1} parent=27 // pred_region
          %s5305 = ssub.s32 2048, 2048
          %5306 = vsyncadd %s5292, %s5305
          %s5307 = smul.addr %s21, 32
          %s5308 = smul.addr %s5307, 64
          %s5309 = scalar_lea.hbm %s2, %s5308
          %s5310 = sshll.u32 %s5295, 4
          %s5311 = int_to_ptr.vmem [resolvable:$true] %s5310
          %5316 = dma.vmem_to_hbm [thread:$0]  %s5311, 2048, %s5309, %s5292, 64, 64, 4
        $region32: #{tpu_custom_call.1} parent=27 // pred_fallthru
          _
        // Predicated region
        $region33: #{tpu_custom_call.1} parent=27 // pred_check
          %p5317 = pneg %p112
        $region34: #{tpu_custom_call.1} parent=27 // pred_check_branch
          %5319 = sbr.rel (%p5317) target = $region36
        $region35: #{tpu_custom_call.1} parent=27 // pred_region
          %s5321 = ssub.s32 32, 32
          %5322 = vsyncadd %s5297, %s5321
          %s5323 = smul.addr %s21, 32
          %s5324 = scalar_lea.hbm %s3, %s5323
          %s5326 = sshll.u32 %s5300, 4
          %s5327 = int_to_ptr.vmem [resolvable:$true] %s5326
          %5329 = dma.vmem_to_hbm [thread:$0]  %s5327, 32, %s5324, %s5297
        $region36: #{tpu_custom_call.1} parent=27 // pred_fallthru
          _
      $region28: #{tpu_custom_call.1} parent=5 // pred_fallthru
        _
      %p5330 = scmp.le.s32.totalorder 2, %s16
      // Predicated region
      $region37: #{tpu_custom_call.1} parent=5 // pred_check
        %p5331 = pneg %p5330
      $region38: #{tpu_custom_call.1} parent=5 // pred_check_branch
        %5333 = sbr.rel (%p5331) target = $region40
      $region39: #{tpu_custom_call.1} parent=5 // pred_region
        %s5334 = ssub.s32 %s16, 2
        // Predicated region
        $region41: #{tpu_custom_call.1} parent=39 // pred_check
          %p5335 = pneg %p92
        $region42: #{tpu_custom_call.1} parent=39 // pred_check_branch
          %5337 = sbr.rel (%p5335) target = $region44
        $region43: #{tpu_custom_call.1} parent=39 // pred_region
          %s5338 = sand.u32 %s77, 1
          %s5339 = scalar_lea.sflag [#allocation3], %s5338
          %s5340 = sand.u32 %s77, 1
          %s5341 = smul.addr %s5340, 128
          %s5342 = scalar_lea.vmem [#allocation2], %s5341
          %5343 = dma.done %s5339, 2048
        $region44: #{tpu_custom_call.1} parent=39 // pred_fallthru
          _
        // Predicated region
        $region45: #{tpu_custom_call.1} parent=39 // pred_check
          %p5344 = pneg %p118
        $region46: #{tpu_custom_call.1} parent=39 // pred_check_branch
          %5346 = sbr.rel (%p5344) target = $region48
        $region47: #{tpu_custom_call.1} parent=39 // pred_region
          %s5347 = sand.u32 %s103, 1
          %s5348 = scalar_lea.sflag [#allocation5], %s5347
          %s5349 = sand.u32 %s103, 1
          %s5350 = smul.addr %s5349, 2
          %s5351 = scalar_lea.vmem [#allocation4], %s5350
          %5352 = dma.done %s5348, 32
        $region48: #{tpu_custom_call.1} parent=39 // pred_fallthru
          _
      $region40: #{tpu_custom_call.1} parent=5 // pred_fallthru
        _
    $region6: #{tpu_custom_call.1} parent=1 // loop_footer
      %s20 = sadd.s32 1, %s16
    $region7: #{tpu_custom_call.1} parent=1 // loop_footer_branch
      %15 = sbr.rel target = $region3
    $region8: #{tpu_custom_call.1} parent=1 // loop_exit
      _
    %5353 = vsyncpa [#allocation3], 1
    %s5354 = scalar_lea.sflag [#allocation3], 1
    %5355 = vsyncpa %s5354, 1
    %5356 = vsyncpa [#allocation5], 1
    %s5357 = scalar_lea.sflag [#allocation5], 1
    %5358 = vsyncpa %s5357, 1

</llo_original>
